<compile_context>
chip_gen: v6e
topology: v6e:2x2x1
jax: 0.10.0
libtpu: 0.0.40
codegen_flags: <defaults>
</compile_context>

<pallas_src>
import functools

import jax
import jax.numpy as jnp
from jax.experimental import pallas as pl
from jax.experimental.pallas import tpu as pltpu

EPS = 1e-5


# ----------------------------- kernel helpers ------------------------------

def _accum_stats(sum_ref, sq_ref, h):
    sum_ref[...] += jnp.sum(h, axis=0, keepdims=True)
    sq_ref[...] += jnp.sum(h * h, axis=0, keepdims=True)


def _bn_scale_shift(sum_v, sq_v, gamma, beta, n_rows):
    """Training-mode BN affine (scale, shift) from accumulated sum / sum-of-squares."""
    inv_n = 1.0 / float(n_rows)
    mean = sum_v * inv_n
    var = sq_v * inv_n - mean * mean
    scale = gamma * jax.lax.rsqrt(var + EPS)
    return scale, beta - mean * scale


def _apply_bn(h, scale_ref, shift_ref):
    return h * scale_ref[...] + shift_ref[...]


def _bn_rows(h, gamma, beta):
    # Training-mode BN over the (small) batch dimension, fully in-register.
    inv_n = 1.0 / float(h.shape[0])
    mean = jnp.sum(h, axis=0, keepdims=True) * inv_n
    var = jnp.sum(h * h, axis=0, keepdims=True) * inv_n - mean * mean
    scale = gamma * jax.lax.rsqrt(var + EPS)
    return h * scale + (beta - mean * scale)


# --------------------------------- kernel ----------------------------------

def tnet_kernel(x_ref,
                w1, b1, g1, be1,
                w2, b2, g2, be2,
                w3, b3, g3, be3,
                w4, b4, g4, be4,
                w5, b5, g5, be5,
                w6, b6, eye_ref,
                out_ref,
                s1_sum, s1_sq, s1_scale, s1_shift,
                s2_sum, s2_sq, s2_scale, s2_shift,
                s3_sum, s3_sq,
                run_max, run_min, pmax, pmin,
                *, n_rows):
    p = pl.program_id(0)                      # pass index (0..2)
    b = pl.program_id(1)                      # batch element
    t = pl.program_id(2)                      # point tile
    nb = pl.num_programs(1)
    nt = pl.num_programs(2)
    is_first = jnp.logical_and(b == 0, t == 0)            # first step of a pass
    is_last = jnp.logical_and(b == nb - 1, t == nt - 1)    # last step of a pass

    x_bf16 = x_ref[...]                                    # already bf16 (cast in wrapper)

    def layer1():                                          # (TP, 128) f32
        h = jnp.dot(x_bf16, w1[...], preferred_element_type=jnp.float32)
        return jnp.maximum(h + b1[...], 0.0)

    def layer2(a1):                                        # (TP, 128) f32
        h = jnp.dot(a1.astype(jnp.bfloat16), w2[...],
                    preferred_element_type=jnp.float32)
        return jnp.maximum(h + b2[...], 0.0)

    def layer3(a2):                                        # (TP, 1024) f32
        h = jnp.dot(a2.astype(jnp.bfloat16), w3[...],
                    preferred_element_type=jnp.float32)
        return jnp.maximum(h + b3[...], 0.0)

    # ---------------- pass 0: bn1 statistics ----------------
    @pl.when(p == 0)
    def _pass0():
        @pl.when(is_first)
        def _():
            s1_sum[...] = jnp.zeros(s1_sum.shape, jnp.float32)
            s1_sq[...] = jnp.zeros(s1_sq.shape, jnp.float32)

        _accum_stats(s1_sum, s1_sq, layer1())

        @pl.when(is_last)
        def _():
            scale, shift = _bn_scale_shift(s1_sum[...], s1_sq[...],
                                           g1[...], be1[...], n_rows)
            s1_scale[...] = scale
            s1_shift[...] = shift

    # ---------------- pass 1: bn2 statistics ----------------
    @pl.when(p == 1)
    def _pass1():
        @pl.when(is_first)
        def _():
            s2_sum[...] = jnp.zeros(s2_sum.shape, jnp.float32)
            s2_sq[...] = jnp.zeros(s2_sq.shape, jnp.float32)

        h2 = layer2(_apply_bn(layer1(), s1_scale, s1_shift))
        _accum_stats(s2_sum, s2_sq, h2)

        @pl.when(is_last)
        def _():
            scale, shift = _bn_scale_shift(s2_sum[...], s2_sq[...],
                                           g2[...], be2[...], n_rows)
            s2_scale[...] = scale
            s2_shift[...] = shift

    # -------- pass 2: bn3 statistics + running max-pool + MLP head --------
    @pl.when(p == 2)
    def _pass2():
        @pl.when(is_first)
        def _():
            s3_sum[...] = jnp.zeros(s3_sum.shape, jnp.float32)
            s3_sq[...] = jnp.zeros(s3_sq.shape, jnp.float32)
            pmax[...] = jnp.zeros(pmax.shape, jnp.float32)   # hygiene; fully overwritten
            pmin[...] = jnp.zeros(pmin.shape, jnp.float32)

        h2 = layer2(_apply_bn(layer1(), s1_scale, s1_shift))
        h3 = layer3(_apply_bn(h2, s2_scale, s2_shift))
        _accum_stats(s3_sum, s3_sq, h3)

        # Per-batch running extrema: only (1,1024) work per tile (review fix).
        tile_max = jnp.max(h3, axis=0, keepdims=True)        # (1, 1024)
        tile_min = jnp.min(h3, axis=0, keepdims=True)

        @pl.when(t == 0)
        def _():
            run_max[...] = jnp.full(run_max.shape, -jnp.inf, jnp.float32)
            run_min[...] = jnp.full(run_min.shape, jnp.inf, jnp.float32)

        run_max[...] = jnp.maximum(run_max[...], tile_max)
        run_min[...] = jnp.minimum(run_min[...], tile_min)

        # Commit this batch's extrema ONCE (last tile of the batch), not every tile.
        @pl.when(t == nt - 1)
        def _commit():
            row_ids = jax.lax.broadcasted_iota(jnp.int32, pmax.shape, 0)
            in_row = row_ids == b
            pmax[...] = jnp.where(in_row, run_max[...], pmax[...])
            pmin[...] = jnp.where(in_row, run_min[...], pmin[...])

        @pl.when(is_last)
        def _head():
            scale3, shift3 = _bn_scale_shift(s3_sum[...], s3_sq[...],
                                             g3[...], be3[...], n_rows)
            # max over points of (h3*scale3 + shift3), exactly, from the stored extrema
            pooled = jnp.where(scale3 >= 0.0, pmax[...], pmin[...]) * scale3 + shift3

            h4 = jnp.maximum(
                jnp.dot(pooled.astype(jnp.bfloat16), w4[...],
                        preferred_element_type=jnp.float32) + b4[...], 0.0)
            h4 = _bn_rows(h4, g4[...], be4[...])
            h5 = jnp.maximum(
                jnp.dot(h4.astype(jnp.bfloat16), w5[...],
                        preferred_element_type=jnp.float32) + b5[...], 0.0)
            h5 = _bn_rows(h5, g5[...], be5[...])
            logits = jnp.dot(h5.astype(jnp.bfloat16), w6[...],
                             preferred_element_type=jnp.float32) + b6[...]
            out_ref[...] = logits + eye_ref[...]


# --------------------------------- wrapper ---------------------------------

def _pad_cols(a, width):
    return jnp.pad(a, ((0, 0), (0, width - a.shape[1])))


def _pick_point_tile(num_points, cap=1024):
    """Largest divisor of num_points <= cap, preferring sublane-aligned sizes.

    cap=1024 keeps the f32 (TP,1024) intermediates comfortably inside VMEM on
    all generations (64 MiB on v7x); v5e/v6e could go to ~2048.
    """
    if num_points <= cap:
        return num_points
    divisors = [d for d in range(1, cap + 1) if num_points % d == 0]
    for align in (16, 8, 1):
        cands = [d for d in divisors if d % align == 0]
        if cands:
            return max(cands)
    return 1


def init_params(key, dim):
    """Deterministic synthetic parameters (weights stored as (C_in, C_out))."""
    dims = [(dim, 64), (64, 128), (128, 1024), (1024, 512), (512, 256), (256, dim * dim)]
    params = []
    for i, (cin, cout) in enumerate(dims):
        key, kw, kb, kg, kbe = jax.random.split(key, 5)
        w = jax.random.normal(kw, (cin, cout), jnp.float32) * 0.1
        b = jax.random.normal(kb, (1, cout), jnp.float32) * 0.1
        params += [w, b]
        if i < 5:  # layers 0..4 are followed by a BatchNorm
            g = 1.0 + 0.1 * jax.random.normal(kg, (1, cout), jnp.float32)
            be = 0.1 * jax.random.normal(kbe, (1, cout), jnp.float32)
            params += [g, be]
    return tuple(params)


def tnet_forward(x, params, dim, num_points, *, point_tile=None):
    (w1, b1, g1, be1, w2, b2, g2, be2, w3, b3, g3, be3,
     w4, b4, g4, be4, w5, b5, g5, be5, w6, b6) = params
    bs = x.shape[0]

    if point_tile is None:
        point_tile = _pick_point_tile(num_points)
    assert num_points % point_tile == 0, "num_points must be divisible by point_tile"
    n_pt_tiles = num_points // point_tile

    cin_pad = max(8, dim)                         # pad K of the first matmul
    c1_pad = 128                                  # pad 64-wide layer-1 output to full lanes
    out_pad = pl.cdiv(dim * dim, 128) * 128       # lane-dense output

    # ---- lane-pad / cast parameters (zero padding keeps the math exact) ----
    w1p = _pad_cols(jnp.pad(w1, ((0, cin_pad - dim), (0, 0))), c1_pad).astype(jnp.bfloat16)
    b1p = _pad_cols(b1, c1_pad)
    g1p = _pad_cols(g1, c1_pad)                   # gamma=0 on pad lanes -> BN output 0 there
    be1p = _pad_cols(be1, c1_pad)
    w2p = jnp.pad(w2, ((0, c1_pad - w2.shape[0]), (0, 0))).astype(jnp.bfloat16)
    w3p = w3.astype(jnp.bfloat16)
    w4p = w4.astype(jnp.bfloat16)                 # bf16 head weights: half the resident VMEM
    w5p = w5.astype(jnp.bfloat16)
    w6p = _pad_cols(w6, out_pad).astype(jnp.bfloat16)
    b6p = _pad_cols(b6, out_pad)
    eye_flat = _pad_cols(jnp.eye(dim, dtype=jnp.float32).reshape(1, dim * dim), out_pad)

    # ---- input: NCL -> (bs, npts, cin_pad) channels-last, cast to bf16 once ----
    x_cl = jnp.transpose(x, (0, 2, 1)).astype(jnp.float32)
    x_cl = jnp.pad(x_cl, ((0, 0), (0, 0), (0, cin_pad - dim))).astype(jnp.bfloat16)

    inputs = (x_cl,
              w1p, b1p, g1p, be1p,
              w2p, b2, g2, be2,
              w3p, b3, g3, be3,
              w4p, b4, g4, be4,
              w5p, b5, g5, be5,
              w6p, b6p, eye_flat)

    def const_spec(a):
        nd = a.ndim
        return pl.BlockSpec(a.shape, lambda p, b, t: (0,) * nd)

    in_specs = [pl.BlockSpec((None, point_tile, cin_pad), lambda p, b, t: (b, t, 0))]
    in_specs += [const_spec(a) for a in inputs[1:]]

    scratch_shapes = (
        [pltpu.VMEM((1, c1_pad), jnp.float32)] * 4      # bn1 sum / sumsq / scale / shift
        + [pltpu.VMEM((1, 128), jnp.float32)] * 4       # bn2 sum / sumsq / scale / shift
        + [pltpu.VMEM((1, 1024), jnp.float32)] * 2      # bn3 sum / sumsq
        + [pltpu.VMEM((1, 1024), jnp.float32)] * 2      # per-batch running max / min
        + [pltpu.VMEM((bs, 1024), jnp.float32)] * 2     # pooled extrema for all batches
    )

    # ---- VMEM budget from actual usage (+ headroom), capped below v7x physical ----
    const_bytes = sum(int(a.size) * a.dtype.itemsize for a in inputs[1:])
    x_block_bytes = point_tile * cin_pad * 2
    out_bytes = bs * out_pad * 4
    scratch_bytes = (8 * c1_pad + 4 * 1024 + 2 * bs * 1024) * 4
    act_headroom = 4 * point_tile * 1024 * 4            # a few (TP,1024) f32 temporaries
    vmem_limit = int(min(max(2 * (const_bytes + x_block_bytes + out_bytes)
                             + scratch_bytes + act_headroom + (8 << 20),
                             24 << 20),
                         56 << 20))

    kernel = functools.partial(tnet_kernel, n_rows=bs * num_points)

    out = pl.pallas_call(
        kernel,
        out_shape=jax.ShapeDtypeStruct((bs, out_pad), jnp.float32),
        grid_spec=pltpu.PrefetchScalarGridSpec(
            num_scalar_prefetch=0,
            grid=(3, bs, n_pt_tiles),
            in_specs=in_specs,
            out_specs=pl.BlockSpec((bs, out_pad), lambda p, b, t: (0, 0)),
            scratch_shapes=scratch_shapes),
        compiler_params=pltpu.CompilerParams(
            # BN batch statistics + pass ordering carry state across all grid axes,
            # so every axis stays "arbitrary" (sequential on one TensorCore).
            # TODO(synk): v7x — shard point tiles across the 2 TCs and reduce the
            # per-core BN partial sums / pooled extrema cross-core before finalize.
            dimension_semantics=("arbitrary", "arbitrary", "arbitrary"),
            vmem_limit_bytes=vmem_limit),
    )(*inputs)

    return out[:, :dim * dim].reshape(bs, dim, dim)


# ------------------------------ pure-JAX reference --------------------------

def ref_forward(x, params, dim, num_points):
    """Replicates the PyTorch forward (training-mode BN, bn(relu(conv)) order),
    with the same bf16-operand / f32-accumulation matmuls as the kernel."""
    (w1, b1, g1, be1, w2, b2, g2, be2, w3, b3, g3, be3,
     w4, b4, g4, be4, w5, b5, g5, be5, w6, b6) = params
    bs = x.shape[0]

    def mm(h, w):  # bf16 operands, f32 accumulation (matches the kernel)
        return jnp.dot(h.astype(jnp.bfloat16), w.astype(jnp.bfloat16),
                       preferred_element_type=jnp.float32)

    def bn(h, g, b):
        mean = jnp.mean(h, axis=0, keepdims=True)
        var = jnp.mean(h * h, axis=0, keepdims=True) - mean * mean
        scale = g * jax.lax.rsqrt(var + EPS)
        return h * scale + (b - mean * scale)

    h = jnp.transpose(x, (0, 2, 1)).reshape(bs * num_points, dim).astype(jnp.float32)
    h = bn(jnp.maximum(mm(h, w1) + b1, 0.0), g1, be1)
    h = bn(jnp.maximum(mm(h, w2) + b2, 0.0), g2, be2)
    h = bn(jnp.maximum(mm(h, w3) + b3, 0.0), g3, be3)
    pooled = jnp.max(h.reshape(bs, num_points, -1), axis=1)
    h = bn(jnp.maximum(mm(pooled, w4) + b4, 0.0), g4, be4)
    h = bn(jnp.maximum(mm(h, w5) + b5, 0.0), g5, be5)
    out = mm(h, w6) + b6
    return out.reshape(bs, dim, dim) + jnp.eye(dim, dtype=jnp.float32)


# ----------------------------------- main -----------------------------------

if __name__ == "__main__":
    dim = 3
    num_points = 128   # small stand-in for the default 2500
    bs = 4
    point_tile = 32    # several point tiles per batch to exercise streaming BN / pooling

    key = jax.random.PRNGKey(0)
    kx, kp = jax.random.split(key)
    x = jax.random.normal(kx, (bs, dim, num_points), jnp.float32)
    # Give each batch element a distinct scale so the head BatchNorms (which
    # normalize over only `bs` rows, eps=1e-5) are well-conditioned and the
    # kernel-vs-reference comparison is numerically stable.
    x = x * jnp.arange(1.0, bs + 1.0, dtype=jnp.float32).reshape(bs, 1, 1)
    params = init_params(kp, dim)

    out = jax.block_until_ready(
        tnet_forward(x, params, dim, num_points, point_tile=point_tile))
    ref = ref_forward(x, params, dim, num_points)

    assert out.shape == (bs, dim, dim)
    max_err = float(jnp.max(jnp.abs(out - ref)))
    assert jnp.allclose(out, ref, rtol=2e-2, atol=2e-2), (
        f"mismatch: max abs diff {max_err}")

    print("KERNEL_OK")
</pallas_src>

<mosaic_0001>
module attributes {stable_mosaic.version = 11 : i64} {
  func.func @tnet_kernel(%arg0: i32, %arg1: i32, %arg2: i32, %arg3: memref<1x32x8xbf16, #tpu.memory_space<vmem>>, %arg4: memref<8x128xbf16, #tpu.memory_space<vmem>>, %arg5: memref<1x128xf32, #tpu.memory_space<vmem>>, %arg6: memref<1x128xf32, #tpu.memory_space<vmem>>, %arg7: memref<1x128xf32, #tpu.memory_space<vmem>>, %arg8: memref<128x128xbf16, #tpu.memory_space<vmem>>, %arg9: memref<1x128xf32, #tpu.memory_space<vmem>>, %arg10: memref<1x128xf32, #tpu.memory_space<vmem>>, %arg11: memref<1x128xf32, #tpu.memory_space<vmem>>, %arg12: memref<128x1024xbf16, #tpu.memory_space<vmem>>, %arg13: memref<1x1024xf32, #tpu.memory_space<vmem>>, %arg14: memref<1x1024xf32, #tpu.memory_space<vmem>>, %arg15: memref<1x1024xf32, #tpu.memory_space<vmem>>, %arg16: memref<1024x512xbf16, #tpu.memory_space<vmem>>, %arg17: memref<1x512xf32, #tpu.memory_space<vmem>>, %arg18: memref<1x512xf32, #tpu.memory_space<vmem>>, %arg19: memref<1x512xf32, #tpu.memory_space<vmem>>, %arg20: memref<512x256xbf16, #tpu.memory_space<vmem>>, %arg21: memref<1x256xf32, #tpu.memory_space<vmem>>, %arg22: memref<1x256xf32, #tpu.memory_space<vmem>>, %arg23: memref<1x256xf32, #tpu.memory_space<vmem>>, %arg24: memref<256x128xbf16, #tpu.memory_space<vmem>>, %arg25: memref<1x128xf32, #tpu.memory_space<vmem>>, %arg26: memref<1x128xf32, #tpu.memory_space<vmem>>, %arg27: memref<4x128xf32, #tpu.memory_space<vmem>>, %arg28: memref<1x128xf32, #tpu.memory_space<vmem>>, %arg29: memref<1x128xf32, #tpu.memory_space<vmem>>, %arg30: memref<1x128xf32, #tpu.memory_space<vmem>>, %arg31: memref<1x128xf32, #tpu.memory_space<vmem>>, %arg32: memref<1x128xf32, #tpu.memory_space<vmem>>, %arg33: memref<1x128xf32, #tpu.memory_space<vmem>>, %arg34: memref<1x128xf32, #tpu.memory_space<vmem>>, %arg35: memref<1x128xf32, #tpu.memory_space<vmem>>, %arg36: memref<1x1024xf32, #tpu.memory_space<vmem>>, %arg37: memref<1x1024xf32, #tpu.memory_space<vmem>>, %arg38: memref<1x1024xf32, #tpu.memory_space<vmem>>, %arg39: memref<1x1024xf32, #tpu.memory_space<vmem>>, %arg40: memref<4x1024xf32, #tpu.memory_space<vmem>>, %arg41: memref<4x1024xf32, #tpu.memory_space<vmem>>) attributes {dimension_semantics = [#tpu.dimension_semantics<arbitrary>, #tpu.dimension_semantics<arbitrary>, #tpu.dimension_semantics<arbitrary>], iteration_bounds = array<i64: 3, 4, 4>, scalar_prefetch = 0 : i64, scratch_operands = 14 : i64, tpu.core_type = #tpu.core_type<tc>, window_params = [{transform_indices = @transform_0, window_bounds = array<i64: 1, 32, 8>}, {pipeline_mode = #tpu.pipeline_mode<synchronous>, transform_indices = @transform_1, window_bounds = array<i64: 8, 128>}, {pipeline_mode = #tpu.pipeline_mode<synchronous>, transform_indices = @transform_2, window_bounds = array<i64: 1, 128>}, {pipeline_mode = #tpu.pipeline_mode<synchronous>, transform_indices = @transform_3, window_bounds = array<i64: 1, 128>}, {pipeline_mode = #tpu.pipeline_mode<synchronous>, transform_indices = @transform_4, window_bounds = array<i64: 1, 128>}, {pipeline_mode = #tpu.pipeline_mode<synchronous>, transform_indices = @transform_5, window_bounds = array<i64: 128, 128>}, {pipeline_mode = #tpu.pipeline_mode<synchronous>, transform_indices = @transform_6, window_bounds = array<i64: 1, 128>}, {pipeline_mode = #tpu.pipeline_mode<synchronous>, transform_indices = @transform_7, window_bounds = array<i64: 1, 128>}, {pipeline_mode = #tpu.pipeline_mode<synchronous>, transform_indices = @transform_8, window_bounds = array<i64: 1, 128>}, {pipeline_mode = #tpu.pipeline_mode<synchronous>, transform_indices = @transform_9, window_bounds = array<i64: 128, 1024>}, {pipeline_mode = #tpu.pipeline_mode<synchronous>, transform_indices = @transform_10, window_bounds = array<i64: 1, 1024>}, {pipeline_mode = #tpu.pipeline_mode<synchronous>, transform_indices = @transform_11, window_bounds = array<i64: 1, 1024>}, {pipeline_mode = #tpu.pipeline_mode<synchronous>, transform_indices = @transform_12, window_bounds = array<i64: 1, 1024>}, {pipeline_mode = #tpu.pipeline_mode<synchronous>, transform_indices = @transform_13, window_bounds = array<i64: 1024, 512>}, {pipeline_mode = #tpu.pipeline_mode<synchronous>, transform_indices = @transform_14, window_bounds = array<i64: 1, 512>}, {pipeline_mode = #tpu.pipeline_mode<synchronous>, transform_indices = @transform_15, window_bounds = array<i64: 1, 512>}, {pipeline_mode = #tpu.pipeline_mode<synchronous>, transform_indices = @transform_16, window_bounds = array<i64: 1, 512>}, {pipeline_mode = #tpu.pipeline_mode<synchronous>, transform_indices = @transform_17, window_bounds = array<i64: 512, 256>}, {pipeline_mode = #tpu.pipeline_mode<synchronous>, transform_indices = @transform_18, window_bounds = array<i64: 1, 256>}, {pipeline_mode = #tpu.pipeline_mode<synchronous>, transform_indices = @transform_19, window_bounds = array<i64: 1, 256>}, {pipeline_mode = #tpu.pipeline_mode<synchronous>, transform_indices = @transform_20, window_bounds = array<i64: 1, 256>}, {pipeline_mode = #tpu.pipeline_mode<synchronous>, transform_indices = @transform_21, window_bounds = array<i64: 256, 128>}, {pipeline_mode = #tpu.pipeline_mode<synchronous>, transform_indices = @transform_22, window_bounds = array<i64: 1, 128>}, {pipeline_mode = #tpu.pipeline_mode<synchronous>, transform_indices = @transform_23, window_bounds = array<i64: 1, 128>}, {pipeline_mode = #tpu.pipeline_mode<synchronous>, transform_indices = @transform_24, window_bounds = array<i64: 4, 128>}]} {
    %c0_i32 = arith.constant 0 : i32
    %0 = arith.cmpi eq, %arg1, %c0_i32 : i32
    %c0_i32_0 = arith.constant 0 : i32
    %1 = arith.cmpi eq, %arg2, %c0_i32_0 : i32
    %2 = arith.andi %0, %1 : i1
    %c3_i32 = arith.constant 3 : i32
    %3 = arith.cmpi eq, %arg1, %c3_i32 : i32
    %c3_i32_1 = arith.constant 3 : i32
    %4 = arith.cmpi eq, %arg2, %c3_i32_1 : i32
    %5 = arith.andi %3, %4 : i1
    %c0 = arith.constant 0 : index
    %c0_2 = arith.constant 0 : index
    %c0_3 = arith.constant 0 : index
    %6 = vector.load %arg3[%c0, %c0_2, %c0_3] : memref<1x32x8xbf16, #tpu.memory_space<vmem>>, vector<1x32x8xbf16>
    %7 = vector.shape_cast %6 : vector<1x32x8xbf16> to vector<32x8xbf16>
    %c0_i32_4 = arith.constant 0 : i32
    %8 = arith.cmpi eq, %arg0, %c0_i32_4 : i32
    %9 = arith.extui %8 : i1 to i32
    %c0_i32_5 = arith.constant 0 : i32
    %10 = arith.cmpi ne, %9, %c0_i32_5 : i32
    scf.if %10 {
      %17 = arith.extui %2 : i1 to i32
      %c0_i32_8 = arith.constant 0 : i32
      %18 = arith.cmpi ne, %17, %c0_i32_8 : i32
      scf.if %18 {
        %cst_25 = arith.constant 0.000000e+00 : f32
        %39 = vector.broadcast %cst_25 : f32 to vector<1x128xf32>
        %c0_26 = arith.constant 0 : index
        %c0_27 = arith.constant 0 : index
        %40 = vector.load %arg28[%c0_26, %c0_27] : memref<1x128xf32, #tpu.memory_space<vmem>>, vector<1x128xf32>
        tpu.vector_store %arg28[%c0_26, %c0_27], %39 {strides = array<i32>} : memref<1x128xf32, #tpu.memory_space<vmem>>, vector<1x128xf32>,
        %cst_28 = arith.constant 0.000000e+00 : f32
        %41 = vector.broadcast %cst_28 : f32 to vector<1x128xf32>
        %c0_29 = arith.constant 0 : index
        %c0_30 = arith.constant 0 : index
        %42 = vector.load %arg29[%c0_29, %c0_30] : memref<1x128xf32, #tpu.memory_space<vmem>>, vector<1x128xf32>
        tpu.vector_store %arg29[%c0_29, %c0_30], %41 {strides = array<i32>} : memref<1x128xf32, #tpu.memory_space<vmem>>, vector<1x128xf32>,
      } else {
      }
      %c0_9 = arith.constant 0 : index
      %c0_10 = arith.constant 0 : index
      %19 = vector.load %arg4[%c0_9, %c0_10] : memref<8x128xbf16, #tpu.memory_space<vmem>>, vector<8x128xbf16>
      %cst = arith.constant dense<0.000000e+00> : vector<32x128xf32>
      %20 = tpu.matmul %7, %19, %cst {dimension_numbers = #tpu.dot_dimension_numbers<[1], [0], [0], [1], [0, 0, 1, 1], [], []>} : vector<32x8xbf16>, vector<8x128xbf16>, vector<32x128xf32> -> vector<32x128xf32>
      %c0_11 = arith.constant 0 : index
      %c0_12 = arith.constant 0 : index
      %21 = vector.load %arg5[%c0_11, %c0_12] : memref<1x128xf32, #tpu.memory_space<vmem>>, vector<1x128xf32>
      %22 = vector.broadcast %21 : vector<1x128xf32> to vector<32x128xf32>
      %23 = arith.addf %20, %22 : vector<32x128xf32>
      %cst_13 = arith.constant 0.000000e+00 : f32
      %24 = vector.broadcast %cst_13 : f32 to vector<32x128xf32>
      %25 = arith.maximumf %23, %24 : vector<32x128xf32>
      %c0_14 = arith.constant 0 : index
      %c0_15 = arith.constant 0 : index
      %26 = vector.load %arg28[%c0_14, %c0_15] : memref<1x128xf32, #tpu.memory_space<vmem>>, vector<1x128xf32>
      %cst_16 = arith.constant dense<0.000000e+00> : vector<128xf32>
      %27 = vector.multi_reduction <add>, %25, %cst_16 [0] : vector<32x128xf32> to vector<128xf32>
      %28 = vector.shape_cast %27 : vector<128xf32> to vector<1x128xf32>
      %29 = arith.addf %26, %28 : vector<1x128xf32>
      %c0_17 = arith.constant 0 : index
      %c0_18 = arith.constant 0 : index
      %30 = vector.load %arg28[%c0_17, %c0_18] : memref<1x128xf32, #tpu.memory_space<vmem>>, vector<1x128xf32>
      tpu.vector_store %arg28[%c0_17, %c0_18], %29 {strides = array<i32>} : memref<1x128xf32, #tpu.memory_space<vmem>>, vector<1x128xf32>,
      %c0_19 = arith.constant 0 : index
      %c0_20 = arith.constant 0 : index
      %31 = vector.load %arg29[%c0_19, %c0_20] : memref<1x128xf32, #tpu.memory_space<vmem>>, vector<1x128xf32>
      %32 = arith.mulf %25, %25 : vector<32x128xf32>
      %cst_21 = arith.constant dense<0.000000e+00> : vector<128xf32>
      %33 = vector.multi_reduction <add>, %32, %cst_21 [0] : vector<32x128xf32> to vector<128xf32>
      %34 = vector.shape_cast %33 : vector<128xf32> to vector<1x128xf32>
      %35 = arith.addf %31, %34 : vector<1x128xf32>
      %c0_22 = arith.constant 0 : index
      %c0_23 = arith.constant 0 : index
      %36 = vector.load %arg29[%c0_22, %c0_23] : memref<1x128xf32, #tpu.memory_space<vmem>>, vector<1x128xf32>
      tpu.vector_store %arg29[%c0_22, %c0_23], %35 {strides = array<i32>} : memref<1x128xf32, #tpu.memory_space<vmem>>, vector<1x128xf32>,
      %37 = arith.extui %5 : i1 to i32
      %c0_i32_24 = arith.constant 0 : i32
      %38 = arith.cmpi ne, %37, %c0_i32_24 : i32
      scf.if %38 {
        %c0_25 = arith.constant 0 : index
        %c0_26 = arith.constant 0 : index
        %39 = vector.load %arg28[%c0_25, %c0_26] : memref<1x128xf32, #tpu.memory_space<vmem>>, vector<1x128xf32>
        %c0_27 = arith.constant 0 : index
        %c0_28 = arith.constant 0 : index
        %40 = vector.load %arg29[%c0_27, %c0_28] : memref<1x128xf32, #tpu.memory_space<vmem>>, vector<1x128xf32>
        %c0_29 = arith.constant 0 : index
        %c0_30 = arith.constant 0 : index
        %41 = vector.load %arg6[%c0_29, %c0_30] : memref<1x128xf32, #tpu.memory_space<vmem>>, vector<1x128xf32>
        %c0_31 = arith.constant 0 : index
        %c0_32 = arith.constant 0 : index
        %42 = vector.load %arg7[%c0_31, %c0_32] : memref<1x128xf32, #tpu.memory_space<vmem>>, vector<1x128xf32>
        %cst_33 = arith.constant 0.001953125 : f32
        %43 = vector.broadcast %cst_33 : f32 to vector<1x128xf32>
        %44 = arith.mulf %39, %43 : vector<1x128xf32>
        %cst_34 = arith.constant 0.001953125 : f32
        %45 = vector.broadcast %cst_34 : f32 to vector<1x128xf32>
        %46 = arith.mulf %40, %45 : vector<1x128xf32>
        %47 = arith.mulf %44, %44 : vector<1x128xf32>
        %48 = arith.subf %46, %47 : vector<1x128xf32>
        %cst_35 = arith.constant 9.99999974E-6 : f32
        %49 = vector.broadcast %cst_35 : f32 to vector<1x128xf32>
        %50 = arith.addf %48, %49 : vector<1x128xf32>
        %51 = math.rsqrt %50 : vector<1x128xf32>
        %52 = arith.mulf %41, %51 : vector<1x128xf32>
        %53 = arith.mulf %44, %52 : vector<1x128xf32>
        %54 = arith.subf %42, %53 : vector<1x128xf32>
        %c0_36 = arith.constant 0 : index
        %c0_37 = arith.constant 0 : index
        %55 = vector.load %arg30[%c0_36, %c0_37] : memref<1x128xf32, #tpu.memory_space<vmem>>, vector<1x128xf32>
        tpu.vector_store %arg30[%c0_36, %c0_37], %52 {strides = array<i32>} : memref<1x128xf32, #tpu.memory_space<vmem>>, vector<1x128xf32>,
        %c0_38 = arith.constant 0 : index
        %c0_39 = arith.constant 0 : index
        %56 = vector.load %arg31[%c0_38, %c0_39] : memref<1x128xf32, #tpu.memory_space<vmem>>, vector<1x128xf32>
        tpu.vector_store %arg31[%c0_38, %c0_39], %54 {strides = array<i32>} : memref<1x128xf32, #tpu.memory_space<vmem>>, vector<1x128xf32>,
      } else {
      }
    } else {
    }
    %c1_i32 = arith.constant 1 : i32
    %11 = arith.cmpi eq, %arg0, %c1_i32 : i32
    %12 = arith.extui %11 : i1 to i32
    %c0_i32_6 = arith.constant 0 : i32
    %13 = arith.cmpi ne, %12, %c0_i32_6 : i32
    scf.if %13 {
      %17 = arith.extui %2 : i1 to i32
      %c0_i32_8 = arith.constant 0 : i32
      %18 = arith.cmpi ne, %17, %c0_i32_8 : i32
      scf.if %18 {
        %cst_35 = arith.constant 0.000000e+00 : f32
        %53 = vector.broadcast %cst_35 : f32 to vector<1x128xf32>
        %c0_36 = arith.constant 0 : index
        %c0_37 = arith.constant 0 : index
        %54 = vector.load %arg32[%c0_36, %c0_37] : memref<1x128xf32, #tpu.memory_space<vmem>>, vector<1x128xf32>
        tpu.vector_store %arg32[%c0_36, %c0_37], %53 {strides = array<i32>} : memref<1x128xf32, #tpu.memory_space<vmem>>, vector<1x128xf32>,
        %cst_38 = arith.constant 0.000000e+00 : f32
        %55 = vector.broadcast %cst_38 : f32 to vector<1x128xf32>
        %c0_39 = arith.constant 0 : index
        %c0_40 = arith.constant 0 : index
        %56 = vector.load %arg33[%c0_39, %c0_40] : memref<1x128xf32, #tpu.memory_space<vmem>>, vector<1x128xf32>
        tpu.vector_store %arg33[%c0_39, %c0_40], %55 {strides = array<i32>} : memref<1x128xf32, #tpu.memory_space<vmem>>, vector<1x128xf32>,
      } else {
      }
      %c0_9 = arith.constant 0 : index
      %c0_10 = arith.constant 0 : index
      %19 = vector.load %arg4[%c0_9, %c0_10] : memref<8x128xbf16, #tpu.memory_space<vmem>>, vector<8x128xbf16>
      %cst = arith.constant dense<0.000000e+00> : vector<32x128xf32>
      %20 = tpu.matmul %7, %19, %cst {dimension_numbers = #tpu.dot_dimension_numbers<[1], [0], [0], [1], [0, 0, 1, 1], [], []>} : vector<32x8xbf16>, vector<8x128xbf16>, vector<32x128xf32> -> vector<32x128xf32>
      %c0_11 = arith.constant 0 : index
      %c0_12 = arith.constant 0 : index
      %21 = vector.load %arg5[%c0_11, %c0_12] : memref<1x128xf32, #tpu.memory_space<vmem>>, vector<1x128xf32>
      %22 = vector.broadcast %21 : vector<1x128xf32> to vector<32x128xf32>
      %23 = arith.addf %20, %22 : vector<32x128xf32>
      %cst_13 = arith.constant 0.000000e+00 : f32
      %24 = vector.broadcast %cst_13 : f32 to vector<32x128xf32>
      %25 = arith.maximumf %23, %24 : vector<32x128xf32>
      %c0_14 = arith.constant 0 : index
      %c0_15 = arith.constant 0 : index
      %26 = vector.load %arg30[%c0_14, %c0_15] : memref<1x128xf32, #tpu.memory_space<vmem>>, vector<1x128xf32>
      %27 = vector.broadcast %26 : vector<1x128xf32> to vector<32x128xf32>
      %28 = arith.mulf %25, %27 : vector<32x128xf32>
      %c0_16 = arith.constant 0 : index
      %c0_17 = arith.constant 0 : index
      %29 = vector.load %arg31[%c0_16, %c0_17] : memref<1x128xf32, #tpu.memory_space<vmem>>, vector<1x128xf32>
      %30 = vector.broadcast %29 : vector<1x128xf32> to vector<32x128xf32>
      %31 = arith.addf %28, %30 : vector<32x128xf32>
      %32 = arith.truncf %31 : vector<32x128xf32> to vector<32x128xbf16>
      %c0_18 = arith.constant 0 : index
      %c0_19 = arith.constant 0 : index
      %33 = vector.load %arg8[%c0_18, %c0_19] : memref<128x128xbf16, #tpu.memory_space<vmem>>, vector<128x128xbf16>
      %cst_20 = arith.constant dense<0.000000e+00> : vector<32x128xf32>
      %34 = tpu.matmul %32, %33, %cst_20 {dimension_numbers = #tpu.dot_dimension_numbers<[1], [0], [0], [1], [0, 0, 1, 1], [], []>} : vector<32x128xbf16>, vector<128x128xbf16>, vector<32x128xf32> -> vector<32x128xf32>
      %c0_21 = arith.constant 0 : index
      %c0_22 = arith.constant 0 : index
      %35 = vector.load %arg9[%c0_21, %c0_22] : memref<1x128xf32, #tpu.memory_space<vmem>>, vector<1x128xf32>
      %36 = vector.broadcast %35 : vector<1x128xf32> to vector<32x128xf32>
      %37 = arith.addf %34, %36 : vector<32x128xf32>
      %cst_23 = arith.constant 0.000000e+00 : f32
      %38 = vector.broadcast %cst_23 : f32 to vector<32x128xf32>
      %39 = arith.maximumf %37, %38 : vector<32x128xf32>
      %c0_24 = arith.constant 0 : index
      %c0_25 = arith.constant 0 : index
      %40 = vector.load %arg32[%c0_24, %c0_25] : memref<1x128xf32, #tpu.memory_space<vmem>>, vector<1x128xf32>
      %cst_26 = arith.constant dense<0.000000e+00> : vector<128xf32>
      %41 = vector.multi_reduction <add>, %39, %cst_26 [0] : vector<32x128xf32> to vector<128xf32>
      %42 = vector.shape_cast %41 : vector<128xf32> to vector<1x128xf32>
      %43 = arith.addf %40, %42 : vector<1x128xf32>
      %c0_27 = arith.constant 0 : index
      %c0_28 = arith.constant 0 : index
      %44 = vector.load %arg32[%c0_27, %c0_28] : memref<1x128xf32, #tpu.memory_space<vmem>>, vector<1x128xf32>
      tpu.vector_store %arg32[%c0_27, %c0_28], %43 {strides = array<i32>} : memref<1x128xf32, #tpu.memory_space<vmem>>, vector<1x128xf32>,
      %c0_29 = arith.constant 0 : index
      %c0_30 = arith.constant 0 : index
      %45 = vector.load %arg33[%c0_29, %c0_30] : memref<1x128xf32, #tpu.memory_space<vmem>>, vector<1x128xf32>
      %46 = arith.mulf %39, %39 : vector<32x128xf32>
      %cst_31 = arith.constant dense<0.000000e+00> : vector<128xf32>
      %47 = vector.multi_reduction <add>, %46, %cst_31 [0] : vector<32x128xf32> to vector<128xf32>
      %48 = vector.shape_cast %47 : vector<128xf32> to vector<1x128xf32>
      %49 = arith.addf %45, %48 : vector<1x128xf32>
      %c0_32 = arith.constant 0 : index
      %c0_33 = arith.constant 0 : index
      %50 = vector.load %arg33[%c0_32, %c0_33] : memref<1x128xf32, #tpu.memory_space<vmem>>, vector<1x128xf32>
      tpu.vector_store %arg33[%c0_32, %c0_33], %49 {strides = array<i32>} : memref<1x128xf32, #tpu.memory_space<vmem>>, vector<1x128xf32>,
      %51 = arith.extui %5 : i1 to i32
      %c0_i32_34 = arith.constant 0 : i32
      %52 = arith.cmpi ne, %51, %c0_i32_34 : i32
      scf.if %52 {
        %c0_35 = arith.constant 0 : index
        %c0_36 = arith.constant 0 : index
        %53 = vector.load %arg32[%c0_35, %c0_36] : memref<1x128xf32, #tpu.memory_space<vmem>>, vector<1x128xf32>
        %c0_37 = arith.constant 0 : index
        %c0_38 = arith.constant 0 : index
        %54 = vector.load %arg33[%c0_37, %c0_38] : memref<1x128xf32, #tpu.memory_space<vmem>>, vector<1x128xf32>
        %c0_39 = arith.constant 0 : index
        %c0_40 = arith.constant 0 : index
        %55 = vector.load %arg10[%c0_39, %c0_40] : memref<1x128xf32, #tpu.memory_space<vmem>>, vector<1x128xf32>
        %c0_41 = arith.constant 0 : index
        %c0_42 = arith.constant 0 : index
        %56 = vector.load %arg11[%c0_41, %c0_42] : memref<1x128xf32, #tpu.memory_space<vmem>>, vector<1x128xf32>
        %cst_43 = arith.constant 0.001953125 : f32
        %57 = vector.broadcast %cst_43 : f32 to vector<1x128xf32>
        %58 = arith.mulf %53, %57 : vector<1x128xf32>
        %cst_44 = arith.constant 0.001953125 : f32
        %59 = vector.broadcast %cst_44 : f32 to vector<1x128xf32>
        %60 = arith.mulf %54, %59 : vector<1x128xf32>
        %61 = arith.mulf %58, %58 : vector<1x128xf32>
        %62 = arith.subf %60, %61 : vector<1x128xf32>
        %cst_45 = arith.constant 9.99999974E-6 : f32
        %63 = vector.broadcast %cst_45 : f32 to vector<1x128xf32>
        %64 = arith.addf %62, %63 : vector<1x128xf32>
        %65 = math.rsqrt %64 : vector<1x128xf32>
        %66 = arith.mulf %55, %65 : vector<1x128xf32>
        %67 = arith.mulf %58, %66 : vector<1x128xf32>
        %68 = arith.subf %56, %67 : vector<1x128xf32>
        %c0_46 = arith.constant 0 : index
        %c0_47 = arith.constant 0 : index
        %69 = vector.load %arg34[%c0_46, %c0_47] : memref<1x128xf32, #tpu.memory_space<vmem>>, vector<1x128xf32>
        tpu.vector_store %arg34[%c0_46, %c0_47], %66 {strides = array<i32>} : memref<1x128xf32, #tpu.memory_space<vmem>>, vector<1x128xf32>,
        %c0_48 = arith.constant 0 : index
        %c0_49 = arith.constant 0 : index
        %70 = vector.load %arg35[%c0_48, %c0_49] : memref<1x128xf32, #tpu.memory_space<vmem>>, vector<1x128xf32>
        tpu.vector_store %arg35[%c0_48, %c0_49], %68 {strides = array<i32>} : memref<1x128xf32, #tpu.memory_space<vmem>>, vector<1x128xf32>,
      } else {
      }
    } else {
    }
    %c2_i32 = arith.constant 2 : i32
    %14 = arith.cmpi eq, %arg0, %c2_i32 : i32
    %15 = arith.extui %14 : i1 to i32
    %c0_i32_7 = arith.constant 0 : i32
    %16 = arith.cmpi ne, %15, %c0_i32_7 : i32
    scf.if %16 {
      %17 = arith.extui %2 : i1 to i32
      %c0_i32_8 = arith.constant 0 : i32
      %18 = arith.cmpi ne, %17, %c0_i32_8 : i32
      scf.if %18 {
        %cst_59 = arith.constant 0.000000e+00 : f32
        %83 = vector.broadcast %cst_59 : f32 to vector<1x1024xf32>
        %c0_60 = arith.constant 0 : index
        %c0_61 = arith.constant 0 : index
        %84 = vector.load %arg36[%c0_60, %c0_61] : memref<1x1024xf32, #tpu.memory_space<vmem>>, vector<1x1024xf32>
        tpu.vector_store %arg36[%c0_60, %c0_61], %83 {strides = array<i32>} : memref<1x1024xf32, #tpu.memory_space<vmem>>, vector<1x1024xf32>,
        %cst_62 = arith.constant 0.000000e+00 : f32
        %85 = vector.broadcast %cst_62 : f32 to vector<1x1024xf32>
        %c0_63 = arith.constant 0 : index
        %c0_64 = arith.constant 0 : index
        %86 = vector.load %arg37[%c0_63, %c0_64] : memref<1x1024xf32, #tpu.memory_space<vmem>>, vector<1x1024xf32>
        tpu.vector_store %arg37[%c0_63, %c0_64], %85 {strides = array<i32>} : memref<1x1024xf32, #tpu.memory_space<vmem>>, vector<1x1024xf32>,
        %cst_65 = arith.constant 0.000000e+00 : f32
        %87 = vector.broadcast %cst_65 : f32 to vector<4x1024xf32>
        %c0_66 = arith.constant 0 : index
        %c0_67 = arith.constant 0 : index
        %88 = vector.load %arg40[%c0_66, %c0_67] : memref<4x1024xf32, #tpu.memory_space<vmem>>, vector<4x1024xf32>
        tpu.vector_store %arg40[%c0_66, %c0_67], %87 {strides = array<i32>} : memref<4x1024xf32, #tpu.memory_space<vmem>>, vector<4x1024xf32>,
        %cst_68 = arith.constant 0.000000e+00 : f32
        %89 = vector.broadcast %cst_68 : f32 to vector<4x1024xf32>
        %c0_69 = arith.constant 0 : index
        %c0_70 = arith.constant 0 : index
        %90 = vector.load %arg41[%c0_69, %c0_70] : memref<4x1024xf32, #tpu.memory_space<vmem>>, vector<4x1024xf32>
        tpu.vector_store %arg41[%c0_69, %c0_70], %89 {strides = array<i32>} : memref<4x1024xf32, #tpu.memory_space<vmem>>, vector<4x1024xf32>,
      } else {
      }
      %c0_9 = arith.constant 0 : index
      %c0_10 = arith.constant 0 : index
      %19 = vector.load %arg4[%c0_9, %c0_10] : memref<8x128xbf16, #tpu.memory_space<vmem>>, vector<8x128xbf16>
      %cst = arith.constant dense<0.000000e+00> : vector<32x128xf32>
      %20 = tpu.matmul %7, %19, %cst {dimension_numbers = #tpu.dot_dimension_numbers<[1], [0], [0], [1], [0, 0, 1, 1], [], []>} : vector<32x8xbf16>, vector<8x128xbf16>, vector<32x128xf32> -> vector<32x128xf32>
      %c0_11 = arith.constant 0 : index
      %c0_12 = arith.constant 0 : index
      %21 = vector.load %arg5[%c0_11, %c0_12] : memref<1x128xf32, #tpu.memory_space<vmem>>, vector<1x128xf32>
      %22 = vector.broadcast %21 : vector<1x128xf32> to vector<32x128xf32>
      %23 = arith.addf %20, %22 : vector<32x128xf32>
      %cst_13 = arith.constant 0.000000e+00 : f32
      %24 = vector.broadcast %cst_13 : f32 to vector<32x128xf32>
      %25 = arith.maximumf %23, %24 : vector<32x128xf32>
      %c0_14 = arith.constant 0 : index
      %c0_15 = arith.constant 0 : index
      %26 = vector.load %arg30[%c0_14, %c0_15] : memref<1x128xf32, #tpu.memory_space<vmem>>, vector<1x128xf32>
      %27 = vector.broadcast %26 : vector<1x128xf32> to vector<32x128xf32>
      %28 = arith.mulf %25, %27 : vector<32x128xf32>
      %c0_16 = arith.constant 0 : index
      %c0_17 = arith.constant 0 : index
      %29 = vector.load %arg31[%c0_16, %c0_17] : memref<1x128xf32, #tpu.memory_space<vmem>>, vector<1x128xf32>
      %30 = vector.broadcast %29 : vector<1x128xf32> to vector<32x128xf32>
      %31 = arith.addf %28, %30 : vector<32x128xf32>
      %32 = arith.truncf %31 : vector<32x128xf32> to vector<32x128xbf16>
      %c0_18 = arith.constant 0 : index
      %c0_19 = arith.constant 0 : index
      %33 = vector.load %arg8[%c0_18, %c0_19] : memref<128x128xbf16, #tpu.memory_space<vmem>>, vector<128x128xbf16>
      %cst_20 = arith.constant dense<0.000000e+00> : vector<32x128xf32>
      %34 = tpu.matmul %32, %33, %cst_20 {dimension_numbers = #tpu.dot_dimension_numbers<[1], [0], [0], [1], [0, 0, 1, 1], [], []>} : vector<32x128xbf16>, vector<128x128xbf16>, vector<32x128xf32> -> vector<32x128xf32>
      %c0_21 = arith.constant 0 : index
      %c0_22 = arith.constant 0 : index
      %35 = vector.load %arg9[%c0_21, %c0_22] : memref<1x128xf32, #tpu.memory_space<vmem>>, vector<1x128xf32>
      %36 = vector.broadcast %35 : vector<1x128xf32> to vector<32x128xf32>
      %37 = arith.addf %34, %36 : vector<32x128xf32>
      %cst_23 = arith.constant 0.000000e+00 : f32
      %38 = vector.broadcast %cst_23 : f32 to vector<32x128xf32>
      %39 = arith.maximumf %37, %38 : vector<32x128xf32>
      %c0_24 = arith.constant 0 : index
      %c0_25 = arith.constant 0 : index
      %40 = vector.load %arg34[%c0_24, %c0_25] : memref<1x128xf32, #tpu.memory_space<vmem>>, vector<1x128xf32>
      %41 = vector.broadcast %40 : vector<1x128xf32> to vector<32x128xf32>
      %42 = arith.mulf %39, %41 : vector<32x128xf32>
      %c0_26 = arith.constant 0 : index
      %c0_27 = arith.constant 0 : index
      %43 = vector.load %arg35[%c0_26, %c0_27] : memref<1x128xf32, #tpu.memory_space<vmem>>, vector<1x128xf32>
      %44 = vector.broadcast %43 : vector<1x128xf32> to vector<32x128xf32>
      %45 = arith.addf %42, %44 : vector<32x128xf32>
      %46 = arith.truncf %45 : vector<32x128xf32> to vector<32x128xbf16>
      %c0_28 = arith.constant 0 : index
      %c0_29 = arith.constant 0 : index
      %47 = vector.load %arg12[%c0_28, %c0_29] : memref<128x1024xbf16, #tpu.memory_space<vmem>>, vector<128x1024xbf16>
      %cst_30 = arith.constant dense<0.000000e+00> : vector<32x1024xf32>
      %48 = tpu.matmul %46, %47, %cst_30 {dimension_numbers = #tpu.dot_dimension_numbers<[1], [0], [0], [1], [0, 0, 1, 1], [], []>} : vector<32x128xbf16>, vector<128x1024xbf16>, vector<32x1024xf32> -> vector<32x1024xf32>
      %c0_31 = arith.constant 0 : index
      %c0_32 = arith.constant 0 : index
      %49 = vector.load %arg13[%c0_31, %c0_32] : memref<1x1024xf32, #tpu.memory_space<vmem>>, vector<1x1024xf32>
      %50 = vector.broadcast %49 : vector<1x1024xf32> to vector<32x1024xf32>
      %51 = arith.addf %48, %50 : vector<32x1024xf32>
      %cst_33 = arith.constant 0.000000e+00 : f32
      %52 = vector.broadcast %cst_33 : f32 to vector<32x1024xf32>
      %53 = arith.maximumf %51, %52 : vector<32x1024xf32>
      %c0_34 = arith.constant 0 : index
      %c0_35 = arith.constant 0 : index
      %54 = vector.load %arg36[%c0_34, %c0_35] : memref<1x1024xf32, #tpu.memory_space<vmem>>, vector<1x1024xf32>
      %cst_36 = arith.constant dense<0.000000e+00> : vector<1024xf32>
      %55 = vector.multi_reduction <add>, %53, %cst_36 [0] : vector<32x1024xf32> to vector<1024xf32>
      %56 = vector.shape_cast %55 : vector<1024xf32> to vector<1x1024xf32>
      %57 = arith.addf %54, %56 : vector<1x1024xf32>
      %c0_37 = arith.constant 0 : index
      %c0_38 = arith.constant 0 : index
      %58 = vector.load %arg36[%c0_37, %c0_38] : memref<1x1024xf32, #tpu.memory_space<vmem>>, vector<1x1024xf32>
      tpu.vector_store %arg36[%c0_37, %c0_38], %57 {strides = array<i32>} : memref<1x1024xf32, #tpu.memory_space<vmem>>, vector<1x1024xf32>,
      %c0_39 = arith.constant 0 : index
      %c0_40 = arith.constant 0 : index
      %59 = vector.load %arg37[%c0_39, %c0_40] : memref<1x1024xf32, #tpu.memory_space<vmem>>, vector<1x1024xf32>
      %60 = arith.mulf %53, %53 : vector<32x1024xf32>
      %cst_41 = arith.constant dense<0.000000e+00> : vector<1024xf32>
      %61 = vector.multi_reduction <add>, %60, %cst_41 [0] : vector<32x1024xf32> to vector<1024xf32>
      %62 = vector.shape_cast %61 : vector<1024xf32> to vector<1x1024xf32>
      %63 = arith.addf %59, %62 : vector<1x1024xf32>
      %c0_42 = arith.constant 0 : index
      %c0_43 = arith.constant 0 : index
      %64 = vector.load %arg37[%c0_42, %c0_43] : memref<1x1024xf32, #tpu.memory_space<vmem>>, vector<1x1024xf32>
      tpu.vector_store %arg37[%c0_42, %c0_43], %63 {strides = array<i32>} : memref<1x1024xf32, #tpu.memory_space<vmem>>, vector<1x1024xf32>,
      %cst_44 = arith.constant dense<0xFF800000> : vector<1024xf32>
      %65 = vector.multi_reduction <maximumf>, %53, %cst_44 [0] : vector<32x1024xf32> to vector<1024xf32>
      %66 = vector.shape_cast %65 : vector<1024xf32> to vector<1x1024xf32>
      %cst_45 = arith.constant dense<0x7F800000> : vector<1024xf32>
      %67 = vector.multi_reduction <minimumf>, %53, %cst_45 [0] : vector<32x1024xf32> to vector<1024xf32>
      %68 = vector.shape_cast %67 : vector<1024xf32> to vector<1x1024xf32>
      %c0_i32_46 = arith.constant 0 : i32
      %69 = arith.cmpi eq, %arg2, %c0_i32_46 : i32
      %70 = arith.extui %69 : i1 to i32
      %c0_i32_47 = arith.constant 0 : i32
      %71 = arith.cmpi ne, %70, %c0_i32_47 : i32
      scf.if %71 {
        %cst_59 = arith.constant 0xFF800000 : f32
        %83 = vector.broadcast %cst_59 : f32 to vector<1x1024xf32>
        %c0_60 = arith.constant 0 : index
        %c0_61 = arith.constant 0 : index
        %84 = vector.load %arg38[%c0_60, %c0_61] : memref<1x1024xf32, #tpu.memory_space<vmem>>, vector<1x1024xf32>
        tpu.vector_store %arg38[%c0_60, %c0_61], %83 {strides = array<i32>} : memref<1x1024xf32, #tpu.memory_space<vmem>>, vector<1x1024xf32>,
        %cst_62 = arith.constant 0x7F800000 : f32
        %85 = vector.broadcast %cst_62 : f32 to vector<1x1024xf32>
        %c0_63 = arith.constant 0 : index
        %c0_64 = arith.constant 0 : index
        %86 = vector.load %arg39[%c0_63, %c0_64] : memref<1x1024xf32, #tpu.memory_space<vmem>>, vector<1x1024xf32>
        tpu.vector_store %arg39[%c0_63, %c0_64], %85 {strides = array<i32>} : memref<1x1024xf32, #tpu.memory_space<vmem>>, vector<1x1024xf32>,
      } else {
      }
      %c0_48 = arith.constant 0 : index
      %c0_49 = arith.constant 0 : index
      %72 = vector.load %arg38[%c0_48, %c0_49] : memref<1x1024xf32, #tpu.memory_space<vmem>>, vector<1x1024xf32>
      %73 = arith.maximumf %72, %66 : vector<1x1024xf32>
      %c0_50 = arith.constant 0 : index
      %c0_51 = arith.constant 0 : index
      %74 = vector.load %arg38[%c0_50, %c0_51] : memref<1x1024xf32, #tpu.memory_space<vmem>>, vector<1x1024xf32>
      tpu.vector_store %arg38[%c0_50, %c0_51], %73 {strides = array<i32>} : memref<1x1024xf32, #tpu.memory_space<vmem>>, vector<1x1024xf32>,
      %c0_52 = arith.constant 0 : index
      %c0_53 = arith.constant 0 : index
      %75 = vector.load %arg39[%c0_52, %c0_53] : memref<1x1024xf32, #tpu.memory_space<vmem>>, vector<1x1024xf32>
      %76 = arith.minimumf %75, %68 : vector<1x1024xf32>
      %c0_54 = arith.constant 0 : index
      %c0_55 = arith.constant 0 : index
      %77 = vector.load %arg39[%c0_54, %c0_55] : memref<1x1024xf32, #tpu.memory_space<vmem>>, vector<1x1024xf32>
      tpu.vector_store %arg39[%c0_54, %c0_55], %76 {strides = array<i32>} : memref<1x1024xf32, #tpu.memory_space<vmem>>, vector<1x1024xf32>,
      %c3_i32_56 = arith.constant 3 : i32
      %78 = arith.cmpi eq, %arg2, %c3_i32_56 : i32
      %79 = arith.extui %78 : i1 to i32
      %c0_i32_57 = arith.constant 0 : i32
      %80 = arith.cmpi ne, %79, %c0_i32_57 : i32
      scf.if %80 {
        %83 = tpu.iota {dimensions = array<i32: 0>} : vector<4x1024xi32>
        %84 = vector.broadcast %arg1 : i32 to vector<4x1024xi32>
        %85 = arith.cmpi eq, %83, %84 : vector<4x1024xi32>
        %c0_59 = arith.constant 0 : index
        %c0_60 = arith.constant 0 : index
        %86 = vector.load %arg38[%c0_59, %c0_60] : memref<1x1024xf32, #tpu.memory_space<vmem>>, vector<1x1024xf32>
        %c0_61 = arith.constant 0 : index
        %c0_62 = arith.constant 0 : index
        %87 = vector.load %arg40[%c0_61, %c0_62] : memref<4x1024xf32, #tpu.memory_space<vmem>>, vector<4x1024xf32>
        %88 = vector.shape_cast %86 : vector<1x1024xf32> to vector<1x1024xf32>
        %89 = vector.broadcast %88 : vector<1x1024xf32> to vector<4x1024xf32>
        %90 = arith.select %85, %89, %87 : vector<4x1024xi1>, vector<4x1024xf32>
        %c0_63 = arith.constant 0 : index
        %c0_64 = arith.constant 0 : index
        %91 = vector.load %arg40[%c0_63, %c0_64] : memref<4x1024xf32, #tpu.memory_space<vmem>>, vector<4x1024xf32>
        tpu.vector_store %arg40[%c0_63, %c0_64], %90 {strides = array<i32>} : memref<4x1024xf32, #tpu.memory_space<vmem>>, vector<4x1024xf32>,
        %c0_65 = arith.constant 0 : index
        %c0_66 = arith.constant 0 : index
        %92 = vector.load %arg39[%c0_65, %c0_66] : memref<1x1024xf32, #tpu.memory_space<vmem>>, vector<1x1024xf32>
        %c0_67 = arith.constant 0 : index
        %c0_68 = arith.constant 0 : index
        %93 = vector.load %arg41[%c0_67, %c0_68] : memref<4x1024xf32, #tpu.memory_space<vmem>>, vector<4x1024xf32>
        %94 = vector.shape_cast %92 : vector<1x1024xf32> to vector<1x1024xf32>
        %95 = vector.broadcast %94 : vector<1x1024xf32> to vector<4x1024xf32>
        %96 = arith.select %85, %95, %93 : vector<4x1024xi1>, vector<4x1024xf32>
        %c0_69 = arith.constant 0 : index
        %c0_70 = arith.constant 0 : index
        %97 = vector.load %arg41[%c0_69, %c0_70] : memref<4x1024xf32, #tpu.memory_space<vmem>>, vector<4x1024xf32>
        tpu.vector_store %arg41[%c0_69, %c0_70], %96 {strides = array<i32>} : memref<4x1024xf32, #tpu.memory_space<vmem>>, vector<4x1024xf32>,
      } else {
      }
      %81 = arith.extui %5 : i1 to i32
      %c0_i32_58 = arith.constant 0 : i32
      %82 = arith.cmpi ne, %81, %c0_i32_58 : i32
      scf.if %82 {
        %c0_59 = arith.constant 0 : index
        %c0_60 = arith.constant 0 : index
        %83 = vector.load %arg36[%c0_59, %c0_60] : memref<1x1024xf32, #tpu.memory_space<vmem>>, vector<1x1024xf32>
        %c0_61 = arith.constant 0 : index
        %c0_62 = arith.constant 0 : index
        %84 = vector.load %arg37[%c0_61, %c0_62] : memref<1x1024xf32, #tpu.memory_space<vmem>>, vector<1x1024xf32>
        %c0_63 = arith.constant 0 : index
        %c0_64 = arith.constant 0 : index
        %85 = vector.load %arg14[%c0_63, %c0_64] : memref<1x1024xf32, #tpu.memory_space<vmem>>, vector<1x1024xf32>
        %c0_65 = arith.constant 0 : index
        %c0_66 = arith.constant 0 : index
        %86 = vector.load %arg15[%c0_65, %c0_66] : memref<1x1024xf32, #tpu.memory_space<vmem>>, vector<1x1024xf32>
        %cst_67 = arith.constant 0.001953125 : f32
        %87 = vector.broadcast %cst_67 : f32 to vector<1x1024xf32>
        %88 = arith.mulf %83, %87 : vector<1x1024xf32>
        %cst_68 = arith.constant 0.001953125 : f32
        %89 = vector.broadcast %cst_68 : f32 to vector<1x1024xf32>
        %90 = arith.mulf %84, %89 : vector<1x1024xf32>
        %91 = arith.mulf %88, %88 : vector<1x1024xf32>
        %92 = arith.subf %90, %91 : vector<1x1024xf32>
        %cst_69 = arith.constant 9.99999974E-6 : f32
        %93 = vector.broadcast %cst_69 : f32 to vector<1x1024xf32>
        %94 = arith.addf %92, %93 : vector<1x1024xf32>
        %95 = math.rsqrt %94 : vector<1x1024xf32>
        %96 = arith.mulf %85, %95 : vector<1x1024xf32>
        %97 = arith.mulf %88, %96 : vector<1x1024xf32>
        %98 = arith.subf %86, %97 : vector<1x1024xf32>
        %cst_70 = arith.constant 0.000000e+00 : f32
        %99 = vector.broadcast %cst_70 : f32 to vector<1x1024xf32>
        %100 = arith.cmpf oge, %96, %99 : vector<1x1024xf32>
        %c0_71 = arith.constant 0 : index
        %c0_72 = arith.constant 0 : index
        %101 = vector.load %arg40[%c0_71, %c0_72] : memref<4x1024xf32, #tpu.memory_space<vmem>>, vector<4x1024xf32>
        %c0_73 = arith.constant 0 : index
        %c0_74 = arith.constant 0 : index
        %102 = vector.load %arg41[%c0_73, %c0_74] : memref<4x1024xf32, #tpu.memory_space<vmem>>, vector<4x1024xf32>
        %103 = vector.shape_cast %100 : vector<1x1024xi1> to vector<1x1024xi1>
        %104 = vector.broadcast %103 : vector<1x1024xi1> to vector<4x1024xi1>
        %105 = arith.select %104, %101, %102 : vector<4x1024xi1>, vector<4x1024xf32>
        %106 = vector.broadcast %96 : vector<1x1024xf32> to vector<4x1024xf32>
        %107 = arith.mulf %105, %106 : vector<4x1024xf32>
        %108 = vector.broadcast %98 : vector<1x1024xf32> to vector<4x1024xf32>
        %109 = arith.addf %107, %108 : vector<4x1024xf32>
        %110 = arith.truncf %109 : vector<4x1024xf32> to vector<4x1024xbf16>
        %c0_75 = arith.constant 0 : index
        %c0_76 = arith.constant 0 : index
        %111 = vector.load %arg16[%c0_75, %c0_76] : memref<1024x512xbf16, #tpu.memory_space<vmem>>, vector<1024x512xbf16>
        %cst_77 = arith.constant dense<0.000000e+00> : vector<4x512xf32>
        %112 = tpu.matmul %110, %111, %cst_77 {dimension_numbers = #tpu.dot_dimension_numbers<[1], [0], [0], [1], [0, 0, 1, 1], [], []>} : vector<4x1024xbf16>, vector<1024x512xbf16>, vector<4x512xf32> -> vector<4x512xf32>
        %c0_78 = arith.constant 0 : index
        %c0_79 = arith.constant 0 : index
        %113 = vector.load %arg17[%c0_78, %c0_79] : memref<1x512xf32, #tpu.memory_space<vmem>>, vector<1x512xf32>
        %114 = vector.broadcast %113 : vector<1x512xf32> to vector<4x512xf32>
        %115 = arith.addf %112, %114 : vector<4x512xf32>
        %cst_80 = arith.constant 0.000000e+00 : f32
        %116 = vector.broadcast %cst_80 : f32 to vector<4x512xf32>
        %117 = arith.maximumf %115, %116 : vector<4x512xf32>
        %c0_81 = arith.constant 0 : index
        %c0_82 = arith.constant 0 : index
        %118 = vector.load %arg18[%c0_81, %c0_82] : memref<1x512xf32, #tpu.memory_space<vmem>>, vector<1x512xf32>
        %c0_83 = arith.constant 0 : index
        %c0_84 = arith.constant 0 : index
        %119 = vector.load %arg19[%c0_83, %c0_84] : memref<1x512xf32, #tpu.memory_space<vmem>>, vector<1x512xf32>
        %cst_85 = arith.constant dense<0.000000e+00> : vector<512xf32>
        %120 = vector.multi_reduction <add>, %117, %cst_85 [0] : vector<4x512xf32> to vector<512xf32>
        %121 = vector.shape_cast %120 : vector<512xf32> to vector<1x512xf32>
        %cst_86 = arith.constant 2.500000e-01 : f32
        %122 = vector.broadcast %cst_86 : f32 to vector<1x512xf32>
        %123 = arith.mulf %121, %122 : vector<1x512xf32>
        %124 = arith.mulf %117, %117 : vector<4x512xf32>
        %cst_87 = arith.constant dense<0.000000e+00> : vector<512xf32>
        %125 = vector.multi_reduction <add>, %124, %cst_87 [0] : vector<4x512xf32> to vector<512xf32>
        %126 = vector.shape_cast %125 : vector<512xf32> to vector<1x512xf32>
        %cst_88 = arith.constant 2.500000e-01 : f32
        %127 = vector.broadcast %cst_88 : f32 to vector<1x512xf32>
        %128 = arith.mulf %126, %127 : vector<1x512xf32>
        %129 = arith.mulf %123, %123 : vector<1x512xf32>
        %130 = arith.subf %128, %129 : vector<1x512xf32>
        %cst_89 = arith.constant 9.99999974E-6 : f32
        %131 = vector.broadcast %cst_89 : f32 to vector<1x512xf32>
        %132 = arith.addf %130, %131 : vector<1x512xf32>
        %133 = math.rsqrt %132 : vector<1x512xf32>
        %134 = arith.mulf %118, %133 : vector<1x512xf32>
        %135 = vector.broadcast %134 : vector<1x512xf32> to vector<4x512xf32>
        %136 = arith.mulf %117, %135 : vector<4x512xf32>
        %137 = arith.mulf %123, %134 : vector<1x512xf32>
        %138 = arith.subf %119, %137 : vector<1x512xf32>
        %139 = vector.broadcast %138 : vector<1x512xf32> to vector<4x512xf32>
        %140 = arith.addf %136, %139 : vector<4x512xf32>
        %141 = arith.truncf %140 : vector<4x512xf32> to vector<4x512xbf16>
        %c0_90 = arith.constant 0 : index
        %c0_91 = arith.constant 0 : index
        %142 = vector.load %arg20[%c0_90, %c0_91] : memref<512x256xbf16, #tpu.memory_space<vmem>>, vector<512x256xbf16>
        %cst_92 = arith.constant dense<0.000000e+00> : vector<4x256xf32>
        %143 = tpu.matmul %141, %142, %cst_92 {dimension_numbers = #tpu.dot_dimension_numbers<[1], [0], [0], [1], [0, 0, 1, 1], [], []>} : vector<4x512xbf16>, vector<512x256xbf16>, vector<4x256xf32> -> vector<4x256xf32>
        %c0_93 = arith.constant 0 : index
        %c0_94 = arith.constant 0 : index
        %144 = vector.load %arg21[%c0_93, %c0_94] : memref<1x256xf32, #tpu.memory_space<vmem>>, vector<1x256xf32>
        %145 = vector.broadcast %144 : vector<1x256xf32> to vector<4x256xf32>
        %146 = arith.addf %143, %145 : vector<4x256xf32>
        %cst_95 = arith.constant 0.000000e+00 : f32
        %147 = vector.broadcast %cst_95 : f32 to vector<4x256xf32>
        %148 = arith.maximumf %146, %147 : vector<4x256xf32>
        %c0_96 = arith.constant 0 : index
        %c0_97 = arith.constant 0 : index
        %149 = vector.load %arg22[%c0_96, %c0_97] : memref<1x256xf32, #tpu.memory_space<vmem>>, vector<1x256xf32>
        %c0_98 = arith.constant 0 : index
        %c0_99 = arith.constant 0 : index
        %150 = vector.load %arg23[%c0_98, %c0_99] : memref<1x256xf32, #tpu.memory_space<vmem>>, vector<1x256xf32>
        %cst_100 = arith.constant dense<0.000000e+00> : vector<256xf32>
        %151 = vector.multi_reduction <add>, %148, %cst_100 [0] : vector<4x256xf32> to vector<256xf32>
        %152 = vector.shape_cast %151 : vector<256xf32> to vector<1x256xf32>
        %cst_101 = arith.constant 2.500000e-01 : f32
        %153 = vector.broadcast %cst_101 : f32 to vector<1x256xf32>
        %154 = arith.mulf %152, %153 : vector<1x256xf32>
        %155 = arith.mulf %148, %148 : vector<4x256xf32>
        %cst_102 = arith.constant dense<0.000000e+00> : vector<256xf32>
        %156 = vector.multi_reduction <add>, %155, %cst_102 [0] : vector<4x256xf32> to vector<256xf32>
        %157 = vector.shape_cast %156 : vector<256xf32> to vector<1x256xf32>
        %cst_103 = arith.constant 2.500000e-01 : f32
        %158 = vector.broadcast %cst_103 : f32 to vector<1x256xf32>
        %159 = arith.mulf %157, %158 : vector<1x256xf32>
        %160 = arith.mulf %154, %154 : vector<1x256xf32>
        %161 = arith.subf %159, %160 : vector<1x256xf32>
        %cst_104 = arith.constant 9.99999974E-6 : f32
        %162 = vector.broadcast %cst_104 : f32 to vector<1x256xf32>
        %163 = arith.addf %161, %162 : vector<1x256xf32>
        %164 = math.rsqrt %163 : vector<1x256xf32>
        %165 = arith.mulf %149, %164 : vector<1x256xf32>
        %166 = vector.broadcast %165 : vector<1x256xf32> to vector<4x256xf32>
        %167 = arith.mulf %148, %166 : vector<4x256xf32>
        %168 = arith.mulf %154, %165 : vector<1x256xf32>
        %169 = arith.subf %150, %168 : vector<1x256xf32>
        %170 = vector.broadcast %169 : vector<1x256xf32> to vector<4x256xf32>
        %171 = arith.addf %167, %170 : vector<4x256xf32>
        %172 = arith.truncf %171 : vector<4x256xf32> to vector<4x256xbf16>
        %c0_105 = arith.constant 0 : index
        %c0_106 = arith.constant 0 : index
        %173 = vector.load %arg24[%c0_105, %c0_106] : memref<256x128xbf16, #tpu.memory_space<vmem>>, vector<256x128xbf16>
        %cst_107 = arith.constant dense<0.000000e+00> : vector<4x128xf32>
        %174 = tpu.matmul %172, %173, %cst_107 {dimension_numbers = #tpu.dot_dimension_numbers<[1], [0], [0], [1], [0, 0, 1, 1], [], []>} : vector<4x256xbf16>, vector<256x128xbf16>, vector<4x128xf32> -> vector<4x128xf32>
        %c0_108 = arith.constant 0 : index
        %c0_109 = arith.constant 0 : index
        %175 = vector.load %arg25[%c0_108, %c0_109] : memref<1x128xf32, #tpu.memory_space<vmem>>, vector<1x128xf32>
        %176 = vector.broadcast %175 : vector<1x128xf32> to vector<4x128xf32>
        %177 = arith.addf %174, %176 : vector<4x128xf32>
        %c0_110 = arith.constant 0 : index
        %c0_111 = arith.constant 0 : index
        %178 = vector.load %arg26[%c0_110, %c0_111] : memref<1x128xf32, #tpu.memory_space<vmem>>, vector<1x128xf32>
        %179 = vector.broadcast %178 : vector<1x128xf32> to vector<4x128xf32>
        %180 = arith.addf %177, %179 : vector<4x128xf32>
        %c0_112 = arith.constant 0 : index
        %c0_113 = arith.constant 0 : index
        %181 = vector.load %arg27[%c0_112, %c0_113] : memref<4x128xf32, #tpu.memory_space<vmem>>, vector<4x128xf32>
        tpu.vector_store %arg27[%c0_112, %c0_113], %180 {strides = array<i32>} : memref<4x128xf32, #tpu.memory_space<vmem>>, vector<4x128xf32>,
      } else {
      }
    } else {
    }
    return
  }
  func.func @transform_0(%arg0: i32, %arg1: i32, %arg2: i32) -> (i32, i32, i32) {
    %c0_i32 = arith.constant 0 : i32
    %c0_i32_0 = arith.constant 0 : i32
    return %arg1, %arg2, %c0_i32 : i32, i32, i32
  }
  func.func @transform_1(%arg0: i32, %arg1: i32, %arg2: i32) -> (i32, i32) {
    %c0_i32 = arith.constant 0 : i32
    %c0_i32_0 = arith.constant 0 : i32
    %c0_i32_1 = arith.constant 0 : i32
    return %c0_i32, %c0_i32_0 : i32, i32
  }
  func.func @transform_2(%arg0: i32, %arg1: i32, %arg2: i32) -> (i32, i32) {
    %c0_i32 = arith.constant 0 : i32
    %c0_i32_0 = arith.constant 0 : i32
    %c0_i32_1 = arith.constant 0 : i32
    return %c0_i32, %c0_i32_0 : i32, i32
  }
  func.func @transform_3(%arg0: i32, %arg1: i32, %arg2: i32) -> (i32, i32) {
    %c0_i32 = arith.constant 0 : i32
    %c0_i32_0 = arith.constant 0 : i32
    %c0_i32_1 = arith.constant 0 : i32
    return %c0_i32, %c0_i32_0 : i32, i32
  }
  func.func @transform_4(%arg0: i32, %arg1: i32, %arg2: i32) -> (i32, i32) {
    %c0_i32 = arith.constant 0 : i32
    %c0_i32_0 = arith.constant 0 : i32
    %c0_i32_1 = arith.constant 0 : i32
    return %c0_i32, %c0_i32_0 : i32, i32
  }
  func.func @transform_5(%arg0: i32, %arg1: i32, %arg2: i32) -> (i32, i32) {
    %c0_i32 = arith.constant 0 : i32
    %c0_i32_0 = arith.constant 0 : i32
    %c0_i32_1 = arith.constant 0 : i32
    return %c0_i32, %c0_i32_0 : i32, i32
  }
  func.func @transform_6(%arg0: i32, %arg1: i32, %arg2: i32) -> (i32, i32) {
    %c0_i32 = arith.constant 0 : i32
    %c0_i32_0 = arith.constant 0 : i32
    %c0_i32_1 = arith.constant 0 : i32
    return %c0_i32, %c0_i32_0 : i32, i32
  }
  func.func @transform_7(%arg0: i32, %arg1: i32, %arg2: i32) -> (i32, i32) {
    %c0_i32 = arith.constant 0 : i32
    %c0_i32_0 = arith.constant 0 : i32
    %c0_i32_1 = arith.constant 0 : i32
    return %c0_i32, %c0_i32_0 : i32, i32
  }
  func.func @transform_8(%arg0: i32, %arg1: i32, %arg2: i32) -> (i32, i32) {
    %c0_i32 = arith.constant 0 : i32
    %c0_i32_0 = arith.constant 0 : i32
    %c0_i32_1 = arith.constant 0 : i32
    return %c0_i32, %c0_i32_0 : i32, i32
  }
  func.func @transform_9(%arg0: i32, %arg1: i32, %arg2: i32) -> (i32, i32) {
    %c0_i32 = arith.constant 0 : i32
    %c0_i32_0 = arith.constant 0 : i32
    %c0_i32_1 = arith.constant 0 : i32
    return %c0_i32, %c0_i32_0 : i32, i32
  }
  func.func @transform_10(%arg0: i32, %arg1: i32, %arg2: i32) -> (i32, i32) {
    %c0_i32 = arith.constant 0 : i32
    %c0_i32_0 = arith.constant 0 : i32
    %c0_i32_1 = arith.constant 0 : i32
    return %c0_i32, %c0_i32_0 : i32, i32
  }
  func.func @transform_11(%arg0: i32, %arg1: i32, %arg2: i32) -> (i32, i32) {
    %c0_i32 = arith.constant 0 : i32
    %c0_i32_0 = arith.constant 0 : i32
    %c0_i32_1 = arith.constant 0 : i32
    return %c0_i32, %c0_i32_0 : i32, i32
  }
  func.func @transform_12(%arg0: i32, %arg1: i32, %arg2: i32) -> (i32, i32) {
    %c0_i32 = arith.constant 0 : i32
    %c0_i32_0 = arith.constant 0 : i32
    %c0_i32_1 = arith.constant 0 : i32
    return %c0_i32, %c0_i32_0 : i32, i32
  }
  func.func @transform_13(%arg0: i32, %arg1: i32, %arg2: i32) -> (i32, i32) {
    %c0_i32 = arith.constant 0 : i32
    %c0_i32_0 = arith.constant 0 : i32
    %c0_i32_1 = arith.constant 0 : i32
    return %c0_i32, %c0_i32_0 : i32, i32
  }
  func.func @transform_14(%arg0: i32, %arg1: i32, %arg2: i32) -> (i32, i32) {
    %c0_i32 = arith.constant 0 : i32
    %c0_i32_0 = arith.constant 0 : i32
    %c0_i32_1 = arith.constant 0 : i32
    return %c0_i32, %c0_i32_0 : i32, i32
  }
  func.func @transform_15(%arg0: i32, %arg1: i32, %arg2: i32) -> (i32, i32) {
    %c0_i32 = arith.constant 0 : i32
    %c0_i32_0 = arith.constant 0 : i32
    %c0_i32_1 = arith.constant 0 : i32
    return %c0_i32, %c0_i32_0 : i32, i32
  }
  func.func @transform_16(%arg0: i32, %arg1: i32, %arg2: i32) -> (i32, i32) {
    %c0_i32 = arith.constant 0 : i32
    %c0_i32_0 = arith.constant 0 : i32
    %c0_i32_1 = arith.constant 0 : i32
    return %c0_i32, %c0_i32_0 : i32, i32
  }
  func.func @transform_17(%arg0: i32, %arg1: i32, %arg2: i32) -> (i32, i32) {
    %c0_i32 = arith.constant 0 : i32
    %c0_i32_0 = arith.constant 0 : i32
    %c0_i32_1 = arith.constant 0 : i32
    return %c0_i32, %c0_i32_0 : i32, i32
  }
  func.func @transform_18(%arg0: i32, %arg1: i32, %arg2: i32) -> (i32, i32) {
    %c0_i32 = arith.constant 0 : i32
    %c0_i32_0 = arith.constant 0 : i32
    %c0_i32_1 = arith.constant 0 : i32
    return %c0_i32, %c0_i32_0 : i32, i32
  }
  func.func @transform_19(%arg0: i32, %arg1: i32, %arg2: i32) -> (i32, i32) {
    %c0_i32 = arith.constant 0 : i32
    %c0_i32_0 = arith.constant 0 : i32
    %c0_i32_1 = arith.constant 0 : i32
    return %c0_i32, %c0_i32_0 : i32, i32
  }
  func.func @transform_20(%arg0: i32, %arg1: i32, %arg2: i32) -> (i32, i32) {
    %c0_i32 = arith.constant 0 : i32
    %c0_i32_0 = arith.constant 0 : i32
    %c0_i32_1 = arith.constant 0 : i32
    return %c0_i32, %c0_i32_0 : i32, i32
  }
  func.func @transform_21(%arg0: i32, %arg1: i32, %arg2: i32) -> (i32, i32) {
    %c0_i32 = arith.constant 0 : i32
    %c0_i32_0 = arith.constant 0 : i32
    %c0_i32_1 = arith.constant 0 : i32
    return %c0_i32, %c0_i32_0 : i32, i32
  }
  func.func @transform_22(%arg0: i32, %arg1: i32, %arg2: i32) -> (i32, i32) {
    %c0_i32 = arith.constant 0 : i32
    %c0_i32_0 = arith.constant 0 : i32
    %c0_i32_1 = arith.constant 0 : i32
    return %c0_i32, %c0_i32_0 : i32, i32
  }
  func.func @transform_23(%arg0: i32, %arg1: i32, %arg2: i32) -> (i32, i32) {
    %c0_i32 = arith.constant 0 : i32
    %c0_i32_0 = arith.constant 0 : i32
    %c0_i32_1 = arith.constant 0 : i32
    return %c0_i32, %c0_i32_0 : i32, i32
  }
  func.func @transform_24(%arg0: i32, %arg1: i32, %arg2: i32) -> (i32, i32) {
    %c0_i32 = arith.constant 0 : i32
    %c0_i32_0 = arith.constant 0 : i32
    %c0_i32_1 = arith.constant 0 : i32
    return %c0_i32, %c0_i32_0 : i32, i32
  }
}

</mosaic_0001>

<llo_original>
// kernel: tpu_custom_call.1
$region0: #{tpu_custom_call.1}
  #allocation0 [shape = 'u32[]', space=smem, size = 0x4, offset = 0x4, fixed_abs, tag = 'smem constant byte address 0x4 - core index']
  #allocation1 [shape = 'u32[144,128]{1,0:T(1,128)}', space=vmem, size = 0x12000, scoped, tag = 'internal scratch']
  #allocation2 [shape = 'f32[1,128]{1,0:T(1,128)}', space=vmem, size = 0x200, scoped, tag = 'scratch operand']
  #allocation3 [shape = 'f32[1,128]{1,0:T(1,128)}', space=vmem, size = 0x200, scoped, tag = 'scratch operand']
  #allocation4 [shape = 'f32[1,128]{1,0:T(1,128)}', space=vmem, size = 0x200, scoped, tag = 'scratch operand']
  #allocation5 [shape = 'f32[1,128]{1,0:T(1,128)}', space=vmem, size = 0x200, scoped, tag = 'scratch operand']
  #allocation6 [shape = 'f32[1,128]{1,0:T(1,128)}', space=vmem, size = 0x200, scoped, tag = 'scratch operand']
  #allocation7 [shape = 'f32[1,128]{1,0:T(1,128)}', space=vmem, size = 0x200, scoped, tag = 'scratch operand']
  #allocation8 [shape = 'f32[1,128]{1,0:T(1,128)}', space=vmem, size = 0x200, scoped, tag = 'scratch operand']
  #allocation9 [shape = 'f32[1,128]{1,0:T(1,128)}', space=vmem, size = 0x200, scoped, tag = 'scratch operand']
  #allocation10 [shape = 'f32[1,1024]{1,0:T(1,128)}', space=vmem, size = 0x1000, scoped, tag = 'scratch operand']
  #allocation11 [shape = 'f32[1,1024]{1,0:T(1,128)}', space=vmem, size = 0x1000, scoped, tag = 'scratch operand']
  #allocation12 [shape = 'f32[1,1024]{1,0:T(1,128)}', space=vmem, size = 0x1000, scoped, tag = 'scratch operand']
  #allocation13 [shape = 'f32[1,1024]{1,0:T(1,128)}', space=vmem, size = 0x1000, scoped, tag = 'scratch operand']
  #allocation14 [shape = 'f32[4,1024]{1,0:T(4,128)}', space=vmem, size = 0x4000, scoped, tag = 'scratch operand']
  #allocation15 [shape = 'f32[4,1024]{1,0:T(4,128)}', space=vmem, size = 0x4000, scoped, tag = 'scratch operand']
  %s0 = inlined_call_operand.vmem [shape: bf16[4,128,8], index: 0, kind: input, shape index: {}]
  %s1 = inlined_call_operand.vmem [shape: bf16[8,128], index: 1, kind: input, shape index: {}]
  %s2 = inlined_call_operand.vmem [shape: f32[1,128], index: 2, kind: input, shape index: {}]
  %s3 = inlined_call_operand.vmem [shape: f32[1,128], index: 3, kind: input, shape index: {}]
  %s4 = inlined_call_operand.vmem [shape: f32[1,128], index: 4, kind: input, shape index: {}]
  %s5 = inlined_call_operand.vmem [shape: bf16[128,128], index: 5, kind: input, shape index: {}]
  %s6 = inlined_call_operand.vmem [shape: f32[1,128], index: 6, kind: input, shape index: {}]
  %s7 = inlined_call_operand.vmem [shape: f32[1,128], index: 7, kind: input, shape index: {}]
  %s8 = inlined_call_operand.vmem [shape: f32[1,128], index: 8, kind: input, shape index: {}]
  %s9 = inlined_call_operand.hbm [shape: bf16[128,1024], index: 9, kind: input, shape index: {}]
  %s10 = inlined_call_operand.vmem [shape: f32[1,1024], index: 10, kind: input, shape index: {}]
  %s11 = inlined_call_operand.vmem [shape: f32[1,1024], index: 11, kind: input, shape index: {}]
  %s12 = inlined_call_operand.vmem [shape: f32[1,1024], index: 12, kind: input, shape index: {}]
  %s13 = inlined_call_operand.hbm [shape: bf16[1024,512], index: 13, kind: input, shape index: {}]
  %s14 = inlined_call_operand.vmem [shape: f32[1,512], index: 14, kind: input, shape index: {}]
  %s15 = inlined_call_operand.vmem [shape: f32[1,512], index: 15, kind: input, shape index: {}]
  %s16 = inlined_call_operand.vmem [shape: f32[1,512], index: 16, kind: input, shape index: {}]
  %s17 = inlined_call_operand.hbm [shape: bf16[512,256], index: 17, kind: input, shape index: {}]
  %s18 = inlined_call_operand.vmem [shape: f32[1,256], index: 18, kind: input, shape index: {}]
  %s19 = inlined_call_operand.vmem [shape: f32[1,256], index: 19, kind: input, shape index: {}]
  %s20 = inlined_call_operand.vmem [shape: f32[1,256], index: 20, kind: input, shape index: {}]
  %s21 = inlined_call_operand.vmem [shape: bf16[256,128], index: 21, kind: input, shape index: {}]
  %s22 = inlined_call_operand.vmem [shape: f32[1,128], index: 22, kind: input, shape index: {}]
  %s23 = inlined_call_operand.vmem [shape: f32[1,128], index: 23, kind: input, shape index: {}]
  %s24 = inlined_call_operand.hbm [shape: f32[4,128], index: 24, kind: output, shape index: {}]
  %s25 = sld [smem:[#allocation0]]
  $region185: #{tpu_custom_call.1} parent=0
    _
  %s27 = ssub.s32 1, %s25
  %s28 = scalar_select 0, %s27, %s25
  $region1: #{tpu_custom_call.1} parent=0
    #allocation16 [shape = 'u8[262144]{0}', space=vmem, size = 0x40000, scoped, tag = 'input window, operand 9, single buffered']
    #allocation17 [shape = 's32[2]{0}', space=sflag, size = 0x8, scoped, tag = 'scoped memory for tpu_custom_call.1']
    #allocation18 [shape = 's32[2]{0}', space=sflag, size = 0x8, scoped, tag = 'scoped memory for tpu_custom_call.1']
    #allocation19 [shape = 'u8[1048576]{0}', space=vmem, size = 0x100000, scoped, tag = 'input window, operand 13, single buffered']
    #allocation20 [shape = 's32[1]{0}', space=sflag, size = 0x4, scoped, tag = 'scoped memory for tpu_custom_call.1']
    #allocation21 [shape = 'u8[262144]{0}', space=vmem, size = 0x40000, scoped, tag = 'input window, operand 17, single buffered']
    #allocation22 [shape = 'u8[2048]{0}', space=vmem, size = 0x800, scoped, tag = 'output window, operand 0, single buffered']
    %29 = vsyncpa [#allocation17], 0
    %30 = vsyncpa [#allocation20], 0
    %31 = vsyncpa [#allocation18], 0
    loop: start=0, step=1, limit=50
    $region2: #{tpu_custom_call.1} parent=1 // loop_pre_header
      _
    $region3: #{tpu_custom_call.1} parent=1 // loop_header
      %s33 = sphi 0, %s37
      %p34 = scmp.ge.s32.totalorder %s33, 50
      %s40 = sphi 0, %s59
      %s41 = sphi 0, %s55
      %s42 = sphi 0, %s51
      %s43 = sphi 0, %s40
      %s44 = sphi 0, %s41
      %s45 = sphi 0, %s42
      %s46 = sphi 0, %s43
      %s47 = sphi 0, %s44
      %s48 = sphi 0, %s45
      %s64 = sphi 0, %s66
      %s67 = sphi 0, %s64
      %s68 = sphi 0, %s67
      %s84 = sphi 0, %s68
      %s88 = sphi 0, %s88
      %s90 = sphi 0, %s88
      %s91 = sphi 0, %s90
      %s105 = sphi 0, %s91
      %s109 = sphi 0, %s109
      %s111 = sphi 0, %s109
      %s112 = sphi 0, %s111
      %s126 = sphi 0, %s112
      %s130 = sphi 0, %s130
      %s132 = sphi 0, %s130
      %s133 = sphi 0, %s132
      %s147 = sphi 0, %s133
      %s151 = sphi 0, %s151
      %s153 = sphi 0, %s151
      %s154 = sphi 0, %s153
      %s168 = sphi 0, %s154
      %s172 = sphi 0, %s172
      %s174 = sphi 0, %s172
      %s175 = sphi 0, %s174
      %s189 = sphi 0, %s175
      %s193 = sphi 0, %s193
      %s195 = sphi 0, %s193
      %s196 = sphi 0, %s195
      %s210 = sphi 0, %s196
      %s214 = sphi 0, %s214
      %s216 = sphi 0, %s214
      %s217 = sphi 0, %s216
      %s231 = sphi 0, %s217
      %s235 = sphi 0, %s235
      %s237 = sphi 0, %s235
      %s238 = sphi 0, %s237
      %s252 = sphi 0, %s238
      %s256 = sphi 0, %s256
      %s258 = sphi 0, %s256
      %s259 = sphi 0, %s258
      %s273 = sphi 0, %s259
      %s277 = sphi 0, %s277
      %s279 = sphi 0, %s277
      %s280 = sphi 0, %s279
      %s294 = sphi 0, %s280
      %s298 = sphi 0, %s298
      %s300 = sphi 0, %s298
      %s301 = sphi 0, %s300
      %s315 = sphi 0, %s301
      %s319 = sphi 0, %s319
      %s321 = sphi 0, %s319
      %s322 = sphi 0, %s321
      %s336 = sphi 0, %s322
      %s340 = sphi 0, %s340
      %s342 = sphi 0, %s340
      %s343 = sphi 0, %s342
      %s357 = sphi 0, %s343
      %s361 = sphi 0, %s361
      %s363 = sphi 0, %s361
      %s364 = sphi 0, %s363
      %s378 = sphi 0, %s364
      %s382 = sphi 0, %s382
      %s384 = sphi 0, %s382
      %s385 = sphi 0, %s384
      %s399 = sphi 0, %s385
      %s403 = sphi 0, %s403
      %s405 = sphi 0, %s403
      %s406 = sphi 0, %s405
      %s420 = sphi 0, %s406
      %s424 = sphi 0, %s424
      %s426 = sphi 0, %s424
      %s427 = sphi 0, %s426
      %s441 = sphi 0, %s427
      %s445 = sphi 0, %s445
      %s447 = sphi 0, %s445
      %s448 = sphi 0, %s447
      %s462 = sphi 0, %s448
      %s466 = sphi 0, %s466
      %s468 = sphi 0, %s466
      %s469 = sphi 0, %s468
      %s483 = sphi 0, %s469
      %s487 = sphi 0, %s487
      %s489 = sphi 0, %s487
      %s490 = sphi 0, %s489
      %s504 = sphi 0, %s490
      %s508 = sphi 0, %s508
      %s510 = sphi 0, %s508
      %s511 = sphi 0, %s510
      %s525 = sphi 0, %s511
      %s529 = sphi 0, %s529
      %s531 = sphi 0, %s529
      %s532 = sphi 0, %s531
      %s546 = sphi 0, %s532
      %s550 = sphi 0, %s550
      %s552 = sphi 0, %s550
      %s553 = sphi 0, %s552
      %s567 = sphi 0, %s553
      %s571 = sphi 0, %s571
      %s573 = sphi 0, %s571
      %s574 = sphi 0, %s573
      %s588 = sphi 0, %s574
    $region4: #{tpu_custom_call.1} parent=1 // loop_header_branch
      %36 = sbr.rel (%p34) target = $region8
    $region5: #{tpu_custom_call.1} parent=1 // loop_body
      %s38 = ssub.s32 %s33, 1
      %s39 = ssub.s32 %s33, 2
      %s49 = sadd.s32 1, %s42
      %p50 = scmp.ge.s32.totalorder %s49, 4
      %s51 = scalar_select %p50, 0, %s49
      %s52 = sadd.s32 1, %s41
      %s53 = scalar_select %p50, %s52, %s41
      %p54 = scmp.ge.s32.totalorder %s53, 4
      %s55 = scalar_select %p54, 0, %s53
      %s56 = sadd.s32 1, %s40
      %s57 = scalar_select %p54, %s56, %s40
      %p58 = scmp.ge.s32.totalorder %s57, 3
      %s59 = scalar_select %p58, 0, %s57
      %s60 = ssub.s32 %s41, %s55
      %s61 = ssub.s32 %s42, %s51
      %s62 = sor.u32 %s60, %s61
      %p63 = scmp.eq.s32.totalorder %s62, 0
      %s65 = sadd.s32 %s64, 1
      %s66 = scalar_select %p63, %s64, %s65
      %p69 = pneg %p63
      %p70 = scmp.eq.s32.totalorder %s33, 47
      %p71 = por %p69, %p70
      %p72 = scmp.ne.s32.totalorder %s64, %s67
      %p73 = scmp.eq.s32.totalorder %s33, 0
      %p74 = por %p72, %p73
      %p75 = scmp.ne.s32.totalorder %s64, %s67
      %p76 = scmp.eq.s32.totalorder %s38, 47
      %p77 = por %p75, %p76
      %p78 = scmp.ne.s32.totalorder %s67, %s68
      %p79 = scmp.eq.s32.totalorder %s38, 0
      %p80 = por %p78, %p79
      %p81 = scmp.ne.s32.totalorder %s67, %s68
      %p82 = scmp.eq.s32.totalorder %s39, 47
      %p83 = por %p81, %p82
      %p85 = scmp.ne.s32.totalorder %s68, %s84
      %p86 = scmp.eq.s32.totalorder %s39, 0
      %p87 = por %p85, %p86
      %s89 = sadd.s32 %s88, 1
      %p92 = scmp.eq.s32.totalorder %s33, 47
      %p93 = scmp.ne.s32.totalorder %s88, %s90
      %p94 = scmp.eq.s32.totalorder %s33, 0
      %p95 = por %p93, %p94
      %p96 = scmp.ne.s32.totalorder %s88, %s90
      %p97 = scmp.eq.s32.totalorder %s38, 47
      %p98 = por %p96, %p97
      %p99 = scmp.ne.s32.totalorder %s90, %s91
      %p100 = scmp.eq.s32.totalorder %s38, 0
      %p101 = por %p99, %p100
      %p102 = scmp.ne.s32.totalorder %s90, %s91
      %p103 = scmp.eq.s32.totalorder %s39, 47
      %p104 = por %p102, %p103
      %p106 = scmp.ne.s32.totalorder %s91, %s105
      %p107 = scmp.eq.s32.totalorder %s39, 0
      %p108 = por %p106, %p107
      %s110 = sadd.s32 %s109, 1
      %p113 = scmp.eq.s32.totalorder %s33, 47
      %p114 = scmp.ne.s32.totalorder %s109, %s111
      %p115 = scmp.eq.s32.totalorder %s33, 0
      %p116 = por %p114, %p115
      %p117 = scmp.ne.s32.totalorder %s109, %s111
      %p118 = scmp.eq.s32.totalorder %s38, 47
      %p119 = por %p117, %p118
      %p120 = scmp.ne.s32.totalorder %s111, %s112
      %p121 = scmp.eq.s32.totalorder %s38, 0
      %p122 = por %p120, %p121
      %p123 = scmp.ne.s32.totalorder %s111, %s112
      %p124 = scmp.eq.s32.totalorder %s39, 47
      %p125 = por %p123, %p124
      %p127 = scmp.ne.s32.totalorder %s112, %s126
      %p128 = scmp.eq.s32.totalorder %s39, 0
      %p129 = por %p127, %p128
      %s131 = sadd.s32 %s130, 1
      %p134 = scmp.eq.s32.totalorder %s33, 47
      %p135 = scmp.ne.s32.totalorder %s130, %s132
      %p136 = scmp.eq.s32.totalorder %s33, 0
      %p137 = por %p135, %p136
      %p138 = scmp.ne.s32.totalorder %s130, %s132
      %p139 = scmp.eq.s32.totalorder %s38, 47
      %p140 = por %p138, %p139
      %p141 = scmp.ne.s32.totalorder %s132, %s133
      %p142 = scmp.eq.s32.totalorder %s38, 0
      %p143 = por %p141, %p142
      %p144 = scmp.ne.s32.totalorder %s132, %s133
      %p145 = scmp.eq.s32.totalorder %s39, 47
      %p146 = por %p144, %p145
      %p148 = scmp.ne.s32.totalorder %s133, %s147
      %p149 = scmp.eq.s32.totalorder %s39, 0
      %p150 = por %p148, %p149
      %s152 = sadd.s32 %s151, 1
      %p155 = scmp.eq.s32.totalorder %s33, 47
      %p156 = scmp.ne.s32.totalorder %s151, %s153
      %p157 = scmp.eq.s32.totalorder %s33, 0
      %p158 = por %p156, %p157
      %p159 = scmp.ne.s32.totalorder %s151, %s153
      %p160 = scmp.eq.s32.totalorder %s38, 47
      %p161 = por %p159, %p160
      %p162 = scmp.ne.s32.totalorder %s153, %s154
      %p163 = scmp.eq.s32.totalorder %s38, 0
      %p164 = por %p162, %p163
      %p165 = scmp.ne.s32.totalorder %s153, %s154
      %p166 = scmp.eq.s32.totalorder %s39, 47
      %p167 = por %p165, %p166
      %p169 = scmp.ne.s32.totalorder %s154, %s168
      %p170 = scmp.eq.s32.totalorder %s39, 0
      %p171 = por %p169, %p170
      %s173 = sadd.s32 %s172, 1
      %p176 = scmp.eq.s32.totalorder %s33, 47
      %p177 = scmp.ne.s32.totalorder %s172, %s174
      %p178 = scmp.eq.s32.totalorder %s33, 0
      %p179 = por %p177, %p178
      %p180 = scmp.ne.s32.totalorder %s172, %s174
      %p181 = scmp.eq.s32.totalorder %s38, 47
      %p182 = por %p180, %p181
      %p183 = scmp.ne.s32.totalorder %s174, %s175
      %p184 = scmp.eq.s32.totalorder %s38, 0
      %p185 = por %p183, %p184
      %p186 = scmp.ne.s32.totalorder %s174, %s175
      %p187 = scmp.eq.s32.totalorder %s39, 47
      %p188 = por %p186, %p187
      %p190 = scmp.ne.s32.totalorder %s175, %s189
      %p191 = scmp.eq.s32.totalorder %s39, 0
      %p192 = por %p190, %p191
      %s194 = sadd.s32 %s193, 1
      %p197 = scmp.eq.s32.totalorder %s33, 47
      %p198 = scmp.ne.s32.totalorder %s193, %s195
      %p199 = scmp.eq.s32.totalorder %s33, 0
      %p200 = por %p198, %p199
      %p201 = scmp.ne.s32.totalorder %s193, %s195
      %p202 = scmp.eq.s32.totalorder %s38, 47
      %p203 = por %p201, %p202
      %p204 = scmp.ne.s32.totalorder %s195, %s196
      %p205 = scmp.eq.s32.totalorder %s38, 0
      %p206 = por %p204, %p205
      %p207 = scmp.ne.s32.totalorder %s195, %s196
      %p208 = scmp.eq.s32.totalorder %s39, 47
      %p209 = por %p207, %p208
      %p211 = scmp.ne.s32.totalorder %s196, %s210
      %p212 = scmp.eq.s32.totalorder %s39, 0
      %p213 = por %p211, %p212
      %s215 = sadd.s32 %s214, 1
      %p218 = scmp.eq.s32.totalorder %s33, 47
      %p219 = scmp.ne.s32.totalorder %s214, %s216
      %p220 = scmp.eq.s32.totalorder %s33, 0
      %p221 = por %p219, %p220
      %p222 = scmp.ne.s32.totalorder %s214, %s216
      %p223 = scmp.eq.s32.totalorder %s38, 47
      %p224 = por %p222, %p223
      %p225 = scmp.ne.s32.totalorder %s216, %s217
      %p226 = scmp.eq.s32.totalorder %s38, 0
      %p227 = por %p225, %p226
      %p228 = scmp.ne.s32.totalorder %s216, %s217
      %p229 = scmp.eq.s32.totalorder %s39, 47
      %p230 = por %p228, %p229
      %p232 = scmp.ne.s32.totalorder %s217, %s231
      %p233 = scmp.eq.s32.totalorder %s39, 0
      %p234 = por %p232, %p233
      %s236 = sadd.s32 %s235, 1
      %p239 = scmp.eq.s32.totalorder %s33, 47
      %p240 = scmp.ne.s32.totalorder %s235, %s237
      %p241 = scmp.eq.s32.totalorder %s33, 0
      %p242 = por %p240, %p241
      %p243 = scmp.ne.s32.totalorder %s235, %s237
      %p244 = scmp.eq.s32.totalorder %s38, 47
      %p245 = por %p243, %p244
      %p246 = scmp.ne.s32.totalorder %s237, %s238
      %p247 = scmp.eq.s32.totalorder %s38, 0
      %p248 = por %p246, %p247
      %p249 = scmp.ne.s32.totalorder %s237, %s238
      %p250 = scmp.eq.s32.totalorder %s39, 47
      %p251 = por %p249, %p250
      %p253 = scmp.ne.s32.totalorder %s238, %s252
      %p254 = scmp.eq.s32.totalorder %s39, 0
      %p255 = por %p253, %p254
      %s257 = sadd.s32 %s256, 1
      %p260 = scmp.eq.s32.totalorder %s33, 47
      %p261 = scmp.ne.s32.totalorder %s256, %s258
      %p262 = scmp.eq.s32.totalorder %s33, 0
      %p263 = por %p261, %p262
      %p264 = scmp.ne.s32.totalorder %s256, %s258
      %p265 = scmp.eq.s32.totalorder %s38, 47
      %p266 = por %p264, %p265
      %p267 = scmp.ne.s32.totalorder %s258, %s259
      %p268 = scmp.eq.s32.totalorder %s38, 0
      %p269 = por %p267, %p268
      %p270 = scmp.ne.s32.totalorder %s258, %s259
      %p271 = scmp.eq.s32.totalorder %s39, 47
      %p272 = por %p270, %p271
      %p274 = scmp.ne.s32.totalorder %s259, %s273
      %p275 = scmp.eq.s32.totalorder %s39, 0
      %p276 = por %p274, %p275
      %s278 = sadd.s32 %s277, 1
      %p281 = scmp.eq.s32.totalorder %s33, 47
      %p282 = scmp.ne.s32.totalorder %s277, %s279
      %p283 = scmp.eq.s32.totalorder %s33, 0
      %p284 = por %p282, %p283
      %p285 = scmp.ne.s32.totalorder %s277, %s279
      %p286 = scmp.eq.s32.totalorder %s38, 47
      %p287 = por %p285, %p286
      %p288 = scmp.ne.s32.totalorder %s279, %s280
      %p289 = scmp.eq.s32.totalorder %s38, 0
      %p290 = por %p288, %p289
      %p291 = scmp.ne.s32.totalorder %s279, %s280
      %p292 = scmp.eq.s32.totalorder %s39, 47
      %p293 = por %p291, %p292
      %p295 = scmp.ne.s32.totalorder %s280, %s294
      %p296 = scmp.eq.s32.totalorder %s39, 0
      %p297 = por %p295, %p296
      %s299 = sadd.s32 %s298, 1
      %p302 = scmp.eq.s32.totalorder %s33, 47
      %p303 = scmp.ne.s32.totalorder %s298, %s300
      %p304 = scmp.eq.s32.totalorder %s33, 0
      %p305 = por %p303, %p304
      %p306 = scmp.ne.s32.totalorder %s298, %s300
      %p307 = scmp.eq.s32.totalorder %s38, 47
      %p308 = por %p306, %p307
      %p309 = scmp.ne.s32.totalorder %s300, %s301
      %p310 = scmp.eq.s32.totalorder %s38, 0
      %p311 = por %p309, %p310
      %p312 = scmp.ne.s32.totalorder %s300, %s301
      %p313 = scmp.eq.s32.totalorder %s39, 47
      %p314 = por %p312, %p313
      %p316 = scmp.ne.s32.totalorder %s301, %s315
      %p317 = scmp.eq.s32.totalorder %s39, 0
      %p318 = por %p316, %p317
      %s320 = sadd.s32 %s319, 1
      %p323 = scmp.eq.s32.totalorder %s33, 47
      %p324 = scmp.ne.s32.totalorder %s319, %s321
      %p325 = scmp.eq.s32.totalorder %s33, 0
      %p326 = por %p324, %p325
      %p327 = scmp.ne.s32.totalorder %s319, %s321
      %p328 = scmp.eq.s32.totalorder %s38, 47
      %p329 = por %p327, %p328
      %p330 = scmp.ne.s32.totalorder %s321, %s322
      %p331 = scmp.eq.s32.totalorder %s38, 0
      %p332 = por %p330, %p331
      %p333 = scmp.ne.s32.totalorder %s321, %s322
      %p334 = scmp.eq.s32.totalorder %s39, 47
      %p335 = por %p333, %p334
      %p337 = scmp.ne.s32.totalorder %s322, %s336
      %p338 = scmp.eq.s32.totalorder %s39, 0
      %p339 = por %p337, %p338
      %s341 = sadd.s32 %s340, 1
      %p344 = scmp.eq.s32.totalorder %s33, 47
      %p345 = scmp.ne.s32.totalorder %s340, %s342
      %p346 = scmp.eq.s32.totalorder %s33, 0
      %p347 = por %p345, %p346
      %p348 = scmp.ne.s32.totalorder %s340, %s342
      %p349 = scmp.eq.s32.totalorder %s38, 47
      %p350 = por %p348, %p349
      %p351 = scmp.ne.s32.totalorder %s342, %s343
      %p352 = scmp.eq.s32.totalorder %s38, 0
      %p353 = por %p351, %p352
      %p354 = scmp.ne.s32.totalorder %s342, %s343
      %p355 = scmp.eq.s32.totalorder %s39, 47
      %p356 = por %p354, %p355
      %p358 = scmp.ne.s32.totalorder %s343, %s357
      %p359 = scmp.eq.s32.totalorder %s39, 0
      %p360 = por %p358, %p359
      %s362 = sadd.s32 %s361, 1
      %p365 = scmp.eq.s32.totalorder %s33, 47
      %p366 = scmp.ne.s32.totalorder %s361, %s363
      %p367 = scmp.eq.s32.totalorder %s33, 0
      %p368 = por %p366, %p367
      %p369 = scmp.ne.s32.totalorder %s361, %s363
      %p370 = scmp.eq.s32.totalorder %s38, 47
      %p371 = por %p369, %p370
      %p372 = scmp.ne.s32.totalorder %s363, %s364
      %p373 = scmp.eq.s32.totalorder %s38, 0
      %p374 = por %p372, %p373
      %p375 = scmp.ne.s32.totalorder %s363, %s364
      %p376 = scmp.eq.s32.totalorder %s39, 47
      %p377 = por %p375, %p376
      %p379 = scmp.ne.s32.totalorder %s364, %s378
      %p380 = scmp.eq.s32.totalorder %s39, 0
      %p381 = por %p379, %p380
      %s383 = sadd.s32 %s382, 1
      %p386 = scmp.eq.s32.totalorder %s33, 47
      %p387 = scmp.ne.s32.totalorder %s382, %s384
      %p388 = scmp.eq.s32.totalorder %s33, 0
      %p389 = por %p387, %p388
      %p390 = scmp.ne.s32.totalorder %s382, %s384
      %p391 = scmp.eq.s32.totalorder %s38, 47
      %p392 = por %p390, %p391
      %p393 = scmp.ne.s32.totalorder %s384, %s385
      %p394 = scmp.eq.s32.totalorder %s38, 0
      %p395 = por %p393, %p394
      %p396 = scmp.ne.s32.totalorder %s384, %s385
      %p397 = scmp.eq.s32.totalorder %s39, 47
      %p398 = por %p396, %p397
      %p400 = scmp.ne.s32.totalorder %s385, %s399
      %p401 = scmp.eq.s32.totalorder %s39, 0
      %p402 = por %p400, %p401
      %s404 = sadd.s32 %s403, 1
      %p407 = scmp.eq.s32.totalorder %s33, 47
      %p408 = scmp.ne.s32.totalorder %s403, %s405
      %p409 = scmp.eq.s32.totalorder %s33, 0
      %p410 = por %p408, %p409
      %p411 = scmp.ne.s32.totalorder %s403, %s405
      %p412 = scmp.eq.s32.totalorder %s38, 47
      %p413 = por %p411, %p412
      %p414 = scmp.ne.s32.totalorder %s405, %s406
      %p415 = scmp.eq.s32.totalorder %s38, 0
      %p416 = por %p414, %p415
      %p417 = scmp.ne.s32.totalorder %s405, %s406
      %p418 = scmp.eq.s32.totalorder %s39, 47
      %p419 = por %p417, %p418
      %p421 = scmp.ne.s32.totalorder %s406, %s420
      %p422 = scmp.eq.s32.totalorder %s39, 0
      %p423 = por %p421, %p422
      %s425 = sadd.s32 %s424, 1
      %p428 = scmp.eq.s32.totalorder %s33, 47
      %p429 = scmp.ne.s32.totalorder %s424, %s426
      %p430 = scmp.eq.s32.totalorder %s33, 0
      %p431 = por %p429, %p430
      %p432 = scmp.ne.s32.totalorder %s424, %s426
      %p433 = scmp.eq.s32.totalorder %s38, 47
      %p434 = por %p432, %p433
      %p435 = scmp.ne.s32.totalorder %s426, %s427
      %p436 = scmp.eq.s32.totalorder %s38, 0
      %p437 = por %p435, %p436
      %p438 = scmp.ne.s32.totalorder %s426, %s427
      %p439 = scmp.eq.s32.totalorder %s39, 47
      %p440 = por %p438, %p439
      %p442 = scmp.ne.s32.totalorder %s427, %s441
      %p443 = scmp.eq.s32.totalorder %s39, 0
      %p444 = por %p442, %p443
      %s446 = sadd.s32 %s445, 1
      %p449 = scmp.eq.s32.totalorder %s33, 47
      %p450 = scmp.ne.s32.totalorder %s445, %s447
      %p451 = scmp.eq.s32.totalorder %s33, 0
      %p452 = por %p450, %p451
      %p453 = scmp.ne.s32.totalorder %s445, %s447
      %p454 = scmp.eq.s32.totalorder %s38, 47
      %p455 = por %p453, %p454
      %p456 = scmp.ne.s32.totalorder %s447, %s448
      %p457 = scmp.eq.s32.totalorder %s38, 0
      %p458 = por %p456, %p457
      %p459 = scmp.ne.s32.totalorder %s447, %s448
      %p460 = scmp.eq.s32.totalorder %s39, 47
      %p461 = por %p459, %p460
      %p463 = scmp.ne.s32.totalorder %s448, %s462
      %p464 = scmp.eq.s32.totalorder %s39, 0
      %p465 = por %p463, %p464
      %s467 = sadd.s32 %s466, 1
      %p470 = scmp.eq.s32.totalorder %s33, 47
      %p471 = scmp.ne.s32.totalorder %s466, %s468
      %p472 = scmp.eq.s32.totalorder %s33, 0
      %p473 = por %p471, %p472
      %p474 = scmp.ne.s32.totalorder %s466, %s468
      %p475 = scmp.eq.s32.totalorder %s38, 47
      %p476 = por %p474, %p475
      %p477 = scmp.ne.s32.totalorder %s468, %s469
      %p478 = scmp.eq.s32.totalorder %s38, 0
      %p479 = por %p477, %p478
      %p480 = scmp.ne.s32.totalorder %s468, %s469
      %p481 = scmp.eq.s32.totalorder %s39, 47
      %p482 = por %p480, %p481
      %p484 = scmp.ne.s32.totalorder %s469, %s483
      %p485 = scmp.eq.s32.totalorder %s39, 0
      %p486 = por %p484, %p485
      %s488 = sadd.s32 %s487, 1
      %p491 = scmp.eq.s32.totalorder %s33, 47
      %p492 = scmp.ne.s32.totalorder %s487, %s489
      %p493 = scmp.eq.s32.totalorder %s33, 0
      %p494 = por %p492, %p493
      %p495 = scmp.ne.s32.totalorder %s487, %s489
      %p496 = scmp.eq.s32.totalorder %s38, 47
      %p497 = por %p495, %p496
      %p498 = scmp.ne.s32.totalorder %s489, %s490
      %p499 = scmp.eq.s32.totalorder %s38, 0
      %p500 = por %p498, %p499
      %p501 = scmp.ne.s32.totalorder %s489, %s490
      %p502 = scmp.eq.s32.totalorder %s39, 47
      %p503 = por %p501, %p502
      %p505 = scmp.ne.s32.totalorder %s490, %s504
      %p506 = scmp.eq.s32.totalorder %s39, 0
      %p507 = por %p505, %p506
      %s509 = sadd.s32 %s508, 1
      %p512 = scmp.eq.s32.totalorder %s33, 47
      %p513 = scmp.ne.s32.totalorder %s508, %s510
      %p514 = scmp.eq.s32.totalorder %s33, 0
      %p515 = por %p513, %p514
      %p516 = scmp.ne.s32.totalorder %s508, %s510
      %p517 = scmp.eq.s32.totalorder %s38, 47
      %p518 = por %p516, %p517
      %p519 = scmp.ne.s32.totalorder %s510, %s511
      %p520 = scmp.eq.s32.totalorder %s38, 0
      %p521 = por %p519, %p520
      %p522 = scmp.ne.s32.totalorder %s510, %s511
      %p523 = scmp.eq.s32.totalorder %s39, 47
      %p524 = por %p522, %p523
      %p526 = scmp.ne.s32.totalorder %s511, %s525
      %p527 = scmp.eq.s32.totalorder %s39, 0
      %p528 = por %p526, %p527
      %s530 = sadd.s32 %s529, 1
      %p533 = scmp.eq.s32.totalorder %s33, 47
      %p534 = scmp.ne.s32.totalorder %s529, %s531
      %p535 = scmp.eq.s32.totalorder %s33, 0
      %p536 = por %p534, %p535
      %p537 = scmp.ne.s32.totalorder %s529, %s531
      %p538 = scmp.eq.s32.totalorder %s38, 47
      %p539 = por %p537, %p538
      %p540 = scmp.ne.s32.totalorder %s531, %s532
      %p541 = scmp.eq.s32.totalorder %s38, 0
      %p542 = por %p540, %p541
      %p543 = scmp.ne.s32.totalorder %s531, %s532
      %p544 = scmp.eq.s32.totalorder %s39, 47
      %p545 = por %p543, %p544
      %p547 = scmp.ne.s32.totalorder %s532, %s546
      %p548 = scmp.eq.s32.totalorder %s39, 0
      %p549 = por %p547, %p548
      %s551 = sadd.s32 %s550, 1
      %p554 = scmp.eq.s32.totalorder %s33, 47
      %p555 = scmp.ne.s32.totalorder %s550, %s552
      %p556 = scmp.eq.s32.totalorder %s33, 0
      %p557 = por %p555, %p556
      %p558 = scmp.ne.s32.totalorder %s550, %s552
      %p559 = scmp.eq.s32.totalorder %s38, 47
      %p560 = por %p558, %p559
      %p561 = scmp.ne.s32.totalorder %s552, %s553
      %p562 = scmp.eq.s32.totalorder %s38, 0
      %p563 = por %p561, %p562
      %p564 = scmp.ne.s32.totalorder %s552, %s553
      %p565 = scmp.eq.s32.totalorder %s39, 47
      %p566 = por %p564, %p565
      %p568 = scmp.ne.s32.totalorder %s553, %s567
      %p569 = scmp.eq.s32.totalorder %s39, 0
      %p570 = por %p568, %p569
      %s572 = sadd.s32 %s571, 1
      %p575 = scmp.eq.s32.totalorder %s33, 47
      %p576 = scmp.ne.s32.totalorder %s571, %s573
      %p577 = scmp.eq.s32.totalorder %s33, 0
      %p578 = por %p576, %p577
      %p579 = scmp.ne.s32.totalorder %s571, %s573
      %p580 = scmp.eq.s32.totalorder %s38, 47
      %p581 = por %p579, %p580
      %p582 = scmp.ne.s32.totalorder %s573, %s574
      %p583 = scmp.eq.s32.totalorder %s38, 0
      %p584 = por %p582, %p583
      %p585 = scmp.ne.s32.totalorder %s573, %s574
      %p586 = scmp.eq.s32.totalorder %s39, 47
      %p587 = por %p585, %p586
      %p589 = scmp.ne.s32.totalorder %s574, %s588
      %p590 = scmp.eq.s32.totalorder %s39, 0
      %p591 = por %p589, %p590
      %p592 = scmp.le.s32.totalorder 1, %s33
      %p593 = scmp.lt.s32.totalorder %s33, 49
      %p594 = pnand %p592, %p593
      %p595 = pneg %p594
      // Predicated region
      $region9: #{tpu_custom_call.1} parent=5 // pred_check
        _
      $region10: #{tpu_custom_call.1} parent=5 // pred_check_branch
        %597 = sbr.rel (%p594) target = $region12
      $region11: #{tpu_custom_call.1} parent=5 // pred_region
        %s598 = ssub.s32 %s33, 1
        // Predicated region
        $region13: #{tpu_custom_call.1} parent=11 // pred_check
          %p599 = pneg %p101
        $region14: #{tpu_custom_call.1} parent=11 // pred_check_branch
          %601 = sbr.rel (%p599) target = $region16
        $region15: #{tpu_custom_call.1} parent=11 // pred_region
          _
        $region16: #{tpu_custom_call.1} parent=11 // pred_fallthru
          _
        // Predicated region
        $region17: #{tpu_custom_call.1} parent=11 // pred_check
          %p602 = pneg %p122
        $region18: #{tpu_custom_call.1} parent=11 // pred_check_branch
          %604 = sbr.rel (%p602) target = $region20
        $region19: #{tpu_custom_call.1} parent=11 // pred_region
          _
        $region20: #{tpu_custom_call.1} parent=11 // pred_fallthru
          _
        // Predicated region
        $region21: #{tpu_custom_call.1} parent=11 // pred_check
          %p605 = pneg %p143
        $region22: #{tpu_custom_call.1} parent=11 // pred_check_branch
          %607 = sbr.rel (%p605) target = $region24
        $region23: #{tpu_custom_call.1} parent=11 // pred_region
          _
        $region24: #{tpu_custom_call.1} parent=11 // pred_fallthru
          _
        // Predicated region
        $region25: #{tpu_custom_call.1} parent=11 // pred_check
          %p608 = pneg %p164
        $region26: #{tpu_custom_call.1} parent=11 // pred_check_branch
          %610 = sbr.rel (%p608) target = $region28
        $region27: #{tpu_custom_call.1} parent=11 // pred_region
          _
        $region28: #{tpu_custom_call.1} parent=11 // pred_fallthru
          _
        // Predicated region
        $region29: #{tpu_custom_call.1} parent=11 // pred_check
          %p611 = pneg %p185
        $region30: #{tpu_custom_call.1} parent=11 // pred_check_branch
          %613 = sbr.rel (%p611) target = $region32
        $region31: #{tpu_custom_call.1} parent=11 // pred_region
          _
        $region32: #{tpu_custom_call.1} parent=11 // pred_fallthru
          _
        // Predicated region
        $region33: #{tpu_custom_call.1} parent=11 // pred_check
          %p614 = pneg %p206
        $region34: #{tpu_custom_call.1} parent=11 // pred_check_branch
          %616 = sbr.rel (%p614) target = $region36
        $region35: #{tpu_custom_call.1} parent=11 // pred_region
          _
        $region36: #{tpu_custom_call.1} parent=11 // pred_fallthru
          _
        // Predicated region
        $region37: #{tpu_custom_call.1} parent=11 // pred_check
          %p617 = pneg %p227
        $region38: #{tpu_custom_call.1} parent=11 // pred_check_branch
          %619 = sbr.rel (%p617) target = $region40
        $region39: #{tpu_custom_call.1} parent=11 // pred_region
          _
        $region40: #{tpu_custom_call.1} parent=11 // pred_fallthru
          _
        // Predicated region
        $region41: #{tpu_custom_call.1} parent=11 // pred_check
          %p620 = pneg %p248
        $region42: #{tpu_custom_call.1} parent=11 // pred_check_branch
          %622 = sbr.rel (%p620) target = $region44
        $region43: #{tpu_custom_call.1} parent=11 // pred_region
          _
        $region44: #{tpu_custom_call.1} parent=11 // pred_fallthru
          _
        // Predicated region
        $region45: #{tpu_custom_call.1} parent=11 // pred_check
          %p623 = pneg %p269
        $region46: #{tpu_custom_call.1} parent=11 // pred_check_branch
          %625 = sbr.rel (%p623) target = $region48
        $region47: #{tpu_custom_call.1} parent=11 // pred_region
          %s627 = ssub.s32 8192, 8192
          %628 = vsyncadd [#allocation17], %s627
          %s629 = sshll.u32 [#allocation16], 4
          %s630 = int_to_ptr.vmem [resolvable:$true] %s629
          %635 = dma.hbm_to_vmem [thread:$0]  %s9, 8192, %s630, [#allocation17], 512, 512, 32
        $region48: #{tpu_custom_call.1} parent=11 // pred_fallthru
          _
        // Predicated region
        $region49: #{tpu_custom_call.1} parent=11 // pred_check
          %p636 = pneg %p290
        $region50: #{tpu_custom_call.1} parent=11 // pred_check_branch
          %638 = sbr.rel (%p636) target = $region52
        $region51: #{tpu_custom_call.1} parent=11 // pred_region
          _
        $region52: #{tpu_custom_call.1} parent=11 // pred_fallthru
          _
        // Predicated region
        $region53: #{tpu_custom_call.1} parent=11 // pred_check
          %p639 = pneg %p311
        $region54: #{tpu_custom_call.1} parent=11 // pred_check_branch
          %641 = sbr.rel (%p639) target = $region56
        $region55: #{tpu_custom_call.1} parent=11 // pred_region
          _
        $region56: #{tpu_custom_call.1} parent=11 // pred_fallthru
          _
        // Predicated region
        $region57: #{tpu_custom_call.1} parent=11 // pred_check
          %p642 = pneg %p332
        $region58: #{tpu_custom_call.1} parent=11 // pred_check_branch
          %644 = sbr.rel (%p642) target = $region60
        $region59: #{tpu_custom_call.1} parent=11 // pred_region
          _
        $region60: #{tpu_custom_call.1} parent=11 // pred_fallthru
          _
        // Predicated region
        $region61: #{tpu_custom_call.1} parent=11 // pred_check
          %p645 = pneg %p353
        $region62: #{tpu_custom_call.1} parent=11 // pred_check_branch
          %647 = sbr.rel (%p645) target = $region64
        $region63: #{tpu_custom_call.1} parent=11 // pred_region
          %s649 = ssub.s32 32768, 32768
          %650 = vsyncadd [#allocation20], %s649
          %s651 = sshll.u32 [#allocation19], 4
          %s652 = int_to_ptr.vmem [resolvable:$true] %s651
          %657 = dma.hbm_to_vmem [thread:$0]  %s13, 32768, %s652, [#allocation20], 256, 256, 16
        $region64: #{tpu_custom_call.1} parent=11 // pred_fallthru
          _
        // Predicated region
        $region65: #{tpu_custom_call.1} parent=11 // pred_check
          %p658 = pneg %p374
        $region66: #{tpu_custom_call.1} parent=11 // pred_check_branch
          %660 = sbr.rel (%p658) target = $region68
        $region67: #{tpu_custom_call.1} parent=11 // pred_region
          _
        $region68: #{tpu_custom_call.1} parent=11 // pred_fallthru
          _
        // Predicated region
        $region69: #{tpu_custom_call.1} parent=11 // pred_check
          %p661 = pneg %p395
        $region70: #{tpu_custom_call.1} parent=11 // pred_check_branch
          %663 = sbr.rel (%p661) target = $region72
        $region71: #{tpu_custom_call.1} parent=11 // pred_region
          _
        $region72: #{tpu_custom_call.1} parent=11 // pred_fallthru
          _
        // Predicated region
        $region73: #{tpu_custom_call.1} parent=11 // pred_check
          %p664 = pneg %p416
        $region74: #{tpu_custom_call.1} parent=11 // pred_check_branch
          %666 = sbr.rel (%p664) target = $region76
        $region75: #{tpu_custom_call.1} parent=11 // pred_region
          _
        $region76: #{tpu_custom_call.1} parent=11 // pred_fallthru
          _
        // Predicated region
        $region77: #{tpu_custom_call.1} parent=11 // pred_check
          %p667 = pneg %p437
        $region78: #{tpu_custom_call.1} parent=11 // pred_check_branch
          %669 = sbr.rel (%p667) target = $region80
        $region79: #{tpu_custom_call.1} parent=11 // pred_region
          %s671 = ssub.s32 8192, 8192
          %672 = vsyncadd [#allocation20], %s671
          %s673 = sshll.u32 [#allocation21], 4
          %s674 = int_to_ptr.vmem [resolvable:$true] %s673
          %679 = dma.hbm_to_vmem [thread:$0]  %s17, 8192, %s674, [#allocation20], 128, 128, 8
        $region80: #{tpu_custom_call.1} parent=11 // pred_fallthru
          _
        // Predicated region
        $region81: #{tpu_custom_call.1} parent=11 // pred_check
          %p680 = pneg %p458
        $region82: #{tpu_custom_call.1} parent=11 // pred_check_branch
          %682 = sbr.rel (%p680) target = $region84
        $region83: #{tpu_custom_call.1} parent=11 // pred_region
          _
        $region84: #{tpu_custom_call.1} parent=11 // pred_fallthru
          _
        // Predicated region
        $region85: #{tpu_custom_call.1} parent=11 // pred_check
          %p683 = pneg %p479
        $region86: #{tpu_custom_call.1} parent=11 // pred_check_branch
          %685 = sbr.rel (%p683) target = $region88
        $region87: #{tpu_custom_call.1} parent=11 // pred_region
          _
        $region88: #{tpu_custom_call.1} parent=11 // pred_fallthru
          _
        // Predicated region
        $region89: #{tpu_custom_call.1} parent=11 // pred_check
          %p686 = pneg %p500
        $region90: #{tpu_custom_call.1} parent=11 // pred_check_branch
          %688 = sbr.rel (%p686) target = $region92
        $region91: #{tpu_custom_call.1} parent=11 // pred_region
          _
        $region92: #{tpu_custom_call.1} parent=11 // pred_fallthru
          _
        // Predicated region
        $region93: #{tpu_custom_call.1} parent=11 // pred_check
          %p689 = pneg %p521
        $region94: #{tpu_custom_call.1} parent=11 // pred_check_branch
          %691 = sbr.rel (%p689) target = $region96
        $region95: #{tpu_custom_call.1} parent=11 // pred_region
          _
        $region96: #{tpu_custom_call.1} parent=11 // pred_fallthru
          _
        // Predicated region
        $region97: #{tpu_custom_call.1} parent=11 // pred_check
          %p692 = pneg %p542
        $region98: #{tpu_custom_call.1} parent=11 // pred_check_branch
          %694 = sbr.rel (%p692) target = $region100
        $region99: #{tpu_custom_call.1} parent=11 // pred_region
          _
        $region100: #{tpu_custom_call.1} parent=11 // pred_fallthru
          _
        // Predicated region
        $region101: #{tpu_custom_call.1} parent=11 // pred_check
          %p695 = pneg %p563
        $region102: #{tpu_custom_call.1} parent=11 // pred_check_branch
          %697 = sbr.rel (%p695) target = $region104
        $region103: #{tpu_custom_call.1} parent=11 // pred_region
          _
        $region104: #{tpu_custom_call.1} parent=11 // pred_fallthru
          _
      $region12: #{tpu_custom_call.1} parent=5 // pred_fallthru
        _
      %p698 = scmp.lt.s32.totalorder %s33, 48
      // Predicated region
      $region105: #{tpu_custom_call.1} parent=5 // pred_check
        %p699 = pneg %p698
      $region106: #{tpu_custom_call.1} parent=5 // pred_check_branch
        %701 = sbr.rel (%p699) target = $region108
      $region107: #{tpu_custom_call.1} parent=5 // pred_region
        // Predicated region
        $region109: #{tpu_custom_call.1} parent=107 // pred_check
          %p702 = pneg %p74
        $region110: #{tpu_custom_call.1} parent=107 // pred_check_branch
          %704 = sbr.rel (%p702) target = $region112
        $region111: #{tpu_custom_call.1} parent=107 // pred_region
          %s705 = smul.u32 4, %s42
          %p706 = scmp.lt.s32.totalorder %s41, 3
          %s707 = scalar_select %p706, %s41, 3
          %p708 = scmp.lt.s32.totalorder %s705, 15
          %s709 = scalar_select %p708, %s705, 15
          %s710 = smul.addr %s707, 16
          %s711 = sadd.s32 %s709, %s710
          %s712 = smul.addr %s711, 4
          %s713 = scalar_lea.vmem %s0, %s712
          %s714 = smul.u32 4, %s42
        $region112: #{tpu_custom_call.1} parent=107 // pred_fallthru
          _
      $region108: #{tpu_custom_call.1} parent=5 // pred_fallthru
        _
      %p715 = scmp.le.s32.totalorder 1, %s33
      %p716 = scmp.lt.s32.totalorder %s33, 49
      %p717 = pnand %p715, %p716
      %p718 = pneg %p717
      // Predicated region
      $region113: #{tpu_custom_call.1} parent=5 // pred_check
        _
      $region114: #{tpu_custom_call.1} parent=5 // pred_check_branch
        %720 = sbr.rel (%p717) target = $region116
      $region115: #{tpu_custom_call.1} parent=5 // pred_region
        %s721 = ssub.s32 %s33, 1
        // Predicated region
        $region117: #{tpu_custom_call.1} parent=115 // pred_check
          %p722 = pneg %p269
        $region118: #{tpu_custom_call.1} parent=115 // pred_check_branch
          %724 = sbr.rel (%p722) target = $region120
        $region119: #{tpu_custom_call.1} parent=115 // pred_region
          %725 = dma.done [#allocation17], 8192
        $region120: #{tpu_custom_call.1} parent=115 // pred_fallthru
          _
        // Predicated region
        $region121: #{tpu_custom_call.1} parent=115 // pred_check
          %p726 = pneg %p353
        $region122: #{tpu_custom_call.1} parent=115 // pred_check_branch
          %728 = sbr.rel (%p726) target = $region124
        $region123: #{tpu_custom_call.1} parent=115 // pred_region
          %729 = dma.done [#allocation20], 32768
        $region124: #{tpu_custom_call.1} parent=115 // pred_fallthru
          _
        // Predicated region
        $region125: #{tpu_custom_call.1} parent=115 // pred_check
          %p730 = pneg %p437
        $region126: #{tpu_custom_call.1} parent=115 // pred_check_branch
          %732 = sbr.rel (%p730) target = $region128
        $region127: #{tpu_custom_call.1} parent=115 // pred_region
          %733 = dma.done [#allocation20], 8192
        $region128: #{tpu_custom_call.1} parent=115 // pred_fallthru
          _
        %s734 = smul.u32 4, %s45
        %p735 = scmp.lt.s32.totalorder %s44, 3
        %s736 = scalar_select %p735, %s44, 3
        %p737 = scmp.lt.s32.totalorder %s734, 15
        %s738 = scalar_select %p737, %s734, 15
        %s739 = smul.addr %s736, 16
        %s740 = sadd.s32 %s738, %s739
        %s741 = smul.addr %s740, 4
        %s742 = scalar_lea.vmem %s0, %s741
        %p743 = pneg %p80
        %p744 = pneg %p77
        %p745 = pneg %p101
        %p746 = pneg %p98
        %p747 = pneg %p122
        %p748 = pneg %p119
        %p749 = pneg %p143
        %p750 = pneg %p140
        %p751 = pneg %p164
        %p752 = pneg %p161
        %p753 = pneg %p185
        %p754 = pneg %p182
        %p755 = pneg %p206
        %p756 = pneg %p203
        %p757 = pneg %p227
        %p758 = pneg %p224
        %p759 = pneg %p248
        %p760 = pneg %p245
        %p761 = pneg %p269
        %p762 = pneg %p266
        %p763 = pneg %p290
        %p764 = pneg %p287
        %p765 = pneg %p311
        %p766 = pneg %p308
        %p767 = pneg %p332
        %p768 = pneg %p329
        %p769 = pneg %p353
        %p770 = pneg %p350
        %p771 = pneg %p374
        %p772 = pneg %p371
        %p773 = pneg %p395
        %p774 = pneg %p392
        %p775 = pneg %p416
        %p776 = pneg %p413
        %p777 = pneg %p437
        %p778 = pneg %p434
        %p779 = pneg %p458
        %p780 = pneg %p455
        %p781 = pneg %p479
        %p782 = pneg %p476
        %p783 = pneg %p500
        %p784 = pneg %p497
        %p785 = pneg %p521
        %p786 = pneg %p518
        %p787 = pneg %p542
        %p788 = pneg %p539
        %p789 = pneg %p563
        %p790 = pneg %p560
        %p791 = pneg %p584
        %p792 = pneg %p581
        %s793 = smul.u32 4, %s45
        %p794 = scmp.lt.s32.totalorder %s44, 3
        %s795 = scalar_select %p794, %s44, 3
        %p796 = scmp.lt.s32.totalorder %s793, 15
        %s797 = scalar_select %p796, %s793, 15
        %s798 = smul.addr %s795, 16
        %s799 = sadd.s32 %s797, %s798
        %s800 = smul.addr %s799, 4
        %s801 = scalar_lea.vmem %s0, %s800
        %s802 = smul.u32 4, %s45
        %p804 = scmp.eq.s32.totalorder %s44, 0
        %p805 = scmp.eq.s32.totalorder %s45, 0
        %p806 = pnand %p804, %p805
        %p807 = pneg %p806
        %p808 = scmp.eq.s32.totalorder %s44, 3
        %p809 = scmp.eq.s32.totalorder %s45, 3
        %p810 = pnand %p808, %p809
        %p811 = pneg %p810
        %v812 = vld [vmem:[%s801] sm:$0xf]
        %v813 = vld [vmem:[%s801 + $0x4] sm:$0xf]
        %v814 = vld [vmem:[%s801 + $0x8] sm:$0xf]
        %v815 = vld [vmem:[%s801 + $0xc] sm:$0xf]
        %p816 = scmp.eq.s32.totalorder %s43, 0
        // Predicated region
        $region129: #{tpu_custom_call.1} parent=115 // pred_check
          %p817 = pneg %p816
        $region130: #{tpu_custom_call.1} parent=115 // pred_check_branch
          %819 = sbr.rel (%p817) target = $region132
        $region131: #{tpu_custom_call.1} parent=115 // pred_region
          // Predicated region
          $region133: #{tpu_custom_call.1} parent=131 // pred_check
            _
          $region134: #{tpu_custom_call.1} parent=131 // pred_check_branch
            %821 = sbr.rel (%p806) target = $region136
          $region135: #{tpu_custom_call.1} parent=131 // pred_region
            %822 = vst [vmem:[#allocation2] sm:$0x1] 0.0
            %823 = vst [vmem:[#allocation3] sm:$0x1] 0.0
          $region136: #{tpu_custom_call.1} parent=131 // pred_fallthru
            _
          %v824 = vld [vmem:[%s1] sm:$0xf]
          %v825 = vld [vmem:[%s2] sm:$0x1]
          %v827 = vlaneseq
          %v828 = vshrl.u32 %v827, 7
          %v829 = vsub.s32 0, %v828
          %v830 = vrot.slane %v825, %v829
          %v836 = vunpack.c.l.b16 %v812
          %v837 = vunpack.c.l.b16 %v813
          %v838 = vunpack.c.l.b16 %v814
          %v839 = vunpack.c.l.b16 %v815
          %v840 = vpack.c.b16 %v837, %v836
          %v841 = vpack.c.b16 %v839, %v838
          %vm842 = vcmask 64512
          %v844 = vsel %vm842, %v840, 0
          %v847 = vsel %vm842, %v841, 0
          %vm849 = vcmask 1043456
          %v851 = vsel %vm849, %v824, 0
          %853 = vmatprep.subr.bf16.mxu0 0
          %854 = vmatpush1.bf16.msra.mxu0 0
          %855 = vmatprep.subr.bf16.mxu0 0
          %856 = vmatpush1.bf16.msra.mxu0 0
          %857 = vmatprep.subr.bf16.mxu0 0
          %858 = vmatpush1.bf16.msra.mxu0 0
          %859 = vmatprep.subr.bf16.mxu0 0
          %860 = vmatpush1.bf16.msra.mxu0 0
          %861 = vmatprep.subr.bf16.mxu0 0
          %862 = vmatpush1.bf16.msra.mxu0 0
          %863 = vmatprep.subr.bf16.mxu0 0
          %864 = vmatpush1.bf16.msra.mxu0 0
          %865 = vmatprep.subr.bf16.mxu0 0
          %866 = vmatpush1.bf16.msra.mxu0 0
          %867 = vmatprep.subr.bf16.mxu0 0
          %868 = vmatpush1.bf16.msra.mxu0 %v851
          %869 = vmatprep.subr.bf16.mxu0 0
          %870 = vmatpush2.bf16.msra.mxu0 0
          %871 = vmatprep.subr.bf16.mxu0 0
          %872 = vmatpush2.bf16.msra.mxu0 0
          %873 = vmatprep.subr.bf16.mxu0 0
          %874 = vmatpush2.bf16.msra.mxu0 0
          %875 = vmatprep.subr.bf16.mxu0 0
          %876 = vmatpush2.bf16.msra.mxu0 0
          %877 = vmatprep.subr.bf16.mxu0 0
          %878 = vmatpush2.bf16.msra.mxu0 0
          %879 = vmatprep.subr.bf16.mxu0 0
          %880 = vmatpush2.bf16.msra.mxu0 0
          %881 = vmatprep.subr.bf16.mxu0 0
          %882 = vmatpush2.bf16.msra.mxu0 0
          %883 = vmatprep.subr.bf16.mxu0 0
          %884 = vmatpush2.bf16.msra.mxu0 0
          %885 = vmatprep.mubr.bf16.mxu0 0
          %886 = vmatmul.mubr.bf16.gmra.mxu0 %v844
          %v887 = vpop.f32.mrf.mxu0
          %v888 = vadd.f32 %v830, %v887
          %v889 = vpop.f32.mrf.mxu0
          %v890 = vpop.f32.mrf.mxu0
          %v891 = vadd.f32 %v830, %v890
          %v892 = vpop.f32.mrf.mxu0
          %893 = vmatprep.mubr.bf16.mxu0 0
          %894 = vmatmul.mubr.bf16.gmra.mxu0 %v847
          %v895 = vpop.f32.mrf.mxu0
          %v896 = vadd.f32 %v830, %v895
          %v897 = vpop.f32.mrf.mxu0
          %v898 = vpop.f32.mrf.mxu0
          %v899 = vadd.f32 %v830, %v898
          %v900 = vpop.f32.mrf.mxu0
          %901 = vdwg.mxu0
          %v902 = vmax.f32 %v888, 0.0
          %v903 = vmax.f32 %v891, 0.0
          %v904 = vmax.f32 %v896, 0.0
          %v905 = vmax.f32 %v899, 0.0
          %v906 = vld [vmem:[#allocation2] sm:$0x1]
          %v907 = vadd.f32 %v902, %v903
          %v908 = vadd.f32 %v907, %v904
          %v909 = vadd.f32 %v908, %v905
          %v910 = vrot.slane %v909, 4
          %v911 = vadd.f32 %v909, %v910
          %v912 = vrot.slane %v911, 2
          %v913 = vadd.f32 %v911, %v912
          %v914 = vrot.slane %v913, 1
          %v915 = vadd.f32 %v913, %v914
          %v916 = vadd.f32 %v906, %v915
          %917 = vst [vmem:[#allocation2] sm:$0x1] %v916
          %v918 = vld [vmem:[#allocation3] sm:$0x1]
          %v919 = vmul.f32 %v902, %v902
          %v920 = vmul.f32 %v903, %v903
          %v921 = vmul.f32 %v904, %v904
          %v922 = vmul.f32 %v905, %v905
          %v923 = vadd.f32 %v919, %v920
          %v924 = vadd.f32 %v923, %v921
          %v925 = vadd.f32 %v924, %v922
          %v926 = vrot.slane %v925, 4
          %v927 = vadd.f32 %v925, %v926
          %v928 = vrot.slane %v927, 2
          %v929 = vadd.f32 %v927, %v928
          %v930 = vrot.slane %v929, 1
          %v931 = vadd.f32 %v929, %v930
          %v932 = vadd.f32 %v918, %v931
          %933 = vst [vmem:[#allocation3] sm:$0x1] %v932
          // Predicated region
          $region137: #{tpu_custom_call.1} parent=131 // pred_check
            _
          $region138: #{tpu_custom_call.1} parent=131 // pred_check_branch
            %935 = sbr.rel (%p810) target = $region140
          $region139: #{tpu_custom_call.1} parent=131 // pred_region
            %v936 = vld [vmem:[#allocation2] sm:$0x1]
            %v937 = vld [vmem:[#allocation3] sm:$0x1]
            %v938 = vld [vmem:[%s3] sm:$0x1]
            %v939 = vld [vmem:[%s4] sm:$0x1]
            %v940 = vmul.f32 %v936, 0.001953125
            %v941 = vmul.f32 %v937, 0.001953125
            %v942 = vmul.f32 %v940, %v940
            %v943 = vsub.f32 %v941, %v942
            %v944 = vadd.f32 %v943, 1e-05
            %v945 = vrsqrt.pop %v944
            %v946 = vmul.f32 %v938, %v945
            %v947 = vmul.f32 %v940, %v946
            %v948 = vsub.f32 %v939, %v947
            %949 = vst [vmem:[#allocation4] sm:$0x1] %v946
            %950 = vst [vmem:[#allocation5] sm:$0x1] %v948
          $region140: #{tpu_custom_call.1} parent=131 // pred_fallthru
            _
        $region132: #{tpu_custom_call.1} parent=115 // pred_fallthru
          _
        %p951 = scmp.eq.s32.totalorder %s43, 1
        // Predicated region
        $region141: #{tpu_custom_call.1} parent=115 // pred_check
          %p952 = pneg %p951
        $region142: #{tpu_custom_call.1} parent=115 // pred_check_branch
          %954 = sbr.rel (%p952) target = $region144
        $region143: #{tpu_custom_call.1} parent=115 // pred_region
          // Predicated region
          $region145: #{tpu_custom_call.1} parent=143 // pred_check
            _
          $region146: #{tpu_custom_call.1} parent=143 // pred_check_branch
            %956 = sbr.rel (%p806) target = $region148
          $region147: #{tpu_custom_call.1} parent=143 // pred_region
            %957 = vst [vmem:[#allocation6] sm:$0x1] 0.0
            %958 = vst [vmem:[#allocation7] sm:$0x1] 0.0
          $region148: #{tpu_custom_call.1} parent=143 // pred_fallthru
            _
          %v959 = vld [vmem:[%s1] sm:$0xf]
          %v960 = vld [vmem:[%s2] sm:$0x1]
          %v962 = vlaneseq
          %v963 = vshrl.u32 %v962, 7
          %v964 = vsub.s32 0, %v963
          %v965 = vrot.slane %v960, %v964
          %v971 = vunpack.c.l.b16 %v812
          %v972 = vunpack.c.l.b16 %v813
          %v973 = vunpack.c.l.b16 %v814
          %v974 = vunpack.c.l.b16 %v815
          %v975 = vpack.c.b16 %v972, %v971
          %v976 = vpack.c.b16 %v974, %v973
          %vm977 = vcmask 64512
          %v979 = vsel %vm977, %v975, 0
          %v982 = vsel %vm977, %v976, 0
          %vm984 = vcmask 1043456
          %v986 = vsel %vm984, %v959, 0
          %988 = vmatprep.subr.bf16.mxu0 0
          %989 = vmatpush1.bf16.msra.mxu0 0
          %990 = vmatprep.subr.bf16.mxu0 0
          %991 = vmatpush1.bf16.msra.mxu0 0
          %992 = vmatprep.subr.bf16.mxu0 0
          %993 = vmatpush1.bf16.msra.mxu0 0
          %994 = vmatprep.subr.bf16.mxu0 0
          %995 = vmatpush1.bf16.msra.mxu0 0
          %996 = vmatprep.subr.bf16.mxu0 0
          %997 = vmatpush1.bf16.msra.mxu0 0
          %998 = vmatprep.subr.bf16.mxu0 0
          %999 = vmatpush1.bf16.msra.mxu0 0
          %1000 = vmatprep.subr.bf16.mxu0 0
          %1001 = vmatpush1.bf16.msra.mxu0 0
          %1002 = vmatprep.subr.bf16.mxu0 0
          %1003 = vmatpush1.bf16.msra.mxu0 %v986
          %1004 = vmatprep.subr.bf16.mxu0 0
          %1005 = vmatpush2.bf16.msra.mxu0 0
          %1006 = vmatprep.subr.bf16.mxu0 0
          %1007 = vmatpush2.bf16.msra.mxu0 0
          %1008 = vmatprep.subr.bf16.mxu0 0
          %1009 = vmatpush2.bf16.msra.mxu0 0
          %1010 = vmatprep.subr.bf16.mxu0 0
          %1011 = vmatpush2.bf16.msra.mxu0 0
          %1012 = vmatprep.subr.bf16.mxu0 0
          %1013 = vmatpush2.bf16.msra.mxu0 0
          %1014 = vmatprep.subr.bf16.mxu0 0
          %1015 = vmatpush2.bf16.msra.mxu0 0
          %1016 = vmatprep.subr.bf16.mxu0 0
          %1017 = vmatpush2.bf16.msra.mxu0 0
          %1018 = vmatprep.subr.bf16.mxu0 0
          %1019 = vmatpush2.bf16.msra.mxu0 0
          %1020 = vmatprep.mubr.bf16.mxu0 0
          %1021 = vmatmul.mubr.bf16.gmra.mxu0 %v979
          %v1022 = vpop.f32.mrf.mxu0
          %v1023 = vadd.f32 %v965, %v1022
          %v1024 = vpop.f32.mrf.mxu0
          %v1025 = vpop.f32.mrf.mxu0
          %v1026 = vadd.f32 %v965, %v1025
          %v1027 = vpop.f32.mrf.mxu0
          %1028 = vmatprep.mubr.bf16.mxu0 0
          %1029 = vmatmul.mubr.bf16.gmra.mxu0 %v982
          %v1030 = vpop.f32.mrf.mxu0
          %v1031 = vadd.f32 %v965, %v1030
          %v1032 = vpop.f32.mrf.mxu0
          %v1033 = vpop.f32.mrf.mxu0
          %v1034 = vadd.f32 %v965, %v1033
          %v1035 = vpop.f32.mrf.mxu0
          %1036 = vdwg.mxu0
          %v1037 = vmax.f32 %v1023, 0.0
          %v1038 = vmax.f32 %v1026, 0.0
          %v1039 = vmax.f32 %v1031, 0.0
          %v1040 = vmax.f32 %v1034, 0.0
          %v1041 = vld [vmem:[#allocation4] sm:$0x1]
          %v1043 = vlaneseq
          %v1044 = vshrl.u32 %v1043, 7
          %v1045 = vsub.s32 0, %v1044
          %v1046 = vrot.slane %v1041, %v1045
          %v1048 = vmul.f32 %v1037, %v1046
          %v1049 = vmul.f32 %v1038, %v1046
          %v1050 = vmul.f32 %v1039, %v1046
          %v1051 = vmul.f32 %v1040, %v1046
          %v1052 = vld [vmem:[#allocation5] sm:$0x1]
          %v1054 = vlaneseq
          %v1055 = vshrl.u32 %v1054, 7
          %v1056 = vsub.s32 0, %v1055
          %v1057 = vrot.slane %v1052, %v1056
          %v1059 = vadd.f32 %v1048, %v1057
          %v1060 = vadd.f32 %v1049, %v1057
          %v1061 = vadd.f32 %v1050, %v1057
          %v1062 = vadd.f32 %v1051, %v1057
          %v1063 = vpack.c.bf16 %v1060, %v1059
          %v1064 = vpack.c.bf16 %v1062, %v1061
          %v1065 = vld [vmem:[%s5] sm:$0xf]
          %v1066 = vld [vmem:[%s5 + $0x4] sm:$0xf]
          %v1067 = vld [vmem:[%s5 + $0x8] sm:$0xf]
          %v1068 = vld [vmem:[%s5 + $0xc] sm:$0xf]
          %v1069 = vld [vmem:[%s5 + $0x10] sm:$0xf]
          %v1070 = vld [vmem:[%s5 + $0x14] sm:$0xf]
          %v1071 = vld [vmem:[%s5 + $0x18] sm:$0xf]
          %v1072 = vld [vmem:[%s5 + $0x1c] sm:$0xf]
          %v1073 = vld [vmem:[%s5 + $0x20] sm:$0xf]
          %v1074 = vld [vmem:[%s5 + $0x24] sm:$0xf]
          %v1075 = vld [vmem:[%s5 + $0x28] sm:$0xf]
          %v1076 = vld [vmem:[%s5 + $0x2c] sm:$0xf]
          %v1077 = vld [vmem:[%s5 + $0x30] sm:$0xf]
          %v1078 = vld [vmem:[%s5 + $0x34] sm:$0xf]
          %v1079 = vld [vmem:[%s5 + $0x38] sm:$0xf]
          %v1080 = vld [vmem:[%s5 + $0x3c] sm:$0xf]
          %v1081 = vld [vmem:[%s6] sm:$0x1]
          %v1083 = vlaneseq
          %v1084 = vshrl.u32 %v1083, 7
          %v1085 = vsub.s32 0, %v1084
          %v1086 = vrot.slane %v1081, %v1085
          %v1104 = vunpack.c.l.b16 %v1065
          %v1105 = vunpack.c.l.b16 %v1066
          %v1106 = vunpack.c.l.b16 %v1067
          %v1107 = vunpack.c.l.b16 %v1068
          %v1108 = vunpack.c.l.b16 %v1069
          %v1109 = vunpack.c.l.b16 %v1070
          %v1110 = vunpack.c.l.b16 %v1071
          %v1111 = vunpack.c.l.b16 %v1072
          %v1112 = vunpack.c.l.b16 %v1073
          %v1113 = vunpack.c.l.b16 %v1074
          %v1114 = vunpack.c.l.b16 %v1075
          %v1115 = vunpack.c.l.b16 %v1076
          %v1116 = vunpack.c.l.b16 %v1077
          %v1117 = vunpack.c.l.b16 %v1078
          %v1118 = vunpack.c.l.b16 %v1079
          %v1119 = vunpack.c.l.b16 %v1080
          %v1120 = vpack.c.b16 %v1105, %v1104
          %v1121 = vpack.c.b16 %v1107, %v1106
          %v1122 = vpack.c.b16 %v1109, %v1108
          %v1123 = vpack.c.b16 %v1111, %v1110
          %v1124 = vpack.c.b16 %v1113, %v1112
          %v1125 = vpack.c.b16 %v1115, %v1114
          %v1126 = vpack.c.b16 %v1117, %v1116
          %v1127 = vpack.c.b16 %v1119, %v1118
          %1136 = vmatprep.subr.bf16.mxu0 0
          %1137 = vmatpush1.bf16.msra.mxu0 %v1127
          %1138 = vmatprep.subr.bf16.mxu0 0
          %1139 = vmatpush1.bf16.msra.mxu0 %v1126
          %1140 = vmatprep.subr.bf16.mxu0 0
          %1141 = vmatpush1.bf16.msra.mxu0 %v1125
          %1142 = vmatprep.subr.bf16.mxu0 0
          %1143 = vmatpush1.bf16.msra.mxu0 %v1124
          %1144 = vmatprep.subr.bf16.mxu0 0
          %1145 = vmatpush1.bf16.msra.mxu0 %v1123
          %1146 = vmatprep.subr.bf16.mxu0 0
          %1147 = vmatpush1.bf16.msra.mxu0 %v1122
          %1148 = vmatprep.subr.bf16.mxu0 0
          %1149 = vmatpush1.bf16.msra.mxu0 %v1121
          %1150 = vmatprep.subr.bf16.mxu0 0
          %1151 = vmatpush1.bf16.msra.mxu0 %v1120
          %1152 = vmatprep.subr.bf16.mxu0 0
          %1153 = vmatpush2.bf16.msra.mxu0 0
          %1154 = vmatprep.subr.bf16.mxu0 0
          %1155 = vmatpush2.bf16.msra.mxu0 0
          %1156 = vmatprep.subr.bf16.mxu0 0
          %1157 = vmatpush2.bf16.msra.mxu0 0
          %1158 = vmatprep.subr.bf16.mxu0 0
          %1159 = vmatpush2.bf16.msra.mxu0 0
          %1160 = vmatprep.subr.bf16.mxu0 0
          %1161 = vmatpush2.bf16.msra.mxu0 0
          %1162 = vmatprep.subr.bf16.mxu0 0
          %1163 = vmatpush2.bf16.msra.mxu0 0
          %1164 = vmatprep.subr.bf16.mxu0 0
          %1165 = vmatpush2.bf16.msra.mxu0 0
          %1166 = vmatprep.subr.bf16.mxu0 0
          %1167 = vmatpush2.bf16.msra.mxu0 0
          %1168 = vmatprep.mubr.bf16.mxu0 0
          %1169 = vmatmul.mubr.bf16.gmra.mxu0 %v1063
          %v1170 = vpop.f32.mrf.mxu0
          %v1171 = vadd.f32 %v1086, %v1170
          %v1172 = vpop.f32.mrf.mxu0
          %v1173 = vpop.f32.mrf.mxu0
          %v1174 = vadd.f32 %v1086, %v1173
          %v1175 = vpop.f32.mrf.mxu0
          %1176 = vmatprep.mubr.bf16.mxu0 0
          %1177 = vmatmul.mubr.bf16.gmra.mxu0 %v1064
          %v1178 = vpop.f32.mrf.mxu0
          %v1179 = vadd.f32 %v1086, %v1178
          %v1180 = vpop.f32.mrf.mxu0
          %v1181 = vpop.f32.mrf.mxu0
          %v1182 = vadd.f32 %v1086, %v1181
          %v1183 = vpop.f32.mrf.mxu0
          %1184 = vdwg.mxu0
          %v1185 = vmax.f32 %v1171, 0.0
          %v1186 = vmax.f32 %v1174, 0.0
          %v1187 = vmax.f32 %v1179, 0.0
          %v1188 = vmax.f32 %v1182, 0.0
          %v1189 = vld [vmem:[#allocation6] sm:$0x1]
          %v1190 = vadd.f32 %v1185, %v1186
          %v1191 = vadd.f32 %v1190, %v1187
          %v1192 = vadd.f32 %v1191, %v1188
          %v1193 = vrot.slane %v1192, 4
          %v1194 = vadd.f32 %v1192, %v1193
          %v1195 = vrot.slane %v1194, 2
          %v1196 = vadd.f32 %v1194, %v1195
          %v1197 = vrot.slane %v1196, 1
          %v1198 = vadd.f32 %v1196, %v1197
          %v1199 = vadd.f32 %v1189, %v1198
          %1200 = vst [vmem:[#allocation6] sm:$0x1] %v1199
          %v1201 = vld [vmem:[#allocation7] sm:$0x1]
          %v1202 = vmul.f32 %v1185, %v1185
          %v1203 = vmul.f32 %v1186, %v1186
          %v1204 = vmul.f32 %v1187, %v1187
          %v1205 = vmul.f32 %v1188, %v1188
          %v1206 = vadd.f32 %v1202, %v1203
          %v1207 = vadd.f32 %v1206, %v1204
          %v1208 = vadd.f32 %v1207, %v1205
          %v1209 = vrot.slane %v1208, 4
          %v1210 = vadd.f32 %v1208, %v1209
          %v1211 = vrot.slane %v1210, 2
          %v1212 = vadd.f32 %v1210, %v1211
          %v1213 = vrot.slane %v1212, 1
          %v1214 = vadd.f32 %v1212, %v1213
          %v1215 = vadd.f32 %v1201, %v1214
          %1216 = vst [vmem:[#allocation7] sm:$0x1] %v1215
          // Predicated region
          $region149: #{tpu_custom_call.1} parent=143 // pred_check
            _
          $region150: #{tpu_custom_call.1} parent=143 // pred_check_branch
            %1218 = sbr.rel (%p810) target = $region152
          $region151: #{tpu_custom_call.1} parent=143 // pred_region
            %v1219 = vld [vmem:[#allocation6] sm:$0x1]
            %v1220 = vld [vmem:[#allocation7] sm:$0x1]
            %v1221 = vld [vmem:[%s7] sm:$0x1]
            %v1222 = vld [vmem:[%s8] sm:$0x1]
            %v1223 = vmul.f32 %v1219, 0.001953125
            %v1224 = vmul.f32 %v1220, 0.001953125
            %v1225 = vmul.f32 %v1223, %v1223
            %v1226 = vsub.f32 %v1224, %v1225
            %v1227 = vadd.f32 %v1226, 1e-05
            %v1228 = vrsqrt.pop %v1227
            %v1229 = vmul.f32 %v1221, %v1228
            %v1230 = vmul.f32 %v1223, %v1229
            %v1231 = vsub.f32 %v1222, %v1230
            %1232 = vst [vmem:[#allocation8] sm:$0x1] %v1229
            %1233 = vst [vmem:[#allocation9] sm:$0x1] %v1231
          $region152: #{tpu_custom_call.1} parent=143 // pred_fallthru
            _
        $region144: #{tpu_custom_call.1} parent=115 // pred_fallthru
          _
        %p1234 = scmp.eq.s32.totalorder %s43, 2
        // Predicated region
        $region153: #{tpu_custom_call.1} parent=115 // pred_check
          %p1235 = pneg %p1234
        $region154: #{tpu_custom_call.1} parent=115 // pred_check_branch
          %1237 = sbr.rel (%p1235) target = $region156
        $region155: #{tpu_custom_call.1} parent=115 // pred_region
          // Predicated region
          $region157: #{tpu_custom_call.1} parent=155 // pred_check
            _
          $region158: #{tpu_custom_call.1} parent=155 // pred_check_branch
            %1239 = sbr.rel (%p806) target = $region160
          $region159: #{tpu_custom_call.1} parent=155 // pred_region
            %1240 = vst [vmem:[#allocation10] sm:$0xff] 0.0
            %1241 = vst [vmem:[#allocation11] sm:$0xff] 0.0
            %1242 = vst [vmem:[#allocation14] sm:$0xff] 0.0
            %1243 = vst [vmem:[#allocation14 + $0x8] sm:$0xff] 0.0
            %1244 = vst [vmem:[#allocation14 + $0x10] sm:$0xff] 0.0
            %1245 = vst [vmem:[#allocation14 + $0x18] sm:$0xff] 0.0
            %1246 = vst [vmem:[#allocation15] sm:$0xff] 0.0
            %1247 = vst [vmem:[#allocation15 + $0x8] sm:$0xff] 0.0
            %1248 = vst [vmem:[#allocation15 + $0x10] sm:$0xff] 0.0
            %1249 = vst [vmem:[#allocation15 + $0x18] sm:$0xff] 0.0
          $region160: #{tpu_custom_call.1} parent=155 // pred_fallthru
            _
          %v1250 = vld [vmem:[%s1] sm:$0xf]
          %v1251 = vld [vmem:[%s2] sm:$0x1]
          %v1253 = vlaneseq
          %v1254 = vshrl.u32 %v1253, 7
          %v1255 = vsub.s32 0, %v1254
          %v1256 = vrot.slane %v1251, %v1255
          %v1262 = vunpack.c.l.b16 %v812
          %v1263 = vunpack.c.l.b16 %v813
          %v1264 = vunpack.c.l.b16 %v814
          %v1265 = vunpack.c.l.b16 %v815
          %v1266 = vpack.c.b16 %v1263, %v1262
          %v1267 = vpack.c.b16 %v1265, %v1264
          %vm1268 = vcmask 64512
          %v1270 = vsel %vm1268, %v1266, 0
          %v1273 = vsel %vm1268, %v1267, 0
          %vm1275 = vcmask 1043456
          %v1277 = vsel %vm1275, %v1250, 0
          %1279 = vmatprep.subr.bf16.mxu0 0
          %1280 = vmatpush1.bf16.msra.mxu0 0
          %1281 = vmatprep.subr.bf16.mxu0 0
          %1282 = vmatpush1.bf16.msra.mxu0 0
          %1283 = vmatprep.subr.bf16.mxu0 0
          %1284 = vmatpush1.bf16.msra.mxu0 0
          %1285 = vmatprep.subr.bf16.mxu0 0
          %1286 = vmatpush1.bf16.msra.mxu0 0
          %1287 = vmatprep.subr.bf16.mxu0 0
          %1288 = vmatpush1.bf16.msra.mxu0 0
          %1289 = vmatprep.subr.bf16.mxu0 0
          %1290 = vmatpush1.bf16.msra.mxu0 0
          %1291 = vmatprep.subr.bf16.mxu0 0
          %1292 = vmatpush1.bf16.msra.mxu0 0
          %1293 = vmatprep.subr.bf16.mxu0 0
          %1294 = vmatpush1.bf16.msra.mxu0 %v1277
          %1295 = vmatprep.subr.bf16.mxu0 0
          %1296 = vmatpush2.bf16.msra.mxu0 0
          %1297 = vmatprep.subr.bf16.mxu0 0
          %1298 = vmatpush2.bf16.msra.mxu0 0
          %1299 = vmatprep.subr.bf16.mxu0 0
          %1300 = vmatpush2.bf16.msra.mxu0 0
          %1301 = vmatprep.subr.bf16.mxu0 0
          %1302 = vmatpush2.bf16.msra.mxu0 0
          %1303 = vmatprep.subr.bf16.mxu0 0
          %1304 = vmatpush2.bf16.msra.mxu0 0
          %1305 = vmatprep.subr.bf16.mxu0 0
          %1306 = vmatpush2.bf16.msra.mxu0 0
          %1307 = vmatprep.subr.bf16.mxu0 0
          %1308 = vmatpush2.bf16.msra.mxu0 0
          %1309 = vmatprep.subr.bf16.mxu0 0
          %1310 = vmatpush2.bf16.msra.mxu0 0
          %1311 = vmatprep.mubr.bf16.mxu0 0
          %1312 = vmatmul.mubr.bf16.gmra.mxu0 %v1270
          %v1313 = vpop.f32.mrf.mxu0
          %v1314 = vadd.f32 %v1256, %v1313
          %v1315 = vpop.f32.mrf.mxu0
          %v1316 = vpop.f32.mrf.mxu0
          %v1317 = vadd.f32 %v1256, %v1316
          %v1318 = vpop.f32.mrf.mxu0
          %1319 = vmatprep.mubr.bf16.mxu0 0
          %1320 = vmatmul.mubr.bf16.gmra.mxu0 %v1273
          %v1321 = vpop.f32.mrf.mxu0
          %v1322 = vadd.f32 %v1256, %v1321
          %v1323 = vpop.f32.mrf.mxu0
          %v1324 = vpop.f32.mrf.mxu0
          %v1325 = vadd.f32 %v1256, %v1324
          %v1326 = vpop.f32.mrf.mxu0
          %1327 = vdwg.mxu0
          %v1328 = vmax.f32 %v1314, 0.0
          %v1329 = vmax.f32 %v1317, 0.0
          %v1330 = vmax.f32 %v1322, 0.0
          %v1331 = vmax.f32 %v1325, 0.0
          %v1332 = vld [vmem:[#allocation4] sm:$0x1]
          %v1334 = vlaneseq
          %v1335 = vshrl.u32 %v1334, 7
          %v1336 = vsub.s32 0, %v1335
          %v1337 = vrot.slane %v1332, %v1336
          %v1339 = vmul.f32 %v1328, %v1337
          %v1340 = vmul.f32 %v1329, %v1337
          %v1341 = vmul.f32 %v1330, %v1337
          %v1342 = vmul.f32 %v1331, %v1337
          %v1343 = vld [vmem:[#allocation5] sm:$0x1]
          %v1345 = vlaneseq
          %v1346 = vshrl.u32 %v1345, 7
          %v1347 = vsub.s32 0, %v1346
          %v1348 = vrot.slane %v1343, %v1347
          %v1350 = vadd.f32 %v1339, %v1348
          %v1351 = vadd.f32 %v1340, %v1348
          %v1352 = vadd.f32 %v1341, %v1348
          %v1353 = vadd.f32 %v1342, %v1348
          %v1354 = vpack.c.bf16 %v1351, %v1350
          %v1355 = vpack.c.bf16 %v1353, %v1352
          %v1356 = vld [vmem:[%s5] sm:$0xf]
          %v1357 = vld [vmem:[%s5 + $0x4] sm:$0xf]
          %v1358 = vld [vmem:[%s5 + $0x8] sm:$0xf]
          %v1359 = vld [vmem:[%s5 + $0xc] sm:$0xf]
          %v1360 = vld [vmem:[%s5 + $0x10] sm:$0xf]
          %v1361 = vld [vmem:[%s5 + $0x14] sm:$0xf]
          %v1362 = vld [vmem:[%s5 + $0x18] sm:$0xf]
          %v1363 = vld [vmem:[%s5 + $0x1c] sm:$0xf]
          %v1364 = vld [vmem:[%s5 + $0x20] sm:$0xf]
          %v1365 = vld [vmem:[%s5 + $0x24] sm:$0xf]
          %v1366 = vld [vmem:[%s5 + $0x28] sm:$0xf]
          %v1367 = vld [vmem:[%s5 + $0x2c] sm:$0xf]
          %v1368 = vld [vmem:[%s5 + $0x30] sm:$0xf]
          %v1369 = vld [vmem:[%s5 + $0x34] sm:$0xf]
          %v1370 = vld [vmem:[%s5 + $0x38] sm:$0xf]
          %v1371 = vld [vmem:[%s5 + $0x3c] sm:$0xf]
          %v1372 = vld [vmem:[%s6] sm:$0x1]
          %v1374 = vlaneseq
          %v1375 = vshrl.u32 %v1374, 7
          %v1376 = vsub.s32 0, %v1375
          %v1377 = vrot.slane %v1372, %v1376
          %v1395 = vunpack.c.l.b16 %v1356
          %v1396 = vunpack.c.l.b16 %v1357
          %v1397 = vunpack.c.l.b16 %v1358
          %v1398 = vunpack.c.l.b16 %v1359
          %v1399 = vunpack.c.l.b16 %v1360
          %v1400 = vunpack.c.l.b16 %v1361
          %v1401 = vunpack.c.l.b16 %v1362
          %v1402 = vunpack.c.l.b16 %v1363
          %v1403 = vunpack.c.l.b16 %v1364
          %v1404 = vunpack.c.l.b16 %v1365
          %v1405 = vunpack.c.l.b16 %v1366
          %v1406 = vunpack.c.l.b16 %v1367
          %v1407 = vunpack.c.l.b16 %v1368
          %v1408 = vunpack.c.l.b16 %v1369
          %v1409 = vunpack.c.l.b16 %v1370
          %v1410 = vunpack.c.l.b16 %v1371
          %v1411 = vpack.c.b16 %v1396, %v1395
          %v1412 = vpack.c.b16 %v1398, %v1397
          %v1413 = vpack.c.b16 %v1400, %v1399
          %v1414 = vpack.c.b16 %v1402, %v1401
          %v1415 = vpack.c.b16 %v1404, %v1403
          %v1416 = vpack.c.b16 %v1406, %v1405
          %v1417 = vpack.c.b16 %v1408, %v1407
          %v1418 = vpack.c.b16 %v1410, %v1409
          %1427 = vmatprep.subr.bf16.mxu0 0
          %1428 = vmatpush1.bf16.msra.mxu0 %v1418
          %1429 = vmatprep.subr.bf16.mxu0 0
          %1430 = vmatpush1.bf16.msra.mxu0 %v1417
          %1431 = vmatprep.subr.bf16.mxu0 0
          %1432 = vmatpush1.bf16.msra.mxu0 %v1416
          %1433 = vmatprep.subr.bf16.mxu0 0
          %1434 = vmatpush1.bf16.msra.mxu0 %v1415
          %1435 = vmatprep.subr.bf16.mxu0 0
          %1436 = vmatpush1.bf16.msra.mxu0 %v1414
          %1437 = vmatprep.subr.bf16.mxu0 0
          %1438 = vmatpush1.bf16.msra.mxu0 %v1413
          %1439 = vmatprep.subr.bf16.mxu0 0
          %1440 = vmatpush1.bf16.msra.mxu0 %v1412
          %1441 = vmatprep.subr.bf16.mxu0 0
          %1442 = vmatpush1.bf16.msra.mxu0 %v1411
          %1443 = vmatprep.subr.bf16.mxu0 0
          %1444 = vmatpush2.bf16.msra.mxu0 0
          %1445 = vmatprep.subr.bf16.mxu0 0
          %1446 = vmatpush2.bf16.msra.mxu0 0
          %1447 = vmatprep.subr.bf16.mxu0 0
          %1448 = vmatpush2.bf16.msra.mxu0 0
          %1449 = vmatprep.subr.bf16.mxu0 0
          %1450 = vmatpush2.bf16.msra.mxu0 0
          %1451 = vmatprep.subr.bf16.mxu0 0
          %1452 = vmatpush2.bf16.msra.mxu0 0
          %1453 = vmatprep.subr.bf16.mxu0 0
          %1454 = vmatpush2.bf16.msra.mxu0 0
          %1455 = vmatprep.subr.bf16.mxu0 0
          %1456 = vmatpush2.bf16.msra.mxu0 0
          %1457 = vmatprep.subr.bf16.mxu0 0
          %1458 = vmatpush2.bf16.msra.mxu0 0
          %1459 = vmatprep.mubr.bf16.mxu0 0
          %1460 = vmatmul.mubr.bf16.gmra.mxu0 %v1354
          %v1461 = vpop.f32.mrf.mxu0
          %v1462 = vadd.f32 %v1377, %v1461
          %v1463 = vpop.f32.mrf.mxu0
          %v1464 = vpop.f32.mrf.mxu0
          %v1465 = vadd.f32 %v1377, %v1464
          %v1466 = vpop.f32.mrf.mxu0
          %1467 = vmatprep.mubr.bf16.mxu0 0
          %1468 = vmatmul.mubr.bf16.gmra.mxu0 %v1355
          %v1469 = vpop.f32.mrf.mxu0
          %v1470 = vadd.f32 %v1377, %v1469
          %v1471 = vpop.f32.mrf.mxu0
          %v1472 = vpop.f32.mrf.mxu0
          %v1473 = vadd.f32 %v1377, %v1472
          %v1474 = vpop.f32.mrf.mxu0
          %1475 = vdwg.mxu0
          %v1476 = vmax.f32 %v1462, 0.0
          %v1477 = vmax.f32 %v1465, 0.0
          %v1478 = vmax.f32 %v1470, 0.0
          %v1479 = vmax.f32 %v1473, 0.0
          %v1480 = vld [vmem:[#allocation8] sm:$0x1]
          %v1482 = vlaneseq
          %v1483 = vshrl.u32 %v1482, 7
          %v1484 = vsub.s32 0, %v1483
          %v1485 = vrot.slane %v1480, %v1484
          %v1487 = vmul.f32 %v1476, %v1485
          %v1488 = vmul.f32 %v1477, %v1485
          %v1489 = vmul.f32 %v1478, %v1485
          %v1490 = vmul.f32 %v1479, %v1485
          %v1491 = vld [vmem:[#allocation9] sm:$0x1]
          %v1493 = vlaneseq
          %v1494 = vshrl.u32 %v1493, 7
          %v1495 = vsub.s32 0, %v1494
          %v1496 = vrot.slane %v1491, %v1495
          %v1498 = vadd.f32 %v1487, %v1496
          %v1499 = vadd.f32 %v1488, %v1496
          %v1500 = vadd.f32 %v1489, %v1496
          %v1501 = vadd.f32 %v1490, %v1496
          %v1502 = vpack.c.bf16 %v1499, %v1498
          %v1503 = vpack.c.bf16 %v1501, %v1500
          %v1504 = vld [vmem:[#allocation16] sm:$0xff]
          %v1505 = vld [vmem:[#allocation16 + $0x8] sm:$0xff]
          %v1506 = vld [vmem:[#allocation16 + $0x10] sm:$0xff]
          %v1507 = vld [vmem:[#allocation16 + $0x18] sm:$0xff]
          %v1508 = vld [vmem:[#allocation16 + $0x20] sm:$0xff]
          %v1509 = vld [vmem:[#allocation16 + $0x28] sm:$0xff]
          %v1510 = vld [vmem:[#allocation16 + $0x30] sm:$0xff]
          %v1511 = vld [vmem:[#allocation16 + $0x38] sm:$0xff]
          %v1512 = vld [vmem:[#allocation16 + $0x40] sm:$0xff]
          %v1513 = vld [vmem:[#allocation16 + $0x48] sm:$0xff]
          %v1514 = vld [vmem:[#allocation16 + $0x50] sm:$0xff]
          %v1515 = vld [vmem:[#allocation16 + $0x58] sm:$0xff]
          %v1516 = vld [vmem:[#allocation16 + $0x60] sm:$0xff]
          %v1517 = vld [vmem:[#allocation16 + $0x68] sm:$0xff]
          %v1518 = vld [vmem:[#allocation16 + $0x70] sm:$0xff]
          %v1519 = vld [vmem:[#allocation16 + $0x78] sm:$0xff]
          %v1520 = vld [vmem:[#allocation16 + $0x80] sm:$0xff]
          %v1521 = vld [vmem:[#allocation16 + $0x88] sm:$0xff]
          %v1522 = vld [vmem:[#allocation16 + $0x90] sm:$0xff]
          %v1523 = vld [vmem:[#allocation16 + $0x98] sm:$0xff]
          %v1524 = vld [vmem:[#allocation16 + $0xa0] sm:$0xff]
          %v1525 = vld [vmem:[#allocation16 + $0xa8] sm:$0xff]
          %v1526 = vld [vmem:[#allocation16 + $0xb0] sm:$0xff]
          %v1527 = vld [vmem:[#allocation16 + $0xb8] sm:$0xff]
          %v1528 = vld [vmem:[#allocation16 + $0xc0] sm:$0xff]
          %v1529 = vld [vmem:[#allocation16 + $0xc8] sm:$0xff]
          %v1530 = vld [vmem:[#allocation16 + $0xd0] sm:$0xff]
          %v1531 = vld [vmem:[#allocation16 + $0xd8] sm:$0xff]
          %v1532 = vld [vmem:[#allocation16 + $0xe0] sm:$0xff]
          %v1533 = vld [vmem:[#allocation16 + $0xe8] sm:$0xff]
          %v1534 = vld [vmem:[#allocation16 + $0xf0] sm:$0xff]
          %v1535 = vld [vmem:[#allocation16 + $0xf8] sm:$0xff]
          %v1536 = vld [vmem:[#allocation16 + $0x100] sm:$0xff]
          %v1537 = vld [vmem:[#allocation16 + $0x108] sm:$0xff]
          %v1538 = vld [vmem:[#allocation16 + $0x110] sm:$0xff]
          %v1539 = vld [vmem:[#allocation16 + $0x118] sm:$0xff]
          %v1540 = vld [vmem:[#allocation16 + $0x120] sm:$0xff]
          %v1541 = vld [vmem:[#allocation16 + $0x128] sm:$0xff]
          %v1542 = vld [vmem:[#allocation16 + $0x130] sm:$0xff]
          %v1543 = vld [vmem:[#allocation16 + $0x138] sm:$0xff]
          %v1544 = vld [vmem:[#allocation16 + $0x140] sm:$0xff]
          %v1545 = vld [vmem:[#allocation16 + $0x148] sm:$0xff]
          %v1546 = vld [vmem:[#allocation16 + $0x150] sm:$0xff]
          %v1547 = vld [vmem:[#allocation16 + $0x158] sm:$0xff]
          %v1548 = vld [vmem:[#allocation16 + $0x160] sm:$0xff]
          %v1549 = vld [vmem:[#allocation16 + $0x168] sm:$0xff]
          %v1550 = vld [vmem:[#allocation16 + $0x170] sm:$0xff]
          %v1551 = vld [vmem:[#allocation16 + $0x178] sm:$0xff]
          %v1552 = vld [vmem:[#allocation16 + $0x180] sm:$0xff]
          %v1553 = vld [vmem:[#allocation16 + $0x188] sm:$0xff]
          %v1554 = vld [vmem:[#allocation16 + $0x190] sm:$0xff]
          %v1555 = vld [vmem:[#allocation16 + $0x198] sm:$0xff]
          %v1556 = vld [vmem:[#allocation16 + $0x1a0] sm:$0xff]
          %v1557 = vld [vmem:[#allocation16 + $0x1a8] sm:$0xff]
          %v1558 = vld [vmem:[#allocation16 + $0x1b0] sm:$0xff]
          %v1559 = vld [vmem:[#allocation16 + $0x1b8] sm:$0xff]
          %v1560 = vld [vmem:[#allocation16 + $0x1c0] sm:$0xff]
          %v1561 = vld [vmem:[#allocation16 + $0x1c8] sm:$0xff]
          %v1562 = vld [vmem:[#allocation16 + $0x1d0] sm:$0xff]
          %v1563 = vld [vmem:[#allocation16 + $0x1d8] sm:$0xff]
          %v1564 = vld [vmem:[#allocation16 + $0x1e0] sm:$0xff]
          %v1565 = vld [vmem:[#allocation16 + $0x1e8] sm:$0xff]
          %v1566 = vld [vmem:[#allocation16 + $0x1f0] sm:$0xff]
          %v1567 = vld [vmem:[#allocation16 + $0x1f8] sm:$0xff]
          %v1568 = vld [vmem:[%s10] sm:$0xff]
          %v1570 = vlaneseq
          %v1571 = vshrl.u32 %v1570, 7
          %v1572 = vsub.s32 0, %v1571
          %v1573 = vrot.slane %v1568, %v1572
          %v1574 = vlaneseq
          %v1575 = vshrl.u32 %v1574, 7
          %v1576 = vsub.s32 1, %v1575
          %v1577 = vrot.slane %v1568, %v1576
          %v1578 = vlaneseq
          %v1579 = vshrl.u32 %v1578, 7
          %v1580 = vsub.s32 2, %v1579
          %v1581 = vrot.slane %v1568, %v1580
          %v1582 = vlaneseq
          %v1583 = vshrl.u32 %v1582, 7
          %v1584 = vsub.s32 3, %v1583
          %v1585 = vrot.slane %v1568, %v1584
          %v1586 = vlaneseq
          %v1587 = vshrl.u32 %v1586, 7
          %v1588 = vsub.s32 4, %v1587
          %v1589 = vrot.slane %v1568, %v1588
          %v1590 = vlaneseq
          %v1591 = vshrl.u32 %v1590, 7
          %v1592 = vsub.s32 5, %v1591
          %v1593 = vrot.slane %v1568, %v1592
          %v1594 = vlaneseq
          %v1595 = vshrl.u32 %v1594, 7
          %v1596 = vsub.s32 6, %v1595
          %v1597 = vrot.slane %v1568, %v1596
          %v1598 = vlaneseq
          %v1599 = vshrl.u32 %v1598, 7
          %v1600 = vsub.s32 7, %v1599
          %v1601 = vrot.slane %v1568, %v1600
          %v1674 = vunpack.c.l.b16 %v1504
          %v1675 = vunpack.c.h.b16 %v1504
          %v1676 = vunpack.c.l.b16 %v1505
          %v1677 = vunpack.c.h.b16 %v1505
          %v1678 = vunpack.c.l.b16 %v1506
          %v1679 = vunpack.c.h.b16 %v1506
          %v1680 = vunpack.c.l.b16 %v1507
          %v1681 = vunpack.c.h.b16 %v1507
          %v1682 = vunpack.c.l.b16 %v1508
          %v1683 = vunpack.c.h.b16 %v1508
          %v1684 = vunpack.c.l.b16 %v1509
          %v1685 = vunpack.c.h.b16 %v1509
          %v1686 = vunpack.c.l.b16 %v1510
          %v1687 = vunpack.c.h.b16 %v1510
          %v1688 = vunpack.c.l.b16 %v1511
          %v1689 = vunpack.c.h.b16 %v1511
          %v1690 = vunpack.c.l.b16 %v1512
          %v1691 = vunpack.c.h.b16 %v1512
          %v1692 = vunpack.c.l.b16 %v1513
          %v1693 = vunpack.c.h.b16 %v1513
          %v1694 = vunpack.c.l.b16 %v1514
          %v1695 = vunpack.c.h.b16 %v1514
          %v1696 = vunpack.c.l.b16 %v1515
          %v1697 = vunpack.c.h.b16 %v1515
          %v1698 = vunpack.c.l.b16 %v1516
          %v1699 = vunpack.c.h.b16 %v1516
          %v1700 = vunpack.c.l.b16 %v1517
          %v1701 = vunpack.c.h.b16 %v1517
          %v1702 = vunpack.c.l.b16 %v1518
          %v1703 = vunpack.c.h.b16 %v1518
          %v1704 = vunpack.c.l.b16 %v1519
          %v1705 = vunpack.c.h.b16 %v1519
          %v1706 = vunpack.c.l.b16 %v1520
          %v1707 = vunpack.c.h.b16 %v1520
          %v1708 = vunpack.c.l.b16 %v1521
          %v1709 = vunpack.c.h.b16 %v1521
          %v1710 = vunpack.c.l.b16 %v1522
          %v1711 = vunpack.c.h.b16 %v1522
          %v1712 = vunpack.c.l.b16 %v1523
          %v1713 = vunpack.c.h.b16 %v1523
          %v1714 = vunpack.c.l.b16 %v1524
          %v1715 = vunpack.c.h.b16 %v1524
          %v1716 = vunpack.c.l.b16 %v1525
          %v1717 = vunpack.c.h.b16 %v1525
          %v1718 = vunpack.c.l.b16 %v1526
          %v1719 = vunpack.c.h.b16 %v1526
          %v1720 = vunpack.c.l.b16 %v1527
          %v1721 = vunpack.c.h.b16 %v1527
          %v1722 = vunpack.c.l.b16 %v1528
          %v1723 = vunpack.c.h.b16 %v1528
          %v1724 = vunpack.c.l.b16 %v1529
          %v1725 = vunpack.c.h.b16 %v1529
          %v1726 = vunpack.c.l.b16 %v1530
          %v1727 = vunpack.c.h.b16 %v1530
          %v1728 = vunpack.c.l.b16 %v1531
          %v1729 = vunpack.c.h.b16 %v1531
          %v1730 = vunpack.c.l.b16 %v1532
          %v1731 = vunpack.c.h.b16 %v1532
          %v1732 = vunpack.c.l.b16 %v1533
          %v1733 = vunpack.c.h.b16 %v1533
          %v1734 = vunpack.c.l.b16 %v1534
          %v1735 = vunpack.c.h.b16 %v1534
          %v1736 = vunpack.c.l.b16 %v1535
          %v1737 = vunpack.c.h.b16 %v1535
          %v1738 = vunpack.c.l.b16 %v1536
          %v1739 = vunpack.c.h.b16 %v1536
          %v1740 = vunpack.c.l.b16 %v1537
          %v1741 = vunpack.c.h.b16 %v1537
          %v1742 = vunpack.c.l.b16 %v1538
          %v1743 = vunpack.c.h.b16 %v1538
          %v1744 = vunpack.c.l.b16 %v1539
          %v1745 = vunpack.c.h.b16 %v1539
          %v1746 = vunpack.c.l.b16 %v1540
          %v1747 = vunpack.c.h.b16 %v1540
          %v1748 = vunpack.c.l.b16 %v1541
          %v1749 = vunpack.c.h.b16 %v1541
          %v1750 = vunpack.c.l.b16 %v1542
          %v1751 = vunpack.c.h.b16 %v1542
          %v1752 = vunpack.c.l.b16 %v1543
          %v1753 = vunpack.c.h.b16 %v1543
          %v1754 = vunpack.c.l.b16 %v1544
          %v1755 = vunpack.c.h.b16 %v1544
          %v1756 = vunpack.c.l.b16 %v1545
          %v1757 = vunpack.c.h.b16 %v1545
          %v1758 = vunpack.c.l.b16 %v1546
          %v1759 = vunpack.c.h.b16 %v1546
          %v1760 = vunpack.c.l.b16 %v1547
          %v1761 = vunpack.c.h.b16 %v1547
          %v1762 = vunpack.c.l.b16 %v1548
          %v1763 = vunpack.c.h.b16 %v1548
          %v1764 = vunpack.c.l.b16 %v1549
          %v1765 = vunpack.c.h.b16 %v1549
          %v1766 = vunpack.c.l.b16 %v1550
          %v1767 = vunpack.c.h.b16 %v1550
          %v1768 = vunpack.c.l.b16 %v1551
          %v1769 = vunpack.c.h.b16 %v1551
          %v1770 = vunpack.c.l.b16 %v1552
          %v1771 = vunpack.c.h.b16 %v1552
          %v1772 = vunpack.c.l.b16 %v1553
          %v1773 = vunpack.c.h.b16 %v1553
          %v1774 = vunpack.c.l.b16 %v1554
          %v1775 = vunpack.c.h.b16 %v1554
          %v1776 = vunpack.c.l.b16 %v1555
          %v1777 = vunpack.c.h.b16 %v1555
          %v1778 = vunpack.c.l.b16 %v1556
          %v1779 = vunpack.c.h.b16 %v1556
          %v1780 = vunpack.c.l.b16 %v1557
          %v1781 = vunpack.c.h.b16 %v1557
          %v1782 = vunpack.c.l.b16 %v1558
          %v1783 = vunpack.c.h.b16 %v1558
          %v1784 = vunpack.c.l.b16 %v1559
          %v1785 = vunpack.c.h.b16 %v1559
          %v1786 = vunpack.c.l.b16 %v1560
          %v1787 = vunpack.c.h.b16 %v1560
          %v1788 = vunpack.c.l.b16 %v1561
          %v1789 = vunpack.c.h.b16 %v1561
          %v1790 = vunpack.c.l.b16 %v1562
          %v1791 = vunpack.c.h.b16 %v1562
          %v1792 = vunpack.c.l.b16 %v1563
          %v1793 = vunpack.c.h.b16 %v1563
          %v1794 = vunpack.c.l.b16 %v1564
          %v1795 = vunpack.c.h.b16 %v1564
          %v1796 = vunpack.c.l.b16 %v1565
          %v1797 = vunpack.c.h.b16 %v1565
          %v1798 = vunpack.c.l.b16 %v1566
          %v1799 = vunpack.c.h.b16 %v1566
          %v1800 = vunpack.c.l.b16 %v1567
          %v1801 = vunpack.c.h.b16 %v1567
          %v1802 = vpack.c.b16 %v1682, %v1674
          %v1803 = vpack.c.b16 %v1683, %v1675
          %v1804 = vpack.c.b16 %v1684, %v1676
          %v1805 = vpack.c.b16 %v1685, %v1677
          %v1806 = vpack.c.b16 %v1686, %v1678
          %v1807 = vpack.c.b16 %v1687, %v1679
          %v1808 = vpack.c.b16 %v1688, %v1680
          %v1809 = vpack.c.b16 %v1689, %v1681
          %v1810 = vpack.c.b16 %v1698, %v1690
          %v1811 = vpack.c.b16 %v1699, %v1691
          %v1812 = vpack.c.b16 %v1700, %v1692
          %v1813 = vpack.c.b16 %v1701, %v1693
          %v1814 = vpack.c.b16 %v1702, %v1694
          %v1815 = vpack.c.b16 %v1703, %v1695
          %v1816 = vpack.c.b16 %v1704, %v1696
          %v1817 = vpack.c.b16 %v1705, %v1697
          %v1818 = vpack.c.b16 %v1714, %v1706
          %v1819 = vpack.c.b16 %v1715, %v1707
          %v1820 = vpack.c.b16 %v1716, %v1708
          %v1821 = vpack.c.b16 %v1717, %v1709
          %v1822 = vpack.c.b16 %v1718, %v1710
          %v1823 = vpack.c.b16 %v1719, %v1711
          %v1824 = vpack.c.b16 %v1720, %v1712
          %v1825 = vpack.c.b16 %v1721, %v1713
          %v1826 = vpack.c.b16 %v1730, %v1722
          %v1827 = vpack.c.b16 %v1731, %v1723
          %v1828 = vpack.c.b16 %v1732, %v1724
          %v1829 = vpack.c.b16 %v1733, %v1725
          %v1830 = vpack.c.b16 %v1734, %v1726
          %v1831 = vpack.c.b16 %v1735, %v1727
          %v1832 = vpack.c.b16 %v1736, %v1728
          %v1833 = vpack.c.b16 %v1737, %v1729
          %v1834 = vpack.c.b16 %v1746, %v1738
          %v1835 = vpack.c.b16 %v1747, %v1739
          %v1836 = vpack.c.b16 %v1748, %v1740
          %v1837 = vpack.c.b16 %v1749, %v1741
          %v1838 = vpack.c.b16 %v1750, %v1742
          %v1839 = vpack.c.b16 %v1751, %v1743
          %v1840 = vpack.c.b16 %v1752, %v1744
          %v1841 = vpack.c.b16 %v1753, %v1745
          %v1842 = vpack.c.b16 %v1762, %v1754
          %v1843 = vpack.c.b16 %v1763, %v1755
          %v1844 = vpack.c.b16 %v1764, %v1756
          %v1845 = vpack.c.b16 %v1765, %v1757
          %v1846 = vpack.c.b16 %v1766, %v1758
          %v1847 = vpack.c.b16 %v1767, %v1759
          %v1848 = vpack.c.b16 %v1768, %v1760
          %v1849 = vpack.c.b16 %v1769, %v1761
          %v1850 = vpack.c.b16 %v1778, %v1770
          %v1851 = vpack.c.b16 %v1779, %v1771
          %v1852 = vpack.c.b16 %v1780, %v1772
          %v1853 = vpack.c.b16 %v1781, %v1773
          %v1854 = vpack.c.b16 %v1782, %v1774
          %v1855 = vpack.c.b16 %v1783, %v1775
          %v1856 = vpack.c.b16 %v1784, %v1776
          %v1857 = vpack.c.b16 %v1785, %v1777
          %v1858 = vpack.c.b16 %v1794, %v1786
          %v1859 = vpack.c.b16 %v1795, %v1787
          %v1860 = vpack.c.b16 %v1796, %v1788
          %v1861 = vpack.c.b16 %v1797, %v1789
          %v1862 = vpack.c.b16 %v1798, %v1790
          %v1863 = vpack.c.b16 %v1799, %v1791
          %v1864 = vpack.c.b16 %v1800, %v1792
          %v1865 = vpack.c.b16 %v1801, %v1793
          %1930 = vmatprep.subr.bf16.mxu0 %v1859
          %1931 = vmatpush1.bf16.msra.mxu0 %v1858
          %1932 = vmatprep.subr.bf16.mxu0 %v1851
          %1933 = vmatpush1.bf16.msra.mxu0 %v1850
          %1934 = vmatprep.subr.bf16.mxu0 %v1843
          %1935 = vmatpush1.bf16.msra.mxu0 %v1842
          %1936 = vmatprep.subr.bf16.mxu0 %v1835
          %1937 = vmatpush1.bf16.msra.mxu0 %v1834
          %1938 = vmatprep.subr.bf16.mxu0 %v1827
          %1939 = vmatpush1.bf16.msra.mxu0 %v1826
          %1940 = vmatprep.subr.bf16.mxu0 %v1819
          %1941 = vmatpush1.bf16.msra.mxu0 %v1818
          %1942 = vmatprep.subr.bf16.mxu0 %v1811
          %1943 = vmatpush1.bf16.msra.mxu0 %v1810
          %1944 = vmatprep.subr.bf16.mxu0 %v1803
          %1945 = vmatpush1.bf16.msra.mxu0 %v1802
          %1946 = vmatprep.subr.bf16.mxu0 0
          %1947 = vmatpush2.bf16.msra.mxu0 0
          %1948 = vmatprep.subr.bf16.mxu0 0
          %1949 = vmatpush2.bf16.msra.mxu0 0
          %1950 = vmatprep.subr.bf16.mxu0 0
          %1951 = vmatpush2.bf16.msra.mxu0 0
          %1952 = vmatprep.subr.bf16.mxu0 0
          %1953 = vmatpush2.bf16.msra.mxu0 0
          %1954 = vmatprep.subr.bf16.mxu0 0
          %1955 = vmatpush2.bf16.msra.mxu0 0
          %1956 = vmatprep.subr.bf16.mxu0 0
          %1957 = vmatpush2.bf16.msra.mxu0 0
          %1958 = vmatprep.subr.bf16.mxu0 0
          %1959 = vmatpush2.bf16.msra.mxu0 0
          %1960 = vmatprep.subr.bf16.mxu0 0
          %1961 = vmatpush2.bf16.msra.mxu0 0
          %1962 = vmatprep.mubr.bf16.mxu0 0
          %1963 = vmatmul.mubr.bf16.gmra.mxu0 %v1502
          %v1964 = vpop.f32.mrf.mxu0
          %v1965 = vadd.f32 %v1573, %v1964
          %v1966 = vpop.f32.mrf.mxu0
          %v1967 = vadd.f32 %v1577, %v1966
          %v1968 = vpop.f32.mrf.mxu0
          %v1969 = vadd.f32 %v1573, %v1968
          %v1970 = vpop.f32.mrf.mxu0
          %v1971 = vadd.f32 %v1577, %v1970
          %1972 = vmatprep.mubr.bf16.mxu0 0
          %1973 = vmatmul.mubr.bf16.gmra.mxu0 %v1503
          %v1974 = vpop.f32.mrf.mxu0
          %v1975 = vadd.f32 %v1573, %v1974
          %v1976 = vpop.f32.mrf.mxu0
          %v1977 = vadd.f32 %v1577, %v1976
          %v1978 = vpop.f32.mrf.mxu0
          %v1979 = vadd.f32 %v1573, %v1978
          %v1980 = vpop.f32.mrf.mxu0
          %v1981 = vadd.f32 %v1577, %v1980
          %1982 = vdwg.mxu0
          %1983 = vmatprep.subr.bf16.mxu0 %v1861
          %1984 = vmatpush1.bf16.msra.mxu0 %v1860
          %1985 = vmatprep.subr.bf16.mxu0 %v1853
          %1986 = vmatpush1.bf16.msra.mxu0 %v1852
          %1987 = vmatprep.subr.bf16.mxu0 %v1845
          %1988 = vmatpush1.bf16.msra.mxu0 %v1844
          %1989 = vmatprep.subr.bf16.mxu0 %v1837
          %1990 = vmatpush1.bf16.msra.mxu0 %v1836
          %1991 = vmatprep.subr.bf16.mxu0 %v1829
          %1992 = vmatpush1.bf16.msra.mxu0 %v1828
          %1993 = vmatprep.subr.bf16.mxu0 %v1821
          %1994 = vmatpush1.bf16.msra.mxu0 %v1820
          %1995 = vmatprep.subr.bf16.mxu0 %v1813
          %1996 = vmatpush1.bf16.msra.mxu0 %v1812
          %1997 = vmatprep.subr.bf16.mxu0 %v1805
          %1998 = vmatpush1.bf16.msra.mxu0 %v1804
          %1999 = vmatprep.subr.bf16.mxu0 0
          %2000 = vmatpush2.bf16.msra.mxu0 0
          %2001 = vmatprep.subr.bf16.mxu0 0
          %2002 = vmatpush2.bf16.msra.mxu0 0
          %2003 = vmatprep.subr.bf16.mxu0 0
          %2004 = vmatpush2.bf16.msra.mxu0 0
          %2005 = vmatprep.subr.bf16.mxu0 0
          %2006 = vmatpush2.bf16.msra.mxu0 0
          %2007 = vmatprep.subr.bf16.mxu0 0
          %2008 = vmatpush2.bf16.msra.mxu0 0
          %2009 = vmatprep.subr.bf16.mxu0 0
          %2010 = vmatpush2.bf16.msra.mxu0 0
          %2011 = vmatprep.subr.bf16.mxu0 0
          %2012 = vmatpush2.bf16.msra.mxu0 0
          %2013 = vmatprep.subr.bf16.mxu0 0
          %2014 = vmatpush2.bf16.msra.mxu0 0
          %2015 = vmatprep.mubr.bf16.mxu0 0
          %2016 = vmatmul.mubr.bf16.gmra.mxu0 %v1502
          %v2017 = vpop.f32.mrf.mxu0
          %v2018 = vadd.f32 %v1581, %v2017
          %v2019 = vpop.f32.mrf.mxu0
          %v2020 = vadd.f32 %v1585, %v2019
          %v2021 = vpop.f32.mrf.mxu0
          %v2022 = vadd.f32 %v1581, %v2021
          %v2023 = vpop.f32.mrf.mxu0
          %v2024 = vadd.f32 %v1585, %v2023
          %2025 = vmatprep.mubr.bf16.mxu0 0
          %2026 = vmatmul.mubr.bf16.gmra.mxu0 %v1503
          %v2027 = vpop.f32.mrf.mxu0
          %v2028 = vadd.f32 %v1581, %v2027
          %v2029 = vpop.f32.mrf.mxu0
          %v2030 = vadd.f32 %v1585, %v2029
          %v2031 = vpop.f32.mrf.mxu0
          %v2032 = vadd.f32 %v1581, %v2031
          %v2033 = vpop.f32.mrf.mxu0
          %v2034 = vadd.f32 %v1585, %v2033
          %2035 = vdwg.mxu0
          %2036 = vmatprep.subr.bf16.mxu0 %v1863
          %2037 = vmatpush1.bf16.msra.mxu0 %v1862
          %2038 = vmatprep.subr.bf16.mxu0 %v1855
          %2039 = vmatpush1.bf16.msra.mxu0 %v1854
          %2040 = vmatprep.subr.bf16.mxu0 %v1847
          %2041 = vmatpush1.bf16.msra.mxu0 %v1846
          %2042 = vmatprep.subr.bf16.mxu0 %v1839
          %2043 = vmatpush1.bf16.msra.mxu0 %v1838
          %2044 = vmatprep.subr.bf16.mxu0 %v1831
          %2045 = vmatpush1.bf16.msra.mxu0 %v1830
          %2046 = vmatprep.subr.bf16.mxu0 %v1823
          %2047 = vmatpush1.bf16.msra.mxu0 %v1822
          %2048 = vmatprep.subr.bf16.mxu0 %v1815
          %2049 = vmatpush1.bf16.msra.mxu0 %v1814
          %2050 = vmatprep.subr.bf16.mxu0 %v1807
          %2051 = vmatpush1.bf16.msra.mxu0 %v1806
          %2052 = vmatprep.subr.bf16.mxu0 0
          %2053 = vmatpush2.bf16.msra.mxu0 0
          %2054 = vmatprep.subr.bf16.mxu0 0
          %2055 = vmatpush2.bf16.msra.mxu0 0
          %2056 = vmatprep.subr.bf16.mxu0 0
          %2057 = vmatpush2.bf16.msra.mxu0 0
          %2058 = vmatprep.subr.bf16.mxu0 0
          %2059 = vmatpush2.bf16.msra.mxu0 0
          %2060 = vmatprep.subr.bf16.mxu0 0
          %2061 = vmatpush2.bf16.msra.mxu0 0
          %2062 = vmatprep.subr.bf16.mxu0 0
          %2063 = vmatpush2.bf16.msra.mxu0 0
          %2064 = vmatprep.subr.bf16.mxu0 0
          %2065 = vmatpush2.bf16.msra.mxu0 0
          %2066 = vmatprep.subr.bf16.mxu0 0
          %2067 = vmatpush2.bf16.msra.mxu0 0
          %2068 = vmatprep.mubr.bf16.mxu0 0
          %2069 = vmatmul.mubr.bf16.gmra.mxu0 %v1502
          %v2070 = vpop.f32.mrf.mxu0
          %v2071 = vadd.f32 %v1589, %v2070
          %v2072 = vpop.f32.mrf.mxu0
          %v2073 = vadd.f32 %v1593, %v2072
          %v2074 = vpop.f32.mrf.mxu0
          %v2075 = vadd.f32 %v1589, %v2074
          %v2076 = vpop.f32.mrf.mxu0
          %v2077 = vadd.f32 %v1593, %v2076
          %2078 = vmatprep.mubr.bf16.mxu0 0
          %2079 = vmatmul.mubr.bf16.gmra.mxu0 %v1503
          %v2080 = vpop.f32.mrf.mxu0
          %v2081 = vadd.f32 %v1589, %v2080
          %v2082 = vpop.f32.mrf.mxu0
          %v2083 = vadd.f32 %v1593, %v2082
          %v2084 = vpop.f32.mrf.mxu0
          %v2085 = vadd.f32 %v1589, %v2084
          %v2086 = vpop.f32.mrf.mxu0
          %v2087 = vadd.f32 %v1593, %v2086
          %2088 = vdwg.mxu0
          %2089 = vmatprep.subr.bf16.mxu0 %v1865
          %2090 = vmatpush1.bf16.msra.mxu0 %v1864
          %2091 = vmatprep.subr.bf16.mxu0 %v1857
          %2092 = vmatpush1.bf16.msra.mxu0 %v1856
          %2093 = vmatprep.subr.bf16.mxu0 %v1849
          %2094 = vmatpush1.bf16.msra.mxu0 %v1848
          %2095 = vmatprep.subr.bf16.mxu0 %v1841
          %2096 = vmatpush1.bf16.msra.mxu0 %v1840
          %2097 = vmatprep.subr.bf16.mxu0 %v1833
          %2098 = vmatpush1.bf16.msra.mxu0 %v1832
          %2099 = vmatprep.subr.bf16.mxu0 %v1825
          %2100 = vmatpush1.bf16.msra.mxu0 %v1824
          %2101 = vmatprep.subr.bf16.mxu0 %v1817
          %2102 = vmatpush1.bf16.msra.mxu0 %v1816
          %2103 = vmatprep.subr.bf16.mxu0 %v1809
          %2104 = vmatpush1.bf16.msra.mxu0 %v1808
          %2105 = vmatprep.subr.bf16.mxu0 0
          %2106 = vmatpush2.bf16.msra.mxu0 0
          %2107 = vmatprep.subr.bf16.mxu0 0
          %2108 = vmatpush2.bf16.msra.mxu0 0
          %2109 = vmatprep.subr.bf16.mxu0 0
          %2110 = vmatpush2.bf16.msra.mxu0 0
          %2111 = vmatprep.subr.bf16.mxu0 0
          %2112 = vmatpush2.bf16.msra.mxu0 0
          %2113 = vmatprep.subr.bf16.mxu0 0
          %2114 = vmatpush2.bf16.msra.mxu0 0
          %2115 = vmatprep.subr.bf16.mxu0 0
          %2116 = vmatpush2.bf16.msra.mxu0 0
          %2117 = vmatprep.subr.bf16.mxu0 0
          %2118 = vmatpush2.bf16.msra.mxu0 0
          %2119 = vmatprep.subr.bf16.mxu0 0
          %2120 = vmatpush2.bf16.msra.mxu0 0
          %2121 = vmatprep.mubr.bf16.mxu0 0
          %2122 = vmatmul.mubr.bf16.gmra.mxu0 %v1502
          %v2123 = vpop.f32.mrf.mxu0
          %v2124 = vadd.f32 %v1597, %v2123
          %v2125 = vpop.f32.mrf.mxu0
          %v2126 = vadd.f32 %v1601, %v2125
          %v2127 = vpop.f32.mrf.mxu0
          %v2128 = vadd.f32 %v1597, %v2127
          %v2129 = vpop.f32.mrf.mxu0
          %v2130 = vadd.f32 %v1601, %v2129
          %2131 = vmatprep.mubr.bf16.mxu0 0
          %2132 = vmatmul.mubr.bf16.gmra.mxu0 %v1503
          %v2133 = vpop.f32.mrf.mxu0
          %v2134 = vadd.f32 %v1597, %v2133
          %v2135 = vpop.f32.mrf.mxu0
          %v2136 = vadd.f32 %v1601, %v2135
          %v2137 = vpop.f32.mrf.mxu0
          %v2138 = vadd.f32 %v1597, %v2137
          %v2139 = vpop.f32.mrf.mxu0
          %v2140 = vadd.f32 %v1601, %v2139
          %2141 = vdwg.mxu0
          %v2142 = vmax.f32 %v1965, 0.0
          %v2143 = vmax.f32 %v1967, 0.0
          %v2144 = vmax.f32 %v2018, 0.0
          %v2145 = vmax.f32 %v2020, 0.0
          %v2146 = vmax.f32 %v2071, 0.0
          %v2147 = vmax.f32 %v2073, 0.0
          %v2148 = vmax.f32 %v2124, 0.0
          %v2149 = vmax.f32 %v2126, 0.0
          %v2150 = vmax.f32 %v1969, 0.0
          %v2151 = vmax.f32 %v1971, 0.0
          %v2152 = vmax.f32 %v2022, 0.0
          %v2153 = vmax.f32 %v2024, 0.0
          %v2154 = vmax.f32 %v2075, 0.0
          %v2155 = vmax.f32 %v2077, 0.0
          %v2156 = vmax.f32 %v2128, 0.0
          %v2157 = vmax.f32 %v2130, 0.0
          %v2158 = vmax.f32 %v1975, 0.0
          %v2159 = vmax.f32 %v1977, 0.0
          %v2160 = vmax.f32 %v2028, 0.0
          %v2161 = vmax.f32 %v2030, 0.0
          %v2162 = vmax.f32 %v2081, 0.0
          %v2163 = vmax.f32 %v2083, 0.0
          %v2164 = vmax.f32 %v2134, 0.0
          %v2165 = vmax.f32 %v2136, 0.0
          %v2166 = vmax.f32 %v1979, 0.0
          %v2167 = vmax.f32 %v1981, 0.0
          %v2168 = vmax.f32 %v2032, 0.0
          %v2169 = vmax.f32 %v2034, 0.0
          %v2170 = vmax.f32 %v2085, 0.0
          %v2171 = vmax.f32 %v2087, 0.0
          %v2172 = vmax.f32 %v2138, 0.0
          %v2173 = vmax.f32 %v2140, 0.0
          %v2174 = vld [vmem:[#allocation10] sm:$0xff]
          %v2175 = vadd.f32 %v2142, %v2150
          %v2176 = vadd.f32 %v2175, %v2158
          %v2177 = vadd.f32 %v2176, %v2166
          %v2178 = vrot.slane %v2177, 4
          %v2179 = vadd.f32 %v2177, %v2178
          %v2180 = vrot.slane %v2179, 2
          %v2181 = vadd.f32 %v2179, %v2180
          %v2182 = vrot.slane %v2181, 1
          %v2183 = vadd.f32 %v2181, %v2182
          %v2184 = vadd.f32 %v2143, %v2151
          %v2185 = vadd.f32 %v2184, %v2159
          %v2186 = vadd.f32 %v2185, %v2167
          %v2187 = vrot.slane %v2186, 4
          %v2188 = vadd.f32 %v2186, %v2187
          %v2189 = vrot.slane %v2188, 2
          %v2190 = vadd.f32 %v2188, %v2189
          %v2191 = vrot.slane %v2190, 1
          %v2192 = vadd.f32 %v2190, %v2191
          %v2193 = vadd.f32 %v2144, %v2152
          %v2194 = vadd.f32 %v2193, %v2160
          %v2195 = vadd.f32 %v2194, %v2168
          %v2196 = vrot.slane %v2195, 4
          %v2197 = vadd.f32 %v2195, %v2196
          %v2198 = vrot.slane %v2197, 2
          %v2199 = vadd.f32 %v2197, %v2198
          %v2200 = vrot.slane %v2199, 1
          %v2201 = vadd.f32 %v2199, %v2200
          %v2202 = vadd.f32 %v2145, %v2153
          %v2203 = vadd.f32 %v2202, %v2161
          %v2204 = vadd.f32 %v2203, %v2169
          %v2205 = vrot.slane %v2204, 4
          %v2206 = vadd.f32 %v2204, %v2205
          %v2207 = vrot.slane %v2206, 2
          %v2208 = vadd.f32 %v2206, %v2207
          %v2209 = vrot.slane %v2208, 1
          %v2210 = vadd.f32 %v2208, %v2209
          %v2211 = vadd.f32 %v2146, %v2154
          %v2212 = vadd.f32 %v2211, %v2162
          %v2213 = vadd.f32 %v2212, %v2170
          %v2214 = vrot.slane %v2213, 4
          %v2215 = vadd.f32 %v2213, %v2214
          %v2216 = vrot.slane %v2215, 2
          %v2217 = vadd.f32 %v2215, %v2216
          %v2218 = vrot.slane %v2217, 1
          %v2219 = vadd.f32 %v2217, %v2218
          %v2220 = vadd.f32 %v2147, %v2155
          %v2221 = vadd.f32 %v2220, %v2163
          %v2222 = vadd.f32 %v2221, %v2171
          %v2223 = vrot.slane %v2222, 4
          %v2224 = vadd.f32 %v2222, %v2223
          %v2225 = vrot.slane %v2224, 2
          %v2226 = vadd.f32 %v2224, %v2225
          %v2227 = vrot.slane %v2226, 1
          %v2228 = vadd.f32 %v2226, %v2227
          %v2229 = vadd.f32 %v2148, %v2156
          %v2230 = vadd.f32 %v2229, %v2164
          %v2231 = vadd.f32 %v2230, %v2172
          %v2232 = vrot.slane %v2231, 4
          %v2233 = vadd.f32 %v2231, %v2232
          %v2234 = vrot.slane %v2233, 2
          %v2235 = vadd.f32 %v2233, %v2234
          %v2236 = vrot.slane %v2235, 1
          %v2237 = vadd.f32 %v2235, %v2236
          %v2238 = vadd.f32 %v2149, %v2157
          %v2239 = vadd.f32 %v2238, %v2165
          %v2240 = vadd.f32 %v2239, %v2173
          %v2241 = vrot.slane %v2240, 4
          %v2242 = vadd.f32 %v2240, %v2241
          %v2243 = vrot.slane %v2242, 2
          %v2244 = vadd.f32 %v2242, %v2243
          %v2245 = vrot.slane %v2244, 1
          %v2246 = vadd.f32 %v2244, %v2245
          %v2255 = vcombine.low %v2183, %v2192
          %v2256 = vcombine.low %v2201, %v2210
          %v2257 = vcombine.low %v2219, %v2228
          %v2258 = vcombine.low %v2237, %v2246
          %v2260 = vunpack.c.l.s4 1966171168
          %v2261 = vunpack.c.0.s8 %v2260
          %v2262 = vlaneseq
          %v2263 = vshrl.u32 %v2262, 7
          %v2264 = vsub.s32 %v2261, %v2263
          %v2265 = vrot.slane %v2255, %v2264
          %v2267 = vunpack.c.l.s4 1966171168
          %v2268 = vunpack.c.0.s8 %v2267
          %v2269 = vlaneseq
          %v2270 = vshrl.u32 %v2269, 7
          %v2271 = vsub.s32 %v2268, %v2270
          %v2272 = vrot.slane %v2256, %v2271
          %v2274 = vunpack.c.l.s4 1966171168
          %v2275 = vunpack.c.0.s8 %v2274
          %v2276 = vlaneseq
          %v2277 = vshrl.u32 %v2276, 7
          %v2278 = vsub.s32 %v2275, %v2277
          %v2279 = vrot.slane %v2257, %v2278
          %v2281 = vunpack.c.l.s4 1966171168
          %v2282 = vunpack.c.0.s8 %v2281
          %v2283 = vlaneseq
          %v2284 = vshrl.u32 %v2283, 7
          %v2285 = vsub.s32 %v2282, %v2284
          %v2286 = vrot.slane %v2258, %v2285
          %v2287 = vcombine.low %v2265, %v2272
          %v2288 = vcombine.low %v2279, %v2286
          %v2290 = vunpack.c.l.s4 1966171168
          %v2291 = vunpack.c.0.s8 %v2290
          %v2292 = vlaneseq
          %v2293 = vshrl.u32 %v2292, 7
          %v2294 = vsub.s32 %v2291, %v2293
          %v2295 = vrot.slane %v2287, %v2294
          %v2297 = vunpack.c.l.s4 1966171168
          %v2298 = vunpack.c.0.s8 %v2297
          %v2299 = vlaneseq
          %v2300 = vshrl.u32 %v2299, 7
          %v2301 = vsub.s32 %v2298, %v2300
          %v2302 = vrot.slane %v2288, %v2301
          %v2303 = vcombine.low %v2295, %v2302
          %v2305 = vadd.f32 %v2174, %v2303
          %2306 = vst [vmem:[#allocation10] sm:$0xff] %v2305
          %v2307 = vld [vmem:[#allocation11] sm:$0xff]
          %v2308 = vmul.f32 %v2142, %v2142
          %v2309 = vmul.f32 %v2143, %v2143
          %v2310 = vmul.f32 %v2144, %v2144
          %v2311 = vmul.f32 %v2145, %v2145
          %v2312 = vmul.f32 %v2146, %v2146
          %v2313 = vmul.f32 %v2147, %v2147
          %v2314 = vmul.f32 %v2148, %v2148
          %v2315 = vmul.f32 %v2149, %v2149
          %v2316 = vmul.f32 %v2150, %v2150
          %v2317 = vmul.f32 %v2151, %v2151
          %v2318 = vmul.f32 %v2152, %v2152
          %v2319 = vmul.f32 %v2153, %v2153
          %v2320 = vmul.f32 %v2154, %v2154
          %v2321 = vmul.f32 %v2155, %v2155
          %v2322 = vmul.f32 %v2156, %v2156
          %v2323 = vmul.f32 %v2157, %v2157
          %v2324 = vmul.f32 %v2158, %v2158
          %v2325 = vmul.f32 %v2159, %v2159
          %v2326 = vmul.f32 %v2160, %v2160
          %v2327 = vmul.f32 %v2161, %v2161
          %v2328 = vmul.f32 %v2162, %v2162
          %v2329 = vmul.f32 %v2163, %v2163
          %v2330 = vmul.f32 %v2164, %v2164
          %v2331 = vmul.f32 %v2165, %v2165
          %v2332 = vmul.f32 %v2166, %v2166
          %v2333 = vmul.f32 %v2167, %v2167
          %v2334 = vmul.f32 %v2168, %v2168
          %v2335 = vmul.f32 %v2169, %v2169
          %v2336 = vmul.f32 %v2170, %v2170
          %v2337 = vmul.f32 %v2171, %v2171
          %v2338 = vmul.f32 %v2172, %v2172
          %v2339 = vmul.f32 %v2173, %v2173
          %v2340 = vadd.f32 %v2308, %v2316
          %v2341 = vadd.f32 %v2340, %v2324
          %v2342 = vadd.f32 %v2341, %v2332
          %v2343 = vrot.slane %v2342, 4
          %v2344 = vadd.f32 %v2342, %v2343
          %v2345 = vrot.slane %v2344, 2
          %v2346 = vadd.f32 %v2344, %v2345
          %v2347 = vrot.slane %v2346, 1
          %v2348 = vadd.f32 %v2346, %v2347
          %v2349 = vadd.f32 %v2309, %v2317
          %v2350 = vadd.f32 %v2349, %v2325
          %v2351 = vadd.f32 %v2350, %v2333
          %v2352 = vrot.slane %v2351, 4
          %v2353 = vadd.f32 %v2351, %v2352
          %v2354 = vrot.slane %v2353, 2
          %v2355 = vadd.f32 %v2353, %v2354
          %v2356 = vrot.slane %v2355, 1
          %v2357 = vadd.f32 %v2355, %v2356
          %v2358 = vadd.f32 %v2310, %v2318
          %v2359 = vadd.f32 %v2358, %v2326
          %v2360 = vadd.f32 %v2359, %v2334
          %v2361 = vrot.slane %v2360, 4
          %v2362 = vadd.f32 %v2360, %v2361
          %v2363 = vrot.slane %v2362, 2
          %v2364 = vadd.f32 %v2362, %v2363
          %v2365 = vrot.slane %v2364, 1
          %v2366 = vadd.f32 %v2364, %v2365
          %v2367 = vadd.f32 %v2311, %v2319
          %v2368 = vadd.f32 %v2367, %v2327
          %v2369 = vadd.f32 %v2368, %v2335
          %v2370 = vrot.slane %v2369, 4
          %v2371 = vadd.f32 %v2369, %v2370
          %v2372 = vrot.slane %v2371, 2
          %v2373 = vadd.f32 %v2371, %v2372
          %v2374 = vrot.slane %v2373, 1
          %v2375 = vadd.f32 %v2373, %v2374
          %v2376 = vadd.f32 %v2312, %v2320
          %v2377 = vadd.f32 %v2376, %v2328
          %v2378 = vadd.f32 %v2377, %v2336
          %v2379 = vrot.slane %v2378, 4
          %v2380 = vadd.f32 %v2378, %v2379
          %v2381 = vrot.slane %v2380, 2
          %v2382 = vadd.f32 %v2380, %v2381
          %v2383 = vrot.slane %v2382, 1
          %v2384 = vadd.f32 %v2382, %v2383
          %v2385 = vadd.f32 %v2313, %v2321
          %v2386 = vadd.f32 %v2385, %v2329
          %v2387 = vadd.f32 %v2386, %v2337
          %v2388 = vrot.slane %v2387, 4
          %v2389 = vadd.f32 %v2387, %v2388
          %v2390 = vrot.slane %v2389, 2
          %v2391 = vadd.f32 %v2389, %v2390
          %v2392 = vrot.slane %v2391, 1
          %v2393 = vadd.f32 %v2391, %v2392
          %v2394 = vadd.f32 %v2314, %v2322
          %v2395 = vadd.f32 %v2394, %v2330
          %v2396 = vadd.f32 %v2395, %v2338
          %v2397 = vrot.slane %v2396, 4
          %v2398 = vadd.f32 %v2396, %v2397
          %v2399 = vrot.slane %v2398, 2
          %v2400 = vadd.f32 %v2398, %v2399
          %v2401 = vrot.slane %v2400, 1
          %v2402 = vadd.f32 %v2400, %v2401
          %v2403 = vadd.f32 %v2315, %v2323
          %v2404 = vadd.f32 %v2403, %v2331
          %v2405 = vadd.f32 %v2404, %v2339
          %v2406 = vrot.slane %v2405, 4
          %v2407 = vadd.f32 %v2405, %v2406
          %v2408 = vrot.slane %v2407, 2
          %v2409 = vadd.f32 %v2407, %v2408
          %v2410 = vrot.slane %v2409, 1
          %v2411 = vadd.f32 %v2409, %v2410
          %v2420 = vcombine.low %v2348, %v2357
          %v2421 = vcombine.low %v2366, %v2375
          %v2422 = vcombine.low %v2384, %v2393
          %v2423 = vcombine.low %v2402, %v2411
          %v2425 = vunpack.c.l.s4 1966171168
          %v2426 = vunpack.c.0.s8 %v2425
          %v2427 = vlaneseq
          %v2428 = vshrl.u32 %v2427, 7
          %v2429 = vsub.s32 %v2426, %v2428
          %v2430 = vrot.slane %v2420, %v2429
          %v2432 = vunpack.c.l.s4 1966171168
          %v2433 = vunpack.c.0.s8 %v2432
          %v2434 = vlaneseq
          %v2435 = vshrl.u32 %v2434, 7
          %v2436 = vsub.s32 %v2433, %v2435
          %v2437 = vrot.slane %v2421, %v2436
          %v2439 = vunpack.c.l.s4 1966171168
          %v2440 = vunpack.c.0.s8 %v2439
          %v2441 = vlaneseq
          %v2442 = vshrl.u32 %v2441, 7
          %v2443 = vsub.s32 %v2440, %v2442
          %v2444 = vrot.slane %v2422, %v2443
          %v2446 = vunpack.c.l.s4 1966171168
          %v2447 = vunpack.c.0.s8 %v2446
          %v2448 = vlaneseq
          %v2449 = vshrl.u32 %v2448, 7
          %v2450 = vsub.s32 %v2447, %v2449
          %v2451 = vrot.slane %v2423, %v2450
          %v2452 = vcombine.low %v2430, %v2437
          %v2453 = vcombine.low %v2444, %v2451
          %v2455 = vunpack.c.l.s4 1966171168
          %v2456 = vunpack.c.0.s8 %v2455
          %v2457 = vlaneseq
          %v2458 = vshrl.u32 %v2457, 7
          %v2459 = vsub.s32 %v2456, %v2458
          %v2460 = vrot.slane %v2452, %v2459
          %v2462 = vunpack.c.l.s4 1966171168
          %v2463 = vunpack.c.0.s8 %v2462
          %v2464 = vlaneseq
          %v2465 = vshrl.u32 %v2464, 7
          %v2466 = vsub.s32 %v2463, %v2465
          %v2467 = vrot.slane %v2453, %v2466
          %v2468 = vcombine.low %v2460, %v2467
          %v2470 = vadd.f32 %v2307, %v2468
          %2471 = vst [vmem:[#allocation11] sm:$0xff] %v2470
          %v2472 = vmax.f32 %v2142, %v2150
          %v2473 = vmax.f32 %v2472, %v2158
          %v2474 = vmax.f32 %v2473, %v2166
          %v2475 = vrot.slane %v2474, 4
          %v2476 = vmax.f32 %v2474, %v2475
          %v2477 = vrot.slane %v2476, 2
          %v2478 = vmax.f32 %v2476, %v2477
          %v2479 = vrot.slane %v2478, 1
          %v2480 = vmax.f32 %v2478, %v2479
          %v2481 = vmax.f32 %v2143, %v2151
          %v2482 = vmax.f32 %v2481, %v2159
          %v2483 = vmax.f32 %v2482, %v2167
          %v2484 = vrot.slane %v2483, 4
          %v2485 = vmax.f32 %v2483, %v2484
          %v2486 = vrot.slane %v2485, 2
          %v2487 = vmax.f32 %v2485, %v2486
          %v2488 = vrot.slane %v2487, 1
          %v2489 = vmax.f32 %v2487, %v2488
          %v2490 = vmax.f32 %v2144, %v2152
          %v2491 = vmax.f32 %v2490, %v2160
          %v2492 = vmax.f32 %v2491, %v2168
          %v2493 = vrot.slane %v2492, 4
          %v2494 = vmax.f32 %v2492, %v2493
          %v2495 = vrot.slane %v2494, 2
          %v2496 = vmax.f32 %v2494, %v2495
          %v2497 = vrot.slane %v2496, 1
          %v2498 = vmax.f32 %v2496, %v2497
          %v2499 = vmax.f32 %v2145, %v2153
          %v2500 = vmax.f32 %v2499, %v2161
          %v2501 = vmax.f32 %v2500, %v2169
          %v2502 = vrot.slane %v2501, 4
          %v2503 = vmax.f32 %v2501, %v2502
          %v2504 = vrot.slane %v2503, 2
          %v2505 = vmax.f32 %v2503, %v2504
          %v2506 = vrot.slane %v2505, 1
          %v2507 = vmax.f32 %v2505, %v2506
          %v2508 = vmax.f32 %v2146, %v2154
          %v2509 = vmax.f32 %v2508, %v2162
          %v2510 = vmax.f32 %v2509, %v2170
          %v2511 = vrot.slane %v2510, 4
          %v2512 = vmax.f32 %v2510, %v2511
          %v2513 = vrot.slane %v2512, 2
          %v2514 = vmax.f32 %v2512, %v2513
          %v2515 = vrot.slane %v2514, 1
          %v2516 = vmax.f32 %v2514, %v2515
          %v2517 = vmax.f32 %v2147, %v2155
          %v2518 = vmax.f32 %v2517, %v2163
          %v2519 = vmax.f32 %v2518, %v2171
          %v2520 = vrot.slane %v2519, 4
          %v2521 = vmax.f32 %v2519, %v2520
          %v2522 = vrot.slane %v2521, 2
          %v2523 = vmax.f32 %v2521, %v2522
          %v2524 = vrot.slane %v2523, 1
          %v2525 = vmax.f32 %v2523, %v2524
          %v2526 = vmax.f32 %v2148, %v2156
          %v2527 = vmax.f32 %v2526, %v2164
          %v2528 = vmax.f32 %v2527, %v2172
          %v2529 = vrot.slane %v2528, 4
          %v2530 = vmax.f32 %v2528, %v2529
          %v2531 = vrot.slane %v2530, 2
          %v2532 = vmax.f32 %v2530, %v2531
          %v2533 = vrot.slane %v2532, 1
          %v2534 = vmax.f32 %v2532, %v2533
          %v2535 = vmax.f32 %v2149, %v2157
          %v2536 = vmax.f32 %v2535, %v2165
          %v2537 = vmax.f32 %v2536, %v2173
          %v2538 = vrot.slane %v2537, 4
          %v2539 = vmax.f32 %v2537, %v2538
          %v2540 = vrot.slane %v2539, 2
          %v2541 = vmax.f32 %v2539, %v2540
          %v2542 = vrot.slane %v2541, 1
          %v2543 = vmax.f32 %v2541, %v2542
          %v2544 = vmin.f32 %v2142, %v2150
          %v2545 = vmin.f32 %v2544, %v2158
          %v2546 = vmin.f32 %v2545, %v2166
          %v2547 = vrot.slane %v2546, 4
          %v2548 = vmin.f32 %v2546, %v2547
          %v2549 = vrot.slane %v2548, 2
          %v2550 = vmin.f32 %v2548, %v2549
          %v2551 = vrot.slane %v2550, 1
          %v2552 = vmin.f32 %v2550, %v2551
          %v2553 = vmin.f32 %v2143, %v2151
          %v2554 = vmin.f32 %v2553, %v2159
          %v2555 = vmin.f32 %v2554, %v2167
          %v2556 = vrot.slane %v2555, 4
          %v2557 = vmin.f32 %v2555, %v2556
          %v2558 = vrot.slane %v2557, 2
          %v2559 = vmin.f32 %v2557, %v2558
          %v2560 = vrot.slane %v2559, 1
          %v2561 = vmin.f32 %v2559, %v2560
          %v2562 = vmin.f32 %v2144, %v2152
          %v2563 = vmin.f32 %v2562, %v2160
          %v2564 = vmin.f32 %v2563, %v2168
          %v2565 = vrot.slane %v2564, 4
          %v2566 = vmin.f32 %v2564, %v2565
          %v2567 = vrot.slane %v2566, 2
          %v2568 = vmin.f32 %v2566, %v2567
          %v2569 = vrot.slane %v2568, 1
          %v2570 = vmin.f32 %v2568, %v2569
          %v2571 = vmin.f32 %v2145, %v2153
          %v2572 = vmin.f32 %v2571, %v2161
          %v2573 = vmin.f32 %v2572, %v2169
          %v2574 = vrot.slane %v2573, 4
          %v2575 = vmin.f32 %v2573, %v2574
          %v2576 = vrot.slane %v2575, 2
          %v2577 = vmin.f32 %v2575, %v2576
          %v2578 = vrot.slane %v2577, 1
          %v2579 = vmin.f32 %v2577, %v2578
          %v2580 = vmin.f32 %v2146, %v2154
          %v2581 = vmin.f32 %v2580, %v2162
          %v2582 = vmin.f32 %v2581, %v2170
          %v2583 = vrot.slane %v2582, 4
          %v2584 = vmin.f32 %v2582, %v2583
          %v2585 = vrot.slane %v2584, 2
          %v2586 = vmin.f32 %v2584, %v2585
          %v2587 = vrot.slane %v2586, 1
          %v2588 = vmin.f32 %v2586, %v2587
          %v2589 = vmin.f32 %v2147, %v2155
          %v2590 = vmin.f32 %v2589, %v2163
          %v2591 = vmin.f32 %v2590, %v2171
          %v2592 = vrot.slane %v2591, 4
          %v2593 = vmin.f32 %v2591, %v2592
          %v2594 = vrot.slane %v2593, 2
          %v2595 = vmin.f32 %v2593, %v2594
          %v2596 = vrot.slane %v2595, 1
          %v2597 = vmin.f32 %v2595, %v2596
          %v2598 = vmin.f32 %v2148, %v2156
          %v2599 = vmin.f32 %v2598, %v2164
          %v2600 = vmin.f32 %v2599, %v2172
          %v2601 = vrot.slane %v2600, 4
          %v2602 = vmin.f32 %v2600, %v2601
          %v2603 = vrot.slane %v2602, 2
          %v2604 = vmin.f32 %v2602, %v2603
          %v2605 = vrot.slane %v2604, 1
          %v2606 = vmin.f32 %v2604, %v2605
          %v2607 = vmin.f32 %v2149, %v2157
          %v2608 = vmin.f32 %v2607, %v2165
          %v2609 = vmin.f32 %v2608, %v2173
          %v2610 = vrot.slane %v2609, 4
          %v2611 = vmin.f32 %v2609, %v2610
          %v2612 = vrot.slane %v2611, 2
          %v2613 = vmin.f32 %v2611, %v2612
          %v2614 = vrot.slane %v2613, 1
          %v2615 = vmin.f32 %v2613, %v2614
          // Predicated region
          $region161: #{tpu_custom_call.1} parent=155 // pred_check
            %p2616 = pneg %p805
          $region162: #{tpu_custom_call.1} parent=155 // pred_check_branch
            %2618 = sbr.rel (%p2616) target = $region164
          $region163: #{tpu_custom_call.1} parent=155 // pred_region
            %2619 = vst [vmem:[#allocation12] sm:$0xff] -inf
            %2620 = vst [vmem:[#allocation13] sm:$0xff] inf
          $region164: #{tpu_custom_call.1} parent=155 // pred_fallthru
            _
          %v2621 = vld [vmem:[#allocation12] sm:$0xff]
          %v2630 = vcombine.low %v2480, %v2489
          %v2631 = vcombine.low %v2498, %v2507
          %v2632 = vcombine.low %v2516, %v2525
          %v2633 = vcombine.low %v2534, %v2543
          %v2635 = vunpack.c.l.s4 1966171168
          %v2636 = vunpack.c.0.s8 %v2635
          %v2637 = vlaneseq
          %v2638 = vshrl.u32 %v2637, 7
          %v2639 = vsub.s32 %v2636, %v2638
          %v2640 = vrot.slane %v2630, %v2639
          %v2642 = vunpack.c.l.s4 1966171168
          %v2643 = vunpack.c.0.s8 %v2642
          %v2644 = vlaneseq
          %v2645 = vshrl.u32 %v2644, 7
          %v2646 = vsub.s32 %v2643, %v2645
          %v2647 = vrot.slane %v2631, %v2646
          %v2649 = vunpack.c.l.s4 1966171168
          %v2650 = vunpack.c.0.s8 %v2649
          %v2651 = vlaneseq
          %v2652 = vshrl.u32 %v2651, 7
          %v2653 = vsub.s32 %v2650, %v2652
          %v2654 = vrot.slane %v2632, %v2653
          %v2656 = vunpack.c.l.s4 1966171168
          %v2657 = vunpack.c.0.s8 %v2656
          %v2658 = vlaneseq
          %v2659 = vshrl.u32 %v2658, 7
          %v2660 = vsub.s32 %v2657, %v2659
          %v2661 = vrot.slane %v2633, %v2660
          %v2662 = vcombine.low %v2640, %v2647
          %v2663 = vcombine.low %v2654, %v2661
          %v2665 = vunpack.c.l.s4 1966171168
          %v2666 = vunpack.c.0.s8 %v2665
          %v2667 = vlaneseq
          %v2668 = vshrl.u32 %v2667, 7
          %v2669 = vsub.s32 %v2666, %v2668
          %v2670 = vrot.slane %v2662, %v2669
          %v2672 = vunpack.c.l.s4 1966171168
          %v2673 = vunpack.c.0.s8 %v2672
          %v2674 = vlaneseq
          %v2675 = vshrl.u32 %v2674, 7
          %v2676 = vsub.s32 %v2673, %v2675
          %v2677 = vrot.slane %v2663, %v2676
          %v2678 = vcombine.low %v2670, %v2677
          %v2680 = vmax.f32 %v2621, %v2678
          %2681 = vst [vmem:[#allocation12] sm:$0xff] %v2680
          %v2682 = vld [vmem:[#allocation13] sm:$0xff]
          %v2691 = vcombine.low %v2552, %v2561
          %v2692 = vcombine.low %v2570, %v2579
          %v2693 = vcombine.low %v2588, %v2597
          %v2694 = vcombine.low %v2606, %v2615
          %v2696 = vunpack.c.l.s4 1966171168
          %v2697 = vunpack.c.0.s8 %v2696
          %v2698 = vlaneseq
          %v2699 = vshrl.u32 %v2698, 7
          %v2700 = vsub.s32 %v2697, %v2699
          %v2701 = vrot.slane %v2691, %v2700
          %v2703 = vunpack.c.l.s4 1966171168
          %v2704 = vunpack.c.0.s8 %v2703
          %v2705 = vlaneseq
          %v2706 = vshrl.u32 %v2705, 7
          %v2707 = vsub.s32 %v2704, %v2706
          %v2708 = vrot.slane %v2692, %v2707
          %v2710 = vunpack.c.l.s4 1966171168
          %v2711 = vunpack.c.0.s8 %v2710
          %v2712 = vlaneseq
          %v2713 = vshrl.u32 %v2712, 7
          %v2714 = vsub.s32 %v2711, %v2713
          %v2715 = vrot.slane %v2693, %v2714
          %v2717 = vunpack.c.l.s4 1966171168
          %v2718 = vunpack.c.0.s8 %v2717
          %v2719 = vlaneseq
          %v2720 = vshrl.u32 %v2719, 7
          %v2721 = vsub.s32 %v2718, %v2720
          %v2722 = vrot.slane %v2694, %v2721
          %v2723 = vcombine.low %v2701, %v2708
          %v2724 = vcombine.low %v2715, %v2722
          %v2726 = vunpack.c.l.s4 1966171168
          %v2727 = vunpack.c.0.s8 %v2726
          %v2728 = vlaneseq
          %v2729 = vshrl.u32 %v2728, 7
          %v2730 = vsub.s32 %v2727, %v2729
          %v2731 = vrot.slane %v2723, %v2730
          %v2733 = vunpack.c.l.s4 1966171168
          %v2734 = vunpack.c.0.s8 %v2733
          %v2735 = vlaneseq
          %v2736 = vshrl.u32 %v2735, 7
          %v2737 = vsub.s32 %v2734, %v2736
          %v2738 = vrot.slane %v2724, %v2737
          %v2739 = vcombine.low %v2731, %v2738
          %v2741 = vmin.f32 %v2682, %v2739
          %2742 = vst [vmem:[#allocation13] sm:$0xff] %v2741
          // Predicated region
          $region165: #{tpu_custom_call.1} parent=155 // pred_check
            %p2743 = pneg %p809
          $region166: #{tpu_custom_call.1} parent=155 // pred_check_branch
            %2745 = sbr.rel (%p2743) target = $region168
          $region167: #{tpu_custom_call.1} parent=155 // pred_region
            %v2746 = vlaneseq
            %v2747 = vshrl.u32 %v2746, 7
            %v2748 = vstv %s44
            %vm2749 = vcmp.eq.s32.totalorder %v2747, %v2748
            %v2750 = vld [vmem:[#allocation12] sm:$0xff]
            %v2751 = vld [vmem:[#allocation14] sm:$0xff]
            %v2752 = vld [vmem:[#allocation14 + $0x8] sm:$0xff]
            %v2753 = vld [vmem:[#allocation14 + $0x10] sm:$0xff]
            %v2754 = vld [vmem:[#allocation14 + $0x18] sm:$0xff]
            %v2756 = vlaneseq
            %v2757 = vshrl.u32 %v2756, 7
            %v2758 = vsub.s32 0, %v2757
            %v2759 = vrot.slane %v2750, %v2758
            %v2760 = vlaneseq
            %v2761 = vshrl.u32 %v2760, 7
            %v2762 = vsub.s32 1, %v2761
            %v2763 = vrot.slane %v2750, %v2762
            %v2764 = vlaneseq
            %v2765 = vshrl.u32 %v2764, 7
            %v2766 = vsub.s32 2, %v2765
            %v2767 = vrot.slane %v2750, %v2766
            %v2768 = vlaneseq
            %v2769 = vshrl.u32 %v2768, 7
            %v2770 = vsub.s32 3, %v2769
            %v2771 = vrot.slane %v2750, %v2770
            %v2772 = vlaneseq
            %v2773 = vshrl.u32 %v2772, 7
            %v2774 = vsub.s32 4, %v2773
            %v2775 = vrot.slane %v2750, %v2774
            %v2776 = vlaneseq
            %v2777 = vshrl.u32 %v2776, 7
            %v2778 = vsub.s32 5, %v2777
            %v2779 = vrot.slane %v2750, %v2778
            %v2780 = vlaneseq
            %v2781 = vshrl.u32 %v2780, 7
            %v2782 = vsub.s32 6, %v2781
            %v2783 = vrot.slane %v2750, %v2782
            %v2784 = vlaneseq
            %v2785 = vshrl.u32 %v2784, 7
            %v2786 = vsub.s32 7, %v2785
            %v2787 = vrot.slane %v2750, %v2786
            %v2800 = vcombine.high %v2751, %v2751
            %v2801 = vcombine.high %v2752, %v2752
            %v2802 = vcombine.high %v2753, %v2753
            %v2803 = vcombine.high %v2754, %v2754
            %v2808 = vsel %vm2749, %v2759, %v2751
            %v2809 = vsel %vm2749, %v2763, %v2800
            %v2810 = vsel %vm2749, %v2767, %v2752
            %v2811 = vsel %vm2749, %v2771, %v2801
            %v2812 = vsel %vm2749, %v2775, %v2753
            %v2813 = vsel %vm2749, %v2779, %v2802
            %v2814 = vsel %vm2749, %v2783, %v2754
            %v2815 = vsel %vm2749, %v2787, %v2803
            %v2824 = vcombine.low %v2808, %v2809
            %v2825 = vcombine.low %v2810, %v2811
            %v2826 = vcombine.low %v2812, %v2813
            %v2827 = vcombine.low %v2814, %v2815
            %2832 = vst [vmem:[#allocation14] sm:$0xff] %v2824
            %2833 = vst [vmem:[#allocation14 + $0x8] sm:$0xff] %v2825
            %2834 = vst [vmem:[#allocation14 + $0x10] sm:$0xff] %v2826
            %2835 = vst [vmem:[#allocation14 + $0x18] sm:$0xff] %v2827
            %v2836 = vld [vmem:[#allocation13] sm:$0xff]
            %v2837 = vld [vmem:[#allocation15] sm:$0xff]
            %v2838 = vld [vmem:[#allocation15 + $0x8] sm:$0xff]
            %v2839 = vld [vmem:[#allocation15 + $0x10] sm:$0xff]
            %v2840 = vld [vmem:[#allocation15 + $0x18] sm:$0xff]
            %v2842 = vlaneseq
            %v2843 = vshrl.u32 %v2842, 7
            %v2844 = vsub.s32 0, %v2843
            %v2845 = vrot.slane %v2836, %v2844
            %v2846 = vlaneseq
            %v2847 = vshrl.u32 %v2846, 7
            %v2848 = vsub.s32 1, %v2847
            %v2849 = vrot.slane %v2836, %v2848
            %v2850 = vlaneseq
            %v2851 = vshrl.u32 %v2850, 7
            %v2852 = vsub.s32 2, %v2851
            %v2853 = vrot.slane %v2836, %v2852
            %v2854 = vlaneseq
            %v2855 = vshrl.u32 %v2854, 7
            %v2856 = vsub.s32 3, %v2855
            %v2857 = vrot.slane %v2836, %v2856
            %v2858 = vlaneseq
            %v2859 = vshrl.u32 %v2858, 7
            %v2860 = vsub.s32 4, %v2859
            %v2861 = vrot.slane %v2836, %v2860
            %v2862 = vlaneseq
            %v2863 = vshrl.u32 %v2862, 7
            %v2864 = vsub.s32 5, %v2863
            %v2865 = vrot.slane %v2836, %v2864
            %v2866 = vlaneseq
            %v2867 = vshrl.u32 %v2866, 7
            %v2868 = vsub.s32 6, %v2867
            %v2869 = vrot.slane %v2836, %v2868
            %v2870 = vlaneseq
            %v2871 = vshrl.u32 %v2870, 7
            %v2872 = vsub.s32 7, %v2871
            %v2873 = vrot.slane %v2836, %v2872
            %v2886 = vcombine.high %v2837, %v2837
            %v2887 = vcombine.high %v2838, %v2838
            %v2888 = vcombine.high %v2839, %v2839
            %v2889 = vcombine.high %v2840, %v2840
            %v2894 = vsel %vm2749, %v2845, %v2837
            %v2895 = vsel %vm2749, %v2849, %v2886
            %v2896 = vsel %vm2749, %v2853, %v2838
            %v2897 = vsel %vm2749, %v2857, %v2887
            %v2898 = vsel %vm2749, %v2861, %v2839
            %v2899 = vsel %vm2749, %v2865, %v2888
            %v2900 = vsel %vm2749, %v2869, %v2840
            %v2901 = vsel %vm2749, %v2873, %v2889
            %v2910 = vcombine.low %v2894, %v2895
            %v2911 = vcombine.low %v2896, %v2897
            %v2912 = vcombine.low %v2898, %v2899
            %v2913 = vcombine.low %v2900, %v2901
            %2918 = vst [vmem:[#allocation15] sm:$0xff] %v2910
            %2919 = vst [vmem:[#allocation15 + $0x8] sm:$0xff] %v2911
            %2920 = vst [vmem:[#allocation15 + $0x10] sm:$0xff] %v2912
            %2921 = vst [vmem:[#allocation15 + $0x18] sm:$0xff] %v2913
          $region168: #{tpu_custom_call.1} parent=155 // pred_fallthru
            _
          // Predicated region
          $region169: #{tpu_custom_call.1} parent=155 // pred_check
            _
          $region170: #{tpu_custom_call.1} parent=155 // pred_check_branch
            %2923 = sbr.rel (%p810) target = $region172
          $region171: #{tpu_custom_call.1} parent=155 // pred_region
            %v2924 = vld [vmem:[#allocation10] sm:$0xff]
            %v2925 = vld [vmem:[#allocation11] sm:$0xff]
            %v2926 = vld [vmem:[%s11] sm:$0xff]
            %v2927 = vld [vmem:[%s12] sm:$0xff]
            %v2928 = vmul.f32 %v2924, 0.001953125
            %v2929 = vmul.f32 %v2925, 0.001953125
            %v2930 = vmul.f32 %v2928, %v2928
            %v2931 = vsub.f32 %v2929, %v2930
            %v2932 = vadd.f32 %v2931, 1e-05
            %v2933 = vrsqrt.pop %v2932
            %v2934 = vmul.f32 %v2926, %v2933
            %v2935 = vmul.f32 %v2928, %v2934
            %v2936 = vsub.f32 %v2927, %v2935
            %vm2937 = vcmp.ge.f32.partialorder %v2934, 0.0
            %v2938 = vld [vmem:[#allocation14] sm:$0xff]
            %v2939 = vld [vmem:[#allocation14 + $0x8] sm:$0xff]
            %v2940 = vld [vmem:[#allocation14 + $0x10] sm:$0xff]
            %v2941 = vld [vmem:[#allocation14 + $0x18] sm:$0xff]
            %v2942 = vld [vmem:[#allocation15] sm:$0xff]
            %v2943 = vld [vmem:[#allocation15 + $0x8] sm:$0xff]
            %v2944 = vld [vmem:[#allocation15 + $0x10] sm:$0xff]
            %v2945 = vld [vmem:[#allocation15 + $0x18] sm:$0xff]
            %v2946 = vsel %vm2937, 1, 0
            %v2947 = vlaneseq
            %v2948 = vshrl.u32 %v2947, 7
            %v2949 = vsub.s32 0, %v2948
            %v2950 = vrot.slane %v2946, %v2949
            %v2951 = vlaneseq
            %v2952 = vshrl.u32 %v2951, 7
            %v2953 = vsub.s32 1, %v2952
            %v2954 = vrot.slane %v2946, %v2953
            %v2955 = vlaneseq
            %v2956 = vshrl.u32 %v2955, 7
            %v2957 = vsub.s32 2, %v2956
            %v2958 = vrot.slane %v2946, %v2957
            %v2959 = vlaneseq
            %v2960 = vshrl.u32 %v2959, 7
            %v2961 = vsub.s32 3, %v2960
            %v2962 = vrot.slane %v2946, %v2961
            %v2963 = vlaneseq
            %v2964 = vshrl.u32 %v2963, 7
            %v2965 = vsub.s32 4, %v2964
            %v2966 = vrot.slane %v2946, %v2965
            %v2967 = vlaneseq
            %v2968 = vshrl.u32 %v2967, 7
            %v2969 = vsub.s32 5, %v2968
            %v2970 = vrot.slane %v2946, %v2969
            %v2971 = vlaneseq
            %v2972 = vshrl.u32 %v2971, 7
            %v2973 = vsub.s32 6, %v2972
            %v2974 = vrot.slane %v2946, %v2973
            %v2975 = vlaneseq
            %v2976 = vshrl.u32 %v2975, 7
            %v2977 = vsub.s32 7, %v2976
            %v2978 = vrot.slane %v2946, %v2977
            %vm2979 = vcmp.eq.s32.totalorder %v2950, 1
            %vm2980 = vcmp.eq.s32.totalorder %v2954, 1
            %vm2981 = vcmp.eq.s32.totalorder %v2958, 1
            %vm2982 = vcmp.eq.s32.totalorder %v2962, 1
            %vm2983 = vcmp.eq.s32.totalorder %v2966, 1
            %vm2984 = vcmp.eq.s32.totalorder %v2970, 1
            %vm2985 = vcmp.eq.s32.totalorder %v2974, 1
            %vm2986 = vcmp.eq.s32.totalorder %v2978, 1
            %v2991 = vcombine.high %v2938, %v2938
            %v2992 = vcombine.high %v2939, %v2939
            %v2993 = vcombine.high %v2940, %v2940
            %v2994 = vcombine.high %v2941, %v2941
            %v3003 = vcombine.high %v2942, %v2942
            %v3004 = vcombine.high %v2943, %v2943
            %v3005 = vcombine.high %v2944, %v2944
            %v3006 = vcombine.high %v2945, %v2945
            %v3011 = vsel %vm2979, %v2938, %v2942
            %v3012 = vsel %vm2980, %v2991, %v3003
            %v3013 = vsel %vm2981, %v2939, %v2943
            %v3014 = vsel %vm2982, %v2992, %v3004
            %v3015 = vsel %vm2983, %v2940, %v2944
            %v3016 = vsel %vm2984, %v2993, %v3005
            %v3017 = vsel %vm2985, %v2941, %v2945
            %v3018 = vsel %vm2986, %v2994, %v3006
            %v3020 = vlaneseq
            %v3021 = vshrl.u32 %v3020, 7
            %v3022 = vsub.s32 0, %v3021
            %v3023 = vrot.slane %v2934, %v3022
            %v3024 = vlaneseq
            %v3025 = vshrl.u32 %v3024, 7
            %v3026 = vsub.s32 1, %v3025
            %v3027 = vrot.slane %v2934, %v3026
            %v3028 = vlaneseq
            %v3029 = vshrl.u32 %v3028, 7
            %v3030 = vsub.s32 2, %v3029
            %v3031 = vrot.slane %v2934, %v3030
            %v3032 = vlaneseq
            %v3033 = vshrl.u32 %v3032, 7
            %v3034 = vsub.s32 3, %v3033
            %v3035 = vrot.slane %v2934, %v3034
            %v3036 = vlaneseq
            %v3037 = vshrl.u32 %v3036, 7
            %v3038 = vsub.s32 4, %v3037
            %v3039 = vrot.slane %v2934, %v3038
            %v3040 = vlaneseq
            %v3041 = vshrl.u32 %v3040, 7
            %v3042 = vsub.s32 5, %v3041
            %v3043 = vrot.slane %v2934, %v3042
            %v3044 = vlaneseq
            %v3045 = vshrl.u32 %v3044, 7
            %v3046 = vsub.s32 6, %v3045
            %v3047 = vrot.slane %v2934, %v3046
            %v3048 = vlaneseq
            %v3049 = vshrl.u32 %v3048, 7
            %v3050 = vsub.s32 7, %v3049
            %v3051 = vrot.slane %v2934, %v3050
            %v3060 = vmul.f32 %v3011, %v3023
            %v3061 = vmul.f32 %v3012, %v3027
            %v3062 = vmul.f32 %v3013, %v3031
            %v3063 = vmul.f32 %v3014, %v3035
            %v3064 = vmul.f32 %v3015, %v3039
            %v3065 = vmul.f32 %v3016, %v3043
            %v3066 = vmul.f32 %v3017, %v3047
            %v3067 = vmul.f32 %v3018, %v3051
            %v3069 = vlaneseq
            %v3070 = vshrl.u32 %v3069, 7
            %v3071 = vsub.s32 0, %v3070
            %v3072 = vrot.slane %v2936, %v3071
            %v3073 = vlaneseq
            %v3074 = vshrl.u32 %v3073, 7
            %v3075 = vsub.s32 1, %v3074
            %v3076 = vrot.slane %v2936, %v3075
            %v3077 = vlaneseq
            %v3078 = vshrl.u32 %v3077, 7
            %v3079 = vsub.s32 2, %v3078
            %v3080 = vrot.slane %v2936, %v3079
            %v3081 = vlaneseq
            %v3082 = vshrl.u32 %v3081, 7
            %v3083 = vsub.s32 3, %v3082
            %v3084 = vrot.slane %v2936, %v3083
            %v3085 = vlaneseq
            %v3086 = vshrl.u32 %v3085, 7
            %v3087 = vsub.s32 4, %v3086
            %v3088 = vrot.slane %v2936, %v3087
            %v3089 = vlaneseq
            %v3090 = vshrl.u32 %v3089, 7
            %v3091 = vsub.s32 5, %v3090
            %v3092 = vrot.slane %v2936, %v3091
            %v3093 = vlaneseq
            %v3094 = vshrl.u32 %v3093, 7
            %v3095 = vsub.s32 6, %v3094
            %v3096 = vrot.slane %v2936, %v3095
            %v3097 = vlaneseq
            %v3098 = vshrl.u32 %v3097, 7
            %v3099 = vsub.s32 7, %v3098
            %v3100 = vrot.slane %v2936, %v3099
            %v3109 = vadd.f32 %v3060, %v3072
            %v3110 = vadd.f32 %v3061, %v3076
            %v3111 = vadd.f32 %v3062, %v3080
            %v3112 = vadd.f32 %v3063, %v3084
            %v3113 = vadd.f32 %v3064, %v3088
            %v3114 = vadd.f32 %v3065, %v3092
            %v3115 = vadd.f32 %v3066, %v3096
            %v3116 = vadd.f32 %v3067, %v3100
            %v3117 = vpack.c.bf16 %v3109, %v3109
            %v3118 = vpack.c.bf16 %v3110, %v3110
            %v3119 = vpack.c.bf16 %v3111, %v3111
            %v3120 = vpack.c.bf16 %v3112, %v3112
            %v3121 = vpack.c.bf16 %v3113, %v3113
            %v3122 = vpack.c.bf16 %v3114, %v3114
            %v3123 = vpack.c.bf16 %v3115, %v3115
            %v3124 = vpack.c.bf16 %v3116, %v3116
            %v3125 = vld [vmem:[#allocation19] sm:$0xff]
            %v3126 = vld [vmem:[#allocation19 + $0x8] sm:$0xff]
            %v3127 = vld [vmem:[#allocation19 + $0x10] sm:$0xff]
            %v3128 = vld [vmem:[#allocation19 + $0x18] sm:$0xff]
            %v3129 = vld [vmem:[#allocation19 + $0x20] sm:$0xff]
            %v3130 = vld [vmem:[#allocation19 + $0x28] sm:$0xff]
            %v3131 = vld [vmem:[#allocation19 + $0x30] sm:$0xff]
            %v3132 = vld [vmem:[#allocation19 + $0x38] sm:$0xff]
            %v3133 = vld [vmem:[#allocation19 + $0x40] sm:$0xff]
            %v3134 = vld [vmem:[#allocation19 + $0x48] sm:$0xff]
            %v3135 = vld [vmem:[#allocation19 + $0x50] sm:$0xff]
            %v3136 = vld [vmem:[#allocation19 + $0x58] sm:$0xff]
            %v3137 = vld [vmem:[#allocation19 + $0x60] sm:$0xff]
            %v3138 = vld [vmem:[#allocation19 + $0x68] sm:$0xff]
            %v3139 = vld [vmem:[#allocation19 + $0x70] sm:$0xff]
            %v3140 = vld [vmem:[#allocation19 + $0x78] sm:$0xff]
            %v3141 = vld [vmem:[#allocation19 + $0x80] sm:$0xff]
            %v3142 = vld [vmem:[#allocation19 + $0x88] sm:$0xff]
            %v3143 = vld [vmem:[#allocation19 + $0x90] sm:$0xff]
            %v3144 = vld [vmem:[#allocation19 + $0x98] sm:$0xff]
            %v3145 = vld [vmem:[#allocation19 + $0xa0] sm:$0xff]
            %v3146 = vld [vmem:[#allocation19 + $0xa8] sm:$0xff]
            %v3147 = vld [vmem:[#allocation19 + $0xb0] sm:$0xff]
            %v3148 = vld [vmem:[#allocation19 + $0xb8] sm:$0xff]
            %v3149 = vld [vmem:[#allocation19 + $0xc0] sm:$0xff]
            %v3150 = vld [vmem:[#allocation19 + $0xc8] sm:$0xff]
            %v3151 = vld [vmem:[#allocation19 + $0xd0] sm:$0xff]
            %v3152 = vld [vmem:[#allocation19 + $0xd8] sm:$0xff]
            %v3153 = vld [vmem:[#allocation19 + $0xe0] sm:$0xff]
            %v3154 = vld [vmem:[#allocation19 + $0xe8] sm:$0xff]
            %v3155 = vld [vmem:[#allocation19 + $0xf0] sm:$0xff]
            %v3156 = vld [vmem:[#allocation19 + $0xf8] sm:$0xff]
            %v3157 = vld [vmem:[#allocation19 + $0x100] sm:$0xff]
            %v3158 = vld [vmem:[#allocation19 + $0x108] sm:$0xff]
            %v3159 = vld [vmem:[#allocation19 + $0x110] sm:$0xff]
            %v3160 = vld [vmem:[#allocation19 + $0x118] sm:$0xff]
            %v3161 = vld [vmem:[#allocation19 + $0x120] sm:$0xff]
            %v3162 = vld [vmem:[#allocation19 + $0x128] sm:$0xff]
            %v3163 = vld [vmem:[#allocation19 + $0x130] sm:$0xff]
            %v3164 = vld [vmem:[#allocation19 + $0x138] sm:$0xff]
            %v3165 = vld [vmem:[#allocation19 + $0x140] sm:$0xff]
            %v3166 = vld [vmem:[#allocation19 + $0x148] sm:$0xff]
            %v3167 = vld [vmem:[#allocation19 + $0x150] sm:$0xff]
            %v3168 = vld [vmem:[#allocation19 + $0x158] sm:$0xff]
            %v3169 = vld [vmem:[#allocation19 + $0x160] sm:$0xff]
            %v3170 = vld [vmem:[#allocation19 + $0x168] sm:$0xff]
            %v3171 = vld [vmem:[#allocation19 + $0x170] sm:$0xff]
            %v3172 = vld [vmem:[#allocation19 + $0x178] sm:$0xff]
            %v3173 = vld [vmem:[#allocation19 + $0x180] sm:$0xff]
            %v3174 = vld [vmem:[#allocation19 + $0x188] sm:$0xff]
            %v3175 = vld [vmem:[#allocation19 + $0x190] sm:$0xff]
            %v3176 = vld [vmem:[#allocation19 + $0x198] sm:$0xff]
            %v3177 = vld [vmem:[#allocation19 + $0x1a0] sm:$0xff]
            %v3178 = vld [vmem:[#allocation19 + $0x1a8] sm:$0xff]
            %v3179 = vld [vmem:[#allocation19 + $0x1b0] sm:$0xff]
            %v3180 = vld [vmem:[#allocation19 + $0x1b8] sm:$0xff]
            %v3181 = vld [vmem:[#allocation19 + $0x1c0] sm:$0xff]
            %v3182 = vld [vmem:[#allocation19 + $0x1c8] sm:$0xff]
            %v3183 = vld [vmem:[#allocation19 + $0x1d0] sm:$0xff]
            %v3184 = vld [vmem:[#allocation19 + $0x1d8] sm:$0xff]
            %v3185 = vld [vmem:[#allocation19 + $0x1e0] sm:$0xff]
            %v3186 = vld [vmem:[#allocation19 + $0x1e8] sm:$0xff]
            %v3187 = vld [vmem:[#allocation19 + $0x1f0] sm:$0xff]
            %v3188 = vld [vmem:[#allocation19 + $0x1f8] sm:$0xff]
            %v3189 = vld [vmem:[#allocation19 + $0x200] sm:$0xff]
            %v3190 = vld [vmem:[#allocation19 + $0x208] sm:$0xff]
            %v3191 = vld [vmem:[#allocation19 + $0x210] sm:$0xff]
            %v3192 = vld [vmem:[#allocation19 + $0x218] sm:$0xff]
            %v3193 = vld [vmem:[#allocation19 + $0x220] sm:$0xff]
            %v3194 = vld [vmem:[#allocation19 + $0x228] sm:$0xff]
            %v3195 = vld [vmem:[#allocation19 + $0x230] sm:$0xff]
            %v3196 = vld [vmem:[#allocation19 + $0x238] sm:$0xff]
            %v3197 = vld [vmem:[#allocation19 + $0x240] sm:$0xff]
            %v3198 = vld [vmem:[#allocation19 + $0x248] sm:$0xff]
            %v3199 = vld [vmem:[#allocation19 + $0x250] sm:$0xff]
            %v3200 = vld [vmem:[#allocation19 + $0x258] sm:$0xff]
            %v3201 = vld [vmem:[#allocation19 + $0x260] sm:$0xff]
            %v3202 = vld [vmem:[#allocation19 + $0x268] sm:$0xff]
            %v3203 = vld [vmem:[#allocation19 + $0x270] sm:$0xff]
            %v3204 = vld [vmem:[#allocation19 + $0x278] sm:$0xff]
            %v3205 = vld [vmem:[#allocation19 + $0x280] sm:$0xff]
            %v3206 = vld [vmem:[#allocation19 + $0x288] sm:$0xff]
            %v3207 = vld [vmem:[#allocation19 + $0x290] sm:$0xff]
            %v3208 = vld [vmem:[#allocation19 + $0x298] sm:$0xff]
            %v3209 = vld [vmem:[#allocation19 + $0x2a0] sm:$0xff]
            %v3210 = vld [vmem:[#allocation19 + $0x2a8] sm:$0xff]
            %v3211 = vld [vmem:[#allocation19 + $0x2b0] sm:$0xff]
            %v3212 = vld [vmem:[#allocation19 + $0x2b8] sm:$0xff]
            %v3213 = vld [vmem:[#allocation19 + $0x2c0] sm:$0xff]
            %v3214 = vld [vmem:[#allocation19 + $0x2c8] sm:$0xff]
            %v3215 = vld [vmem:[#allocation19 + $0x2d0] sm:$0xff]
            %v3216 = vld [vmem:[#allocation19 + $0x2d8] sm:$0xff]
            %v3217 = vld [vmem:[#allocation19 + $0x2e0] sm:$0xff]
            %v3218 = vld [vmem:[#allocation19 + $0x2e8] sm:$0xff]
            %v3219 = vld [vmem:[#allocation19 + $0x2f0] sm:$0xff]
            %v3220 = vld [vmem:[#allocation19 + $0x2f8] sm:$0xff]
            %v3221 = vld [vmem:[#allocation19 + $0x300] sm:$0xff]
            %v3222 = vld [vmem:[#allocation19 + $0x308] sm:$0xff]
            %v3223 = vld [vmem:[#allocation19 + $0x310] sm:$0xff]
            %v3224 = vld [vmem:[#allocation19 + $0x318] sm:$0xff]
            %v3225 = vld [vmem:[#allocation19 + $0x320] sm:$0xff]
            %v3226 = vld [vmem:[#allocation19 + $0x328] sm:$0xff]
            %v3227 = vld [vmem:[#allocation19 + $0x330] sm:$0xff]
            %v3228 = vld [vmem:[#allocation19 + $0x338] sm:$0xff]
            %v3229 = vld [vmem:[#allocation19 + $0x340] sm:$0xff]
            %v3230 = vld [vmem:[#allocation19 + $0x348] sm:$0xff]
            %v3231 = vld [vmem:[#allocation19 + $0x350] sm:$0xff]
            %v3232 = vld [vmem:[#allocation19 + $0x358] sm:$0xff]
            %v3233 = vld [vmem:[#allocation19 + $0x360] sm:$0xff]
            %v3234 = vld [vmem:[#allocation19 + $0x368] sm:$0xff]
            %v3235 = vld [vmem:[#allocation19 + $0x370] sm:$0xff]
            %v3236 = vld [vmem:[#allocation19 + $0x378] sm:$0xff]
            %v3237 = vld [vmem:[#allocation19 + $0x380] sm:$0xff]
            %v3238 = vld [vmem:[#allocation19 + $0x388] sm:$0xff]
            %v3239 = vld [vmem:[#allocation19 + $0x390] sm:$0xff]
            %v3240 = vld [vmem:[#allocation19 + $0x398] sm:$0xff]
            %v3241 = vld [vmem:[#allocation19 + $0x3a0] sm:$0xff]
            %v3242 = vld [vmem:[#allocation19 + $0x3a8] sm:$0xff]
            %v3243 = vld [vmem:[#allocation19 + $0x3b0] sm:$0xff]
            %v3244 = vld [vmem:[#allocation19 + $0x3b8] sm:$0xff]
            %v3245 = vld [vmem:[#allocation19 + $0x3c0] sm:$0xff]
            %v3246 = vld [vmem:[#allocation19 + $0x3c8] sm:$0xff]
            %v3247 = vld [vmem:[#allocation19 + $0x3d0] sm:$0xff]
            %v3248 = vld [vmem:[#allocation19 + $0x3d8] sm:$0xff]
            %v3249 = vld [vmem:[#allocation19 + $0x3e0] sm:$0xff]
            %v3250 = vld [vmem:[#allocation19 + $0x3e8] sm:$0xff]
            %v3251 = vld [vmem:[#allocation19 + $0x3f0] sm:$0xff]
            %v3252 = vld [vmem:[#allocation19 + $0x3f8] sm:$0xff]
            %v3253 = vld [vmem:[#allocation19 + $0x400] sm:$0xff]
            %v3254 = vld [vmem:[#allocation19 + $0x408] sm:$0xff]
            %v3255 = vld [vmem:[#allocation19 + $0x410] sm:$0xff]
            %v3256 = vld [vmem:[#allocation19 + $0x418] sm:$0xff]
            %v3257 = vld [vmem:[#allocation19 + $0x420] sm:$0xff]
            %v3258 = vld [vmem:[#allocation19 + $0x428] sm:$0xff]
            %v3259 = vld [vmem:[#allocation19 + $0x430] sm:$0xff]
            %v3260 = vld [vmem:[#allocation19 + $0x438] sm:$0xff]
            %v3261 = vld [vmem:[#allocation19 + $0x440] sm:$0xff]
            %v3262 = vld [vmem:[#allocation19 + $0x448] sm:$0xff]
            %v3263 = vld [vmem:[#allocation19 + $0x450] sm:$0xff]
            %v3264 = vld [vmem:[#allocation19 + $0x458] sm:$0xff]
            %v3265 = vld [vmem:[#allocation19 + $0x460] sm:$0xff]
            %v3266 = vld [vmem:[#allocation19 + $0x468] sm:$0xff]
            %v3267 = vld [vmem:[#allocation19 + $0x470] sm:$0xff]
            %v3268 = vld [vmem:[#allocation19 + $0x478] sm:$0xff]
            %v3269 = vld [vmem:[#allocation19 + $0x480] sm:$0xff]
            %v3270 = vld [vmem:[#allocation19 + $0x488] sm:$0xff]
            %v3271 = vld [vmem:[#allocation19 + $0x490] sm:$0xff]
            %v3272 = vld [vmem:[#allocation19 + $0x498] sm:$0xff]
            %v3273 = vld [vmem:[#allocation19 + $0x4a0] sm:$0xff]
            %v3274 = vld [vmem:[#allocation19 + $0x4a8] sm:$0xff]
            %v3275 = vld [vmem:[#allocation19 + $0x4b0] sm:$0xff]
            %v3276 = vld [vmem:[#allocation19 + $0x4b8] sm:$0xff]
            %v3277 = vld [vmem:[#allocation19 + $0x4c0] sm:$0xff]
            %v3278 = vld [vmem:[#allocation19 + $0x4c8] sm:$0xff]
            %v3279 = vld [vmem:[#allocation19 + $0x4d0] sm:$0xff]
            %v3280 = vld [vmem:[#allocation19 + $0x4d8] sm:$0xff]
            %v3281 = vld [vmem:[#allocation19 + $0x4e0] sm:$0xff]
            %v3282 = vld [vmem:[#allocation19 + $0x4e8] sm:$0xff]
            %v3283 = vld [vmem:[#allocation19 + $0x4f0] sm:$0xff]
            %v3284 = vld [vmem:[#allocation19 + $0x4f8] sm:$0xff]
            %v3285 = vld [vmem:[#allocation19 + $0x500] sm:$0xff]
            %v3286 = vld [vmem:[#allocation19 + $0x508] sm:$0xff]
            %v3287 = vld [vmem:[#allocation19 + $0x510] sm:$0xff]
            %v3288 = vld [vmem:[#allocation19 + $0x518] sm:$0xff]
            %v3289 = vld [vmem:[#allocation19 + $0x520] sm:$0xff]
            %v3290 = vld [vmem:[#allocation19 + $0x528] sm:$0xff]
            %v3291 = vld [vmem:[#allocation19 + $0x530] sm:$0xff]
            %v3292 = vld [vmem:[#allocation19 + $0x538] sm:$0xff]
            %v3293 = vld [vmem:[#allocation19 + $0x540] sm:$0xff]
            %v3294 = vld [vmem:[#allocation19 + $0x548] sm:$0xff]
            %v3295 = vld [vmem:[#allocation19 + $0x550] sm:$0xff]
            %v3296 = vld [vmem:[#allocation19 + $0x558] sm:$0xff]
            %v3297 = vld [vmem:[#allocation19 + $0x560] sm:$0xff]
            %v3298 = vld [vmem:[#allocation19 + $0x568] sm:$0xff]
            %v3299 = vld [vmem:[#allocation19 + $0x570] sm:$0xff]
            %v3300 = vld [vmem:[#allocation19 + $0x578] sm:$0xff]
            %v3301 = vld [vmem:[#allocation19 + $0x580] sm:$0xff]
            %v3302 = vld [vmem:[#allocation19 + $0x588] sm:$0xff]
            %v3303 = vld [vmem:[#allocation19 + $0x590] sm:$0xff]
            %v3304 = vld [vmem:[#allocation19 + $0x598] sm:$0xff]
            %v3305 = vld [vmem:[#allocation19 + $0x5a0] sm:$0xff]
            %v3306 = vld [vmem:[#allocation19 + $0x5a8] sm:$0xff]
            %v3307 = vld [vmem:[#allocation19 + $0x5b0] sm:$0xff]
            %v3308 = vld [vmem:[#allocation19 + $0x5b8] sm:$0xff]
            %v3309 = vld [vmem:[#allocation19 + $0x5c0] sm:$0xff]
            %v3310 = vld [vmem:[#allocation19 + $0x5c8] sm:$0xff]
            %v3311 = vld [vmem:[#allocation19 + $0x5d0] sm:$0xff]
            %v3312 = vld [vmem:[#allocation19 + $0x5d8] sm:$0xff]
            %v3313 = vld [vmem:[#allocation19 + $0x5e0] sm:$0xff]
            %v3314 = vld [vmem:[#allocation19 + $0x5e8] sm:$0xff]
            %v3315 = vld [vmem:[#allocation19 + $0x5f0] sm:$0xff]
            %v3316 = vld [vmem:[#allocation19 + $0x5f8] sm:$0xff]
            %v3317 = vld [vmem:[#allocation19 + $0x600] sm:$0xff]
            %v3318 = vld [vmem:[#allocation19 + $0x608] sm:$0xff]
            %v3319 = vld [vmem:[#allocation19 + $0x610] sm:$0xff]
            %v3320 = vld [vmem:[#allocation19 + $0x618] sm:$0xff]
            %v3321 = vld [vmem:[#allocation19 + $0x620] sm:$0xff]
            %v3322 = vld [vmem:[#allocation19 + $0x628] sm:$0xff]
            %v3323 = vld [vmem:[#allocation19 + $0x630] sm:$0xff]
            %v3324 = vld [vmem:[#allocation19 + $0x638] sm:$0xff]
            %v3325 = vld [vmem:[#allocation19 + $0x640] sm:$0xff]
            %v3326 = vld [vmem:[#allocation19 + $0x648] sm:$0xff]
            %v3327 = vld [vmem:[#allocation19 + $0x650] sm:$0xff]
            %v3328 = vld [vmem:[#allocation19 + $0x658] sm:$0xff]
            %v3329 = vld [vmem:[#allocation19 + $0x660] sm:$0xff]
            %v3330 = vld [vmem:[#allocation19 + $0x668] sm:$0xff]
            %v3331 = vld [vmem:[#allocation19 + $0x670] sm:$0xff]
            %v3332 = vld [vmem:[#allocation19 + $0x678] sm:$0xff]
            %v3333 = vld [vmem:[#allocation19 + $0x680] sm:$0xff]
            %v3334 = vld [vmem:[#allocation19 + $0x688] sm:$0xff]
            %v3335 = vld [vmem:[#allocation19 + $0x690] sm:$0xff]
            %v3336 = vld [vmem:[#allocation19 + $0x698] sm:$0xff]
            %v3337 = vld [vmem:[#allocation19 + $0x6a0] sm:$0xff]
            %v3338 = vld [vmem:[#allocation19 + $0x6a8] sm:$0xff]
            %v3339 = vld [vmem:[#allocation19 + $0x6b0] sm:$0xff]
            %v3340 = vld [vmem:[#allocation19 + $0x6b8] sm:$0xff]
            %v3341 = vld [vmem:[#allocation19 + $0x6c0] sm:$0xff]
            %v3342 = vld [vmem:[#allocation19 + $0x6c8] sm:$0xff]
            %v3343 = vld [vmem:[#allocation19 + $0x6d0] sm:$0xff]
            %v3344 = vld [vmem:[#allocation19 + $0x6d8] sm:$0xff]
            %v3345 = vld [vmem:[#allocation19 + $0x6e0] sm:$0xff]
            %v3346 = vld [vmem:[#allocation19 + $0x6e8] sm:$0xff]
            %v3347 = vld [vmem:[#allocation19 + $0x6f0] sm:$0xff]
            %v3348 = vld [vmem:[#allocation19 + $0x6f8] sm:$0xff]
            %v3349 = vld [vmem:[#allocation19 + $0x700] sm:$0xff]
            %v3350 = vld [vmem:[#allocation19 + $0x708] sm:$0xff]
            %v3351 = vld [vmem:[#allocation19 + $0x710] sm:$0xff]
            %v3352 = vld [vmem:[#allocation19 + $0x718] sm:$0xff]
            %v3353 = vld [vmem:[#allocation19 + $0x720] sm:$0xff]
            %v3354 = vld [vmem:[#allocation19 + $0x728] sm:$0xff]
            %v3355 = vld [vmem:[#allocation19 + $0x730] sm:$0xff]
            %v3356 = vld [vmem:[#allocation19 + $0x738] sm:$0xff]
            %v3357 = vld [vmem:[#allocation19 + $0x740] sm:$0xff]
            %v3358 = vld [vmem:[#allocation19 + $0x748] sm:$0xff]
            %v3359 = vld [vmem:[#allocation19 + $0x750] sm:$0xff]
            %v3360 = vld [vmem:[#allocation19 + $0x758] sm:$0xff]
            %v3361 = vld [vmem:[#allocation19 + $0x760] sm:$0xff]
            %v3362 = vld [vmem:[#allocation19 + $0x768] sm:$0xff]
            %v3363 = vld [vmem:[#allocation19 + $0x770] sm:$0xff]
            %v3364 = vld [vmem:[#allocation19 + $0x778] sm:$0xff]
            %v3365 = vld [vmem:[#allocation19 + $0x780] sm:$0xff]
            %v3366 = vld [vmem:[#allocation19 + $0x788] sm:$0xff]
            %v3367 = vld [vmem:[#allocation19 + $0x790] sm:$0xff]
            %v3368 = vld [vmem:[#allocation19 + $0x798] sm:$0xff]
            %v3369 = vld [vmem:[#allocation19 + $0x7a0] sm:$0xff]
            %v3370 = vld [vmem:[#allocation19 + $0x7a8] sm:$0xff]
            %v3371 = vld [vmem:[#allocation19 + $0x7b0] sm:$0xff]
            %v3372 = vld [vmem:[#allocation19 + $0x7b8] sm:$0xff]
            %v3373 = vld [vmem:[#allocation19 + $0x7c0] sm:$0xff]
            %v3374 = vld [vmem:[#allocation19 + $0x7c8] sm:$0xff]
            %v3375 = vld [vmem:[#allocation19 + $0x7d0] sm:$0xff]
            %v3376 = vld [vmem:[#allocation19 + $0x7d8] sm:$0xff]
            %v3377 = vld [vmem:[#allocation19 + $0x7e0] sm:$0xff]
            %v3378 = vld [vmem:[#allocation19 + $0x7e8] sm:$0xff]
            %v3379 = vld [vmem:[#allocation19 + $0x7f0] sm:$0xff]
            %v3380 = vld [vmem:[#allocation19 + $0x7f8] sm:$0xff]
            %v3381 = vld [vmem:[%s14] sm:$0xf]
            %v3383 = vlaneseq
            %v3384 = vshrl.u32 %v3383, 7
            %v3385 = vsub.s32 0, %v3384
            %v3386 = vrot.slane %v3381, %v3385
            %v3387 = vlaneseq
            %v3388 = vshrl.u32 %v3387, 7
            %v3389 = vsub.s32 1, %v3388
            %v3390 = vrot.slane %v3381, %v3389
            %v3391 = vlaneseq
            %v3392 = vshrl.u32 %v3391, 7
            %v3393 = vsub.s32 2, %v3392
            %v3394 = vrot.slane %v3381, %v3393
            %v3395 = vlaneseq
            %v3396 = vshrl.u32 %v3395, 7
            %v3397 = vsub.s32 3, %v3396
            %v3398 = vrot.slane %v3381, %v3397
            %v3659 = vunpack.c.l.b16 %v3125
            %v3660 = vunpack.c.h.b16 %v3125
            %v3661 = vunpack.c.l.b16 %v3126
            %v3662 = vunpack.c.h.b16 %v3126
            %v3663 = vunpack.c.l.b16 %v3127
            %v3664 = vunpack.c.h.b16 %v3127
            %v3665 = vunpack.c.l.b16 %v3128
            %v3666 = vunpack.c.h.b16 %v3128
            %v3667 = vunpack.c.l.b16 %v3129
            %v3668 = vunpack.c.h.b16 %v3129
            %v3669 = vunpack.c.l.b16 %v3130
            %v3670 = vunpack.c.h.b16 %v3130
            %v3671 = vunpack.c.l.b16 %v3131
            %v3672 = vunpack.c.h.b16 %v3131
            %v3673 = vunpack.c.l.b16 %v3132
            %v3674 = vunpack.c.h.b16 %v3132
            %v3675 = vunpack.c.l.b16 %v3133
            %v3676 = vunpack.c.h.b16 %v3133
            %v3677 = vunpack.c.l.b16 %v3134
            %v3678 = vunpack.c.h.b16 %v3134
            %v3679 = vunpack.c.l.b16 %v3135
            %v3680 = vunpack.c.h.b16 %v3135
            %v3681 = vunpack.c.l.b16 %v3136
            %v3682 = vunpack.c.h.b16 %v3136
            %v3683 = vunpack.c.l.b16 %v3137
            %v3684 = vunpack.c.h.b16 %v3137
            %v3685 = vunpack.c.l.b16 %v3138
            %v3686 = vunpack.c.h.b16 %v3138
            %v3687 = vunpack.c.l.b16 %v3139
            %v3688 = vunpack.c.h.b16 %v3139
            %v3689 = vunpack.c.l.b16 %v3140
            %v3690 = vunpack.c.h.b16 %v3140
            %v3691 = vunpack.c.l.b16 %v3141
            %v3692 = vunpack.c.h.b16 %v3141
            %v3693 = vunpack.c.l.b16 %v3142
            %v3694 = vunpack.c.h.b16 %v3142
            %v3695 = vunpack.c.l.b16 %v3143
            %v3696 = vunpack.c.h.b16 %v3143
            %v3697 = vunpack.c.l.b16 %v3144
            %v3698 = vunpack.c.h.b16 %v3144
            %v3699 = vunpack.c.l.b16 %v3145
            %v3700 = vunpack.c.h.b16 %v3145
            %v3701 = vunpack.c.l.b16 %v3146
            %v3702 = vunpack.c.h.b16 %v3146
            %v3703 = vunpack.c.l.b16 %v3147
            %v3704 = vunpack.c.h.b16 %v3147
            %v3705 = vunpack.c.l.b16 %v3148
            %v3706 = vunpack.c.h.b16 %v3148
            %v3707 = vunpack.c.l.b16 %v3149
            %v3708 = vunpack.c.h.b16 %v3149
            %v3709 = vunpack.c.l.b16 %v3150
            %v3710 = vunpack.c.h.b16 %v3150
            %v3711 = vunpack.c.l.b16 %v3151
            %v3712 = vunpack.c.h.b16 %v3151
            %v3713 = vunpack.c.l.b16 %v3152
            %v3714 = vunpack.c.h.b16 %v3152
            %v3715 = vunpack.c.l.b16 %v3153
            %v3716 = vunpack.c.h.b16 %v3153
            %v3717 = vunpack.c.l.b16 %v3154
            %v3718 = vunpack.c.h.b16 %v3154
            %v3719 = vunpack.c.l.b16 %v3155
            %v3720 = vunpack.c.h.b16 %v3155
            %v3721 = vunpack.c.l.b16 %v3156
            %v3722 = vunpack.c.h.b16 %v3156
            %v3723 = vunpack.c.l.b16 %v3157
            %v3724 = vunpack.c.h.b16 %v3157
            %v3725 = vunpack.c.l.b16 %v3158
            %v3726 = vunpack.c.h.b16 %v3158
            %v3727 = vunpack.c.l.b16 %v3159
            %v3728 = vunpack.c.h.b16 %v3159
            %v3729 = vunpack.c.l.b16 %v3160
            %v3730 = vunpack.c.h.b16 %v3160
            %v3731 = vunpack.c.l.b16 %v3161
            %v3732 = vunpack.c.h.b16 %v3161
            %v3733 = vunpack.c.l.b16 %v3162
            %v3734 = vunpack.c.h.b16 %v3162
            %v3735 = vunpack.c.l.b16 %v3163
            %v3736 = vunpack.c.h.b16 %v3163
            %v3737 = vunpack.c.l.b16 %v3164
            %v3738 = vunpack.c.h.b16 %v3164
            %v3739 = vunpack.c.l.b16 %v3165
            %v3740 = vunpack.c.h.b16 %v3165
            %v3741 = vunpack.c.l.b16 %v3166
            %v3742 = vunpack.c.h.b16 %v3166
            %v3743 = vunpack.c.l.b16 %v3167
            %v3744 = vunpack.c.h.b16 %v3167
            %v3745 = vunpack.c.l.b16 %v3168
            %v3746 = vunpack.c.h.b16 %v3168
            %v3747 = vunpack.c.l.b16 %v3169
            %v3748 = vunpack.c.h.b16 %v3169
            %v3749 = vunpack.c.l.b16 %v3170
            %v3750 = vunpack.c.h.b16 %v3170
            %v3751 = vunpack.c.l.b16 %v3171
            %v3752 = vunpack.c.h.b16 %v3171
            %v3753 = vunpack.c.l.b16 %v3172
            %v3754 = vunpack.c.h.b16 %v3172
            %v3755 = vunpack.c.l.b16 %v3173
            %v3756 = vunpack.c.h.b16 %v3173
            %v3757 = vunpack.c.l.b16 %v3174
            %v3758 = vunpack.c.h.b16 %v3174
            %v3759 = vunpack.c.l.b16 %v3175
            %v3760 = vunpack.c.h.b16 %v3175
            %v3761 = vunpack.c.l.b16 %v3176
            %v3762 = vunpack.c.h.b16 %v3176
            %v3763 = vunpack.c.l.b16 %v3177
            %v3764 = vunpack.c.h.b16 %v3177
            %v3765 = vunpack.c.l.b16 %v3178
            %v3766 = vunpack.c.h.b16 %v3178
            %v3767 = vunpack.c.l.b16 %v3179
            %v3768 = vunpack.c.h.b16 %v3179
            %v3769 = vunpack.c.l.b16 %v3180
            %v3770 = vunpack.c.h.b16 %v3180
            %v3771 = vunpack.c.l.b16 %v3181
            %v3772 = vunpack.c.h.b16 %v3181
            %v3773 = vunpack.c.l.b16 %v3182
            %v3774 = vunpack.c.h.b16 %v3182
            %v3775 = vunpack.c.l.b16 %v3183
            %v3776 = vunpack.c.h.b16 %v3183
            %v3777 = vunpack.c.l.b16 %v3184
            %v3778 = vunpack.c.h.b16 %v3184
            %v3779 = vunpack.c.l.b16 %v3185
            %v3780 = vunpack.c.h.b16 %v3185
            %v3781 = vunpack.c.l.b16 %v3186
            %v3782 = vunpack.c.h.b16 %v3186
            %v3783 = vunpack.c.l.b16 %v3187
            %v3784 = vunpack.c.h.b16 %v3187
            %v3785 = vunpack.c.l.b16 %v3188
            %v3786 = vunpack.c.h.b16 %v3188
            %v3787 = vunpack.c.l.b16 %v3189
            %v3788 = vunpack.c.h.b16 %v3189
            %v3789 = vunpack.c.l.b16 %v3190
            %v3790 = vunpack.c.h.b16 %v3190
            %v3791 = vunpack.c.l.b16 %v3191
            %v3792 = vunpack.c.h.b16 %v3191
            %v3793 = vunpack.c.l.b16 %v3192
            %v3794 = vunpack.c.h.b16 %v3192
            %v3795 = vunpack.c.l.b16 %v3193
            %v3796 = vunpack.c.h.b16 %v3193
            %v3797 = vunpack.c.l.b16 %v3194
            %v3798 = vunpack.c.h.b16 %v3194
            %v3799 = vunpack.c.l.b16 %v3195
            %v3800 = vunpack.c.h.b16 %v3195
            %v3801 = vunpack.c.l.b16 %v3196
            %v3802 = vunpack.c.h.b16 %v3196
            %v3803 = vunpack.c.l.b16 %v3197
            %v3804 = vunpack.c.h.b16 %v3197
            %v3805 = vunpack.c.l.b16 %v3198
            %v3806 = vunpack.c.h.b16 %v3198
            %v3807 = vunpack.c.l.b16 %v3199
            %v3808 = vunpack.c.h.b16 %v3199
            %v3809 = vunpack.c.l.b16 %v3200
            %v3810 = vunpack.c.h.b16 %v3200
            %v3811 = vunpack.c.l.b16 %v3201
            %v3812 = vunpack.c.h.b16 %v3201
            %v3813 = vunpack.c.l.b16 %v3202
            %v3814 = vunpack.c.h.b16 %v3202
            %v3815 = vunpack.c.l.b16 %v3203
            %v3816 = vunpack.c.h.b16 %v3203
            %v3817 = vunpack.c.l.b16 %v3204
            %v3818 = vunpack.c.h.b16 %v3204
            %v3819 = vunpack.c.l.b16 %v3205
            %v3820 = vunpack.c.h.b16 %v3205
            %v3821 = vunpack.c.l.b16 %v3206
            %v3822 = vunpack.c.h.b16 %v3206
            %v3823 = vunpack.c.l.b16 %v3207
            %v3824 = vunpack.c.h.b16 %v3207
            %v3825 = vunpack.c.l.b16 %v3208
            %v3826 = vunpack.c.h.b16 %v3208
            %v3827 = vunpack.c.l.b16 %v3209
            %v3828 = vunpack.c.h.b16 %v3209
            %v3829 = vunpack.c.l.b16 %v3210
            %v3830 = vunpack.c.h.b16 %v3210
            %v3831 = vunpack.c.l.b16 %v3211
            %v3832 = vunpack.c.h.b16 %v3211
            %v3833 = vunpack.c.l.b16 %v3212
            %v3834 = vunpack.c.h.b16 %v3212
            %v3835 = vunpack.c.l.b16 %v3213
            %v3836 = vunpack.c.h.b16 %v3213
            %v3837 = vunpack.c.l.b16 %v3214
            %v3838 = vunpack.c.h.b16 %v3214
            %v3839 = vunpack.c.l.b16 %v3215
            %v3840 = vunpack.c.h.b16 %v3215
            %v3841 = vunpack.c.l.b16 %v3216
            %v3842 = vunpack.c.h.b16 %v3216
            %v3843 = vunpack.c.l.b16 %v3217
            %v3844 = vunpack.c.h.b16 %v3217
            %v3845 = vunpack.c.l.b16 %v3218
            %v3846 = vunpack.c.h.b16 %v3218
            %v3847 = vunpack.c.l.b16 %v3219
            %v3848 = vunpack.c.h.b16 %v3219
            %v3849 = vunpack.c.l.b16 %v3220
            %v3850 = vunpack.c.h.b16 %v3220
            %v3851 = vunpack.c.l.b16 %v3221
            %v3852 = vunpack.c.h.b16 %v3221
            %v3853 = vunpack.c.l.b16 %v3222
            %v3854 = vunpack.c.h.b16 %v3222
            %v3855 = vunpack.c.l.b16 %v3223
            %v3856 = vunpack.c.h.b16 %v3223
            %v3857 = vunpack.c.l.b16 %v3224
            %v3858 = vunpack.c.h.b16 %v3224
            %v3859 = vunpack.c.l.b16 %v3225
            %v3860 = vunpack.c.h.b16 %v3225
            %v3861 = vunpack.c.l.b16 %v3226
            %v3862 = vunpack.c.h.b16 %v3226
            %v3863 = vunpack.c.l.b16 %v3227
            %v3864 = vunpack.c.h.b16 %v3227
            %v3865 = vunpack.c.l.b16 %v3228
            %v3866 = vunpack.c.h.b16 %v3228
            %v3867 = vunpack.c.l.b16 %v3229
            %v3868 = vunpack.c.h.b16 %v3229
            %v3869 = vunpack.c.l.b16 %v3230
            %v3870 = vunpack.c.h.b16 %v3230
            %v3871 = vunpack.c.l.b16 %v3231
            %v3872 = vunpack.c.h.b16 %v3231
            %v3873 = vunpack.c.l.b16 %v3232
            %v3874 = vunpack.c.h.b16 %v3232
            %v3875 = vunpack.c.l.b16 %v3233
            %v3876 = vunpack.c.h.b16 %v3233
            %v3877 = vunpack.c.l.b16 %v3234
            %v3878 = vunpack.c.h.b16 %v3234
            %v3879 = vunpack.c.l.b16 %v3235
            %v3880 = vunpack.c.h.b16 %v3235
            %v3881 = vunpack.c.l.b16 %v3236
            %v3882 = vunpack.c.h.b16 %v3236
            %v3883 = vunpack.c.l.b16 %v3237
            %v3884 = vunpack.c.h.b16 %v3237
            %v3885 = vunpack.c.l.b16 %v3238
            %v3886 = vunpack.c.h.b16 %v3238
            %v3887 = vunpack.c.l.b16 %v3239
            %v3888 = vunpack.c.h.b16 %v3239
            %v3889 = vunpack.c.l.b16 %v3240
            %v3890 = vunpack.c.h.b16 %v3240
            %v3891 = vunpack.c.l.b16 %v3241
            %v3892 = vunpack.c.h.b16 %v3241
            %v3893 = vunpack.c.l.b16 %v3242
            %v3894 = vunpack.c.h.b16 %v3242
            %v3895 = vunpack.c.l.b16 %v3243
            %v3896 = vunpack.c.h.b16 %v3243
            %v3897 = vunpack.c.l.b16 %v3244
            %v3898 = vunpack.c.h.b16 %v3244
            %v3899 = vunpack.c.l.b16 %v3245
            %v3900 = vunpack.c.h.b16 %v3245
            %v3901 = vunpack.c.l.b16 %v3246
            %v3902 = vunpack.c.h.b16 %v3246
            %v3903 = vunpack.c.l.b16 %v3247
            %v3904 = vunpack.c.h.b16 %v3247
            %v3905 = vunpack.c.l.b16 %v3248
            %v3906 = vunpack.c.h.b16 %v3248
            %v3907 = vunpack.c.l.b16 %v3249
            %v3908 = vunpack.c.h.b16 %v3249
            %v3909 = vunpack.c.l.b16 %v3250
            %v3910 = vunpack.c.h.b16 %v3250
            %v3911 = vunpack.c.l.b16 %v3251
            %v3912 = vunpack.c.h.b16 %v3251
            %v3913 = vunpack.c.l.b16 %v3252
            %v3914 = vunpack.c.h.b16 %v3252
            %v3915 = vunpack.c.l.b16 %v3253
            %v3916 = vunpack.c.h.b16 %v3253
            %v3917 = vunpack.c.l.b16 %v3254
            %v3918 = vunpack.c.h.b16 %v3254
            %v3919 = vunpack.c.l.b16 %v3255
            %v3920 = vunpack.c.h.b16 %v3255
            %v3921 = vunpack.c.l.b16 %v3256
            %v3922 = vunpack.c.h.b16 %v3256
            %v3923 = vunpack.c.l.b16 %v3257
            %v3924 = vunpack.c.h.b16 %v3257
            %v3925 = vunpack.c.l.b16 %v3258
            %v3926 = vunpack.c.h.b16 %v3258
            %v3927 = vunpack.c.l.b16 %v3259
            %v3928 = vunpack.c.h.b16 %v3259
            %v3929 = vunpack.c.l.b16 %v3260
            %v3930 = vunpack.c.h.b16 %v3260
            %v3931 = vunpack.c.l.b16 %v3261
            %v3932 = vunpack.c.h.b16 %v3261
            %v3933 = vunpack.c.l.b16 %v3262
            %v3934 = vunpack.c.h.b16 %v3262
            %v3935 = vunpack.c.l.b16 %v3263
            %v3936 = vunpack.c.h.b16 %v3263
            %v3937 = vunpack.c.l.b16 %v3264
            %v3938 = vunpack.c.h.b16 %v3264
            %v3939 = vunpack.c.l.b16 %v3265
            %v3940 = vunpack.c.h.b16 %v3265
            %v3941 = vunpack.c.l.b16 %v3266
            %v3942 = vunpack.c.h.b16 %v3266
            %v3943 = vunpack.c.l.b16 %v3267
            %v3944 = vunpack.c.h.b16 %v3267
            %v3945 = vunpack.c.l.b16 %v3268
            %v3946 = vunpack.c.h.b16 %v3268
            %v3947 = vunpack.c.l.b16 %v3269
            %v3948 = vunpack.c.h.b16 %v3269
            %v3949 = vunpack.c.l.b16 %v3270
            %v3950 = vunpack.c.h.b16 %v3270
            %v3951 = vunpack.c.l.b16 %v3271
            %v3952 = vunpack.c.h.b16 %v3271
            %v3953 = vunpack.c.l.b16 %v3272
            %v3954 = vunpack.c.h.b16 %v3272
            %v3955 = vunpack.c.l.b16 %v3273
            %v3956 = vunpack.c.h.b16 %v3273
            %v3957 = vunpack.c.l.b16 %v3274
            %v3958 = vunpack.c.h.b16 %v3274
            %v3959 = vunpack.c.l.b16 %v3275
            %v3960 = vunpack.c.h.b16 %v3275
            %v3961 = vunpack.c.l.b16 %v3276
            %v3962 = vunpack.c.h.b16 %v3276
            %v3963 = vunpack.c.l.b16 %v3277
            %v3964 = vunpack.c.h.b16 %v3277
            %v3965 = vunpack.c.l.b16 %v3278
            %v3966 = vunpack.c.h.b16 %v3278
            %v3967 = vunpack.c.l.b16 %v3279
            %v3968 = vunpack.c.h.b16 %v3279
            %v3969 = vunpack.c.l.b16 %v3280
            %v3970 = vunpack.c.h.b16 %v3280
            %v3971 = vunpack.c.l.b16 %v3281
            %v3972 = vunpack.c.h.b16 %v3281
            %v3973 = vunpack.c.l.b16 %v3282
            %v3974 = vunpack.c.h.b16 %v3282
            %v3975 = vunpack.c.l.b16 %v3283
            %v3976 = vunpack.c.h.b16 %v3283
            %v3977 = vunpack.c.l.b16 %v3284
            %v3978 = vunpack.c.h.b16 %v3284
            %v3979 = vunpack.c.l.b16 %v3285
            %v3980 = vunpack.c.h.b16 %v3285
            %v3981 = vunpack.c.l.b16 %v3286
            %v3982 = vunpack.c.h.b16 %v3286
            %v3983 = vunpack.c.l.b16 %v3287
            %v3984 = vunpack.c.h.b16 %v3287
            %v3985 = vunpack.c.l.b16 %v3288
            %v3986 = vunpack.c.h.b16 %v3288
            %v3987 = vunpack.c.l.b16 %v3289
            %v3988 = vunpack.c.h.b16 %v3289
            %v3989 = vunpack.c.l.b16 %v3290
            %v3990 = vunpack.c.h.b16 %v3290
            %v3991 = vunpack.c.l.b16 %v3291
            %v3992 = vunpack.c.h.b16 %v3291
            %v3993 = vunpack.c.l.b16 %v3292
            %v3994 = vunpack.c.h.b16 %v3292
            %v3995 = vunpack.c.l.b16 %v3293
            %v3996 = vunpack.c.h.b16 %v3293
            %v3997 = vunpack.c.l.b16 %v3294
            %v3998 = vunpack.c.h.b16 %v3294
            %v3999 = vunpack.c.l.b16 %v3295
            %v4000 = vunpack.c.h.b16 %v3295
            %v4001 = vunpack.c.l.b16 %v3296
            %v4002 = vunpack.c.h.b16 %v3296
            %v4003 = vunpack.c.l.b16 %v3297
            %v4004 = vunpack.c.h.b16 %v3297
            %v4005 = vunpack.c.l.b16 %v3298
            %v4006 = vunpack.c.h.b16 %v3298
            %v4007 = vunpack.c.l.b16 %v3299
            %v4008 = vunpack.c.h.b16 %v3299
            %v4009 = vunpack.c.l.b16 %v3300
            %v4010 = vunpack.c.h.b16 %v3300
            %v4011 = vunpack.c.l.b16 %v3301
            %v4012 = vunpack.c.h.b16 %v3301
            %v4013 = vunpack.c.l.b16 %v3302
            %v4014 = vunpack.c.h.b16 %v3302
            %v4015 = vunpack.c.l.b16 %v3303
            %v4016 = vunpack.c.h.b16 %v3303
            %v4017 = vunpack.c.l.b16 %v3304
            %v4018 = vunpack.c.h.b16 %v3304
            %v4019 = vunpack.c.l.b16 %v3305
            %v4020 = vunpack.c.h.b16 %v3305
            %v4021 = vunpack.c.l.b16 %v3306
            %v4022 = vunpack.c.h.b16 %v3306
            %v4023 = vunpack.c.l.b16 %v3307
            %v4024 = vunpack.c.h.b16 %v3307
            %v4025 = vunpack.c.l.b16 %v3308
            %v4026 = vunpack.c.h.b16 %v3308
            %v4027 = vunpack.c.l.b16 %v3309
            %v4028 = vunpack.c.h.b16 %v3309
            %v4029 = vunpack.c.l.b16 %v3310
            %v4030 = vunpack.c.h.b16 %v3310
            %v4031 = vunpack.c.l.b16 %v3311
            %v4032 = vunpack.c.h.b16 %v3311
            %v4033 = vunpack.c.l.b16 %v3312
            %v4034 = vunpack.c.h.b16 %v3312
            %v4035 = vunpack.c.l.b16 %v3313
            %v4036 = vunpack.c.h.b16 %v3313
            %v4037 = vunpack.c.l.b16 %v3314
            %v4038 = vunpack.c.h.b16 %v3314
            %v4039 = vunpack.c.l.b16 %v3315
            %v4040 = vunpack.c.h.b16 %v3315
            %v4041 = vunpack.c.l.b16 %v3316
            %v4042 = vunpack.c.h.b16 %v3316
            %v4043 = vunpack.c.l.b16 %v3317
            %v4044 = vunpack.c.h.b16 %v3317
            %v4045 = vunpack.c.l.b16 %v3318
            %v4046 = vunpack.c.h.b16 %v3318
            %v4047 = vunpack.c.l.b16 %v3319
            %v4048 = vunpack.c.h.b16 %v3319
            %v4049 = vunpack.c.l.b16 %v3320
            %v4050 = vunpack.c.h.b16 %v3320
            %v4051 = vunpack.c.l.b16 %v3321
            %v4052 = vunpack.c.h.b16 %v3321
            %v4053 = vunpack.c.l.b16 %v3322
            %v4054 = vunpack.c.h.b16 %v3322
            %v4055 = vunpack.c.l.b16 %v3323
            %v4056 = vunpack.c.h.b16 %v3323
            %v4057 = vunpack.c.l.b16 %v3324
            %v4058 = vunpack.c.h.b16 %v3324
            %v4059 = vunpack.c.l.b16 %v3325
            %v4060 = vunpack.c.h.b16 %v3325
            %v4061 = vunpack.c.l.b16 %v3326
            %v4062 = vunpack.c.h.b16 %v3326
            %v4063 = vunpack.c.l.b16 %v3327
            %v4064 = vunpack.c.h.b16 %v3327
            %v4065 = vunpack.c.l.b16 %v3328
            %v4066 = vunpack.c.h.b16 %v3328
            %v4067 = vunpack.c.l.b16 %v3329
            %v4068 = vunpack.c.h.b16 %v3329
            %v4069 = vunpack.c.l.b16 %v3330
            %v4070 = vunpack.c.h.b16 %v3330
            %v4071 = vunpack.c.l.b16 %v3331
            %v4072 = vunpack.c.h.b16 %v3331
            %v4073 = vunpack.c.l.b16 %v3332
            %v4074 = vunpack.c.h.b16 %v3332
            %v4075 = vunpack.c.l.b16 %v3333
            %v4076 = vunpack.c.h.b16 %v3333
            %v4077 = vunpack.c.l.b16 %v3334
            %v4078 = vunpack.c.h.b16 %v3334
            %v4079 = vunpack.c.l.b16 %v3335
            %v4080 = vunpack.c.h.b16 %v3335
            %v4081 = vunpack.c.l.b16 %v3336
            %v4082 = vunpack.c.h.b16 %v3336
            %v4083 = vunpack.c.l.b16 %v3337
            %v4084 = vunpack.c.h.b16 %v3337
            %v4085 = vunpack.c.l.b16 %v3338
            %v4086 = vunpack.c.h.b16 %v3338
            %v4087 = vunpack.c.l.b16 %v3339
            %v4088 = vunpack.c.h.b16 %v3339
            %v4089 = vunpack.c.l.b16 %v3340
            %v4090 = vunpack.c.h.b16 %v3340
            %v4091 = vunpack.c.l.b16 %v3341
            %v4092 = vunpack.c.h.b16 %v3341
            %v4093 = vunpack.c.l.b16 %v3342
            %v4094 = vunpack.c.h.b16 %v3342
            %v4095 = vunpack.c.l.b16 %v3343
            %v4096 = vunpack.c.h.b16 %v3343
            %v4097 = vunpack.c.l.b16 %v3344
            %v4098 = vunpack.c.h.b16 %v3344
            %v4099 = vunpack.c.l.b16 %v3345
            %v4100 = vunpack.c.h.b16 %v3345
            %v4101 = vunpack.c.l.b16 %v3346
            %v4102 = vunpack.c.h.b16 %v3346
            %v4103 = vunpack.c.l.b16 %v3347
            %v4104 = vunpack.c.h.b16 %v3347
            %v4105 = vunpack.c.l.b16 %v3348
            %v4106 = vunpack.c.h.b16 %v3348
            %v4107 = vunpack.c.l.b16 %v3349
            %v4108 = vunpack.c.h.b16 %v3349
            %v4109 = vunpack.c.l.b16 %v3350
            %v4110 = vunpack.c.h.b16 %v3350
            %v4111 = vunpack.c.l.b16 %v3351
            %v4112 = vunpack.c.h.b16 %v3351
            %v4113 = vunpack.c.l.b16 %v3352
            %v4114 = vunpack.c.h.b16 %v3352
            %v4115 = vunpack.c.l.b16 %v3353
            %v4116 = vunpack.c.h.b16 %v3353
            %v4117 = vunpack.c.l.b16 %v3354
            %v4118 = vunpack.c.h.b16 %v3354
            %v4119 = vunpack.c.l.b16 %v3355
            %v4120 = vunpack.c.h.b16 %v3355
            %v4121 = vunpack.c.l.b16 %v3356
            %v4122 = vunpack.c.h.b16 %v3356
            %v4123 = vunpack.c.l.b16 %v3357
            %v4124 = vunpack.c.h.b16 %v3357
            %v4125 = vunpack.c.l.b16 %v3358
            %v4126 = vunpack.c.h.b16 %v3358
            %v4127 = vunpack.c.l.b16 %v3359
            %v4128 = vunpack.c.h.b16 %v3359
            %v4129 = vunpack.c.l.b16 %v3360
            %v4130 = vunpack.c.h.b16 %v3360
            %v4131 = vunpack.c.l.b16 %v3361
            %v4132 = vunpack.c.h.b16 %v3361
            %v4133 = vunpack.c.l.b16 %v3362
            %v4134 = vunpack.c.h.b16 %v3362
            %v4135 = vunpack.c.l.b16 %v3363
            %v4136 = vunpack.c.h.b16 %v3363
            %v4137 = vunpack.c.l.b16 %v3364
            %v4138 = vunpack.c.h.b16 %v3364
            %v4139 = vunpack.c.l.b16 %v3365
            %v4140 = vunpack.c.h.b16 %v3365
            %v4141 = vunpack.c.l.b16 %v3366
            %v4142 = vunpack.c.h.b16 %v3366
            %v4143 = vunpack.c.l.b16 %v3367
            %v4144 = vunpack.c.h.b16 %v3367
            %v4145 = vunpack.c.l.b16 %v3368
            %v4146 = vunpack.c.h.b16 %v3368
            %v4147 = vunpack.c.l.b16 %v3369
            %v4148 = vunpack.c.h.b16 %v3369
            %v4149 = vunpack.c.l.b16 %v3370
            %v4150 = vunpack.c.h.b16 %v3370
            %v4151 = vunpack.c.l.b16 %v3371
            %v4152 = vunpack.c.h.b16 %v3371
            %v4153 = vunpack.c.l.b16 %v3372
            %v4154 = vunpack.c.h.b16 %v3372
            %v4155 = vunpack.c.l.b16 %v3373
            %v4156 = vunpack.c.h.b16 %v3373
            %v4157 = vunpack.c.l.b16 %v3374
            %v4158 = vunpack.c.h.b16 %v3374
            %v4159 = vunpack.c.l.b16 %v3375
            %v4160 = vunpack.c.h.b16 %v3375
            %v4161 = vunpack.c.l.b16 %v3376
            %v4162 = vunpack.c.h.b16 %v3376
            %v4163 = vunpack.c.l.b16 %v3377
            %v4164 = vunpack.c.h.b16 %v3377
            %v4165 = vunpack.c.l.b16 %v3378
            %v4166 = vunpack.c.h.b16 %v3378
            %v4167 = vunpack.c.l.b16 %v3379
            %v4168 = vunpack.c.h.b16 %v3379
            %v4169 = vunpack.c.l.b16 %v3380
            %v4170 = vunpack.c.h.b16 %v3380
            %v4171 = vpack.c.b16 %v3663, %v3659
            %v4172 = vpack.c.b16 %v3664, %v3660
            %v4173 = vpack.c.b16 %v3665, %v3661
            %v4174 = vpack.c.b16 %v3666, %v3662
            %v4175 = vpack.c.b16 %v3671, %v3667
            %v4176 = vpack.c.b16 %v3672, %v3668
            %v4177 = vpack.c.b16 %v3673, %v3669
            %v4178 = vpack.c.b16 %v3674, %v3670
            %v4179 = vpack.c.b16 %v3679, %v3675
            %v4180 = vpack.c.b16 %v3680, %v3676
            %v4181 = vpack.c.b16 %v3681, %v3677
            %v4182 = vpack.c.b16 %v3682, %v3678
            %v4183 = vpack.c.b16 %v3687, %v3683
            %v4184 = vpack.c.b16 %v3688, %v3684
            %v4185 = vpack.c.b16 %v3689, %v3685
            %v4186 = vpack.c.b16 %v3690, %v3686
            %v4187 = vpack.c.b16 %v3695, %v3691
            %v4188 = vpack.c.b16 %v3696, %v3692
            %v4189 = vpack.c.b16 %v3697, %v3693
            %v4190 = vpack.c.b16 %v3698, %v3694
            %v4191 = vpack.c.b16 %v3703, %v3699
            %v4192 = vpack.c.b16 %v3704, %v3700
            %v4193 = vpack.c.b16 %v3705, %v3701
            %v4194 = vpack.c.b16 %v3706, %v3702
            %v4195 = vpack.c.b16 %v3711, %v3707
            %v4196 = vpack.c.b16 %v3712, %v3708
            %v4197 = vpack.c.b16 %v3713, %v3709
            %v4198 = vpack.c.b16 %v3714, %v3710
            %v4199 = vpack.c.b16 %v3719, %v3715
            %v4200 = vpack.c.b16 %v3720, %v3716
            %v4201 = vpack.c.b16 %v3721, %v3717
            %v4202 = vpack.c.b16 %v3722, %v3718
            %v4203 = vpack.c.b16 %v3727, %v3723
            %v4204 = vpack.c.b16 %v3728, %v3724
            %v4205 = vpack.c.b16 %v3729, %v3725
            %v4206 = vpack.c.b16 %v3730, %v3726
            %v4207 = vpack.c.b16 %v3735, %v3731
            %v4208 = vpack.c.b16 %v3736, %v3732
            %v4209 = vpack.c.b16 %v3737, %v3733
            %v4210 = vpack.c.b16 %v3738, %v3734
            %v4211 = vpack.c.b16 %v3743, %v3739
            %v4212 = vpack.c.b16 %v3744, %v3740
            %v4213 = vpack.c.b16 %v3745, %v3741
            %v4214 = vpack.c.b16 %v3746, %v3742
            %v4215 = vpack.c.b16 %v3751, %v3747
            %v4216 = vpack.c.b16 %v3752, %v3748
            %v4217 = vpack.c.b16 %v3753, %v3749
            %v4218 = vpack.c.b16 %v3754, %v3750
            %v4219 = vpack.c.b16 %v3759, %v3755
            %v4220 = vpack.c.b16 %v3760, %v3756
            %v4221 = vpack.c.b16 %v3761, %v3757
            %v4222 = vpack.c.b16 %v3762, %v3758
            %v4223 = vpack.c.b16 %v3767, %v3763
            %v4224 = vpack.c.b16 %v3768, %v3764
            %v4225 = vpack.c.b16 %v3769, %v3765
            %v4226 = vpack.c.b16 %v3770, %v3766
            %v4227 = vpack.c.b16 %v3775, %v3771
            %v4228 = vpack.c.b16 %v3776, %v3772
            %v4229 = vpack.c.b16 %v3777, %v3773
            %v4230 = vpack.c.b16 %v3778, %v3774
            %v4231 = vpack.c.b16 %v3783, %v3779
            %v4232 = vpack.c.b16 %v3784, %v3780
            %v4233 = vpack.c.b16 %v3785, %v3781
            %v4234 = vpack.c.b16 %v3786, %v3782
            %v4235 = vpack.c.b16 %v3791, %v3787
            %v4236 = vpack.c.b16 %v3792, %v3788
            %v4237 = vpack.c.b16 %v3793, %v3789
            %v4238 = vpack.c.b16 %v3794, %v3790
            %v4239 = vpack.c.b16 %v3799, %v3795
            %v4240 = vpack.c.b16 %v3800, %v3796
            %v4241 = vpack.c.b16 %v3801, %v3797
            %v4242 = vpack.c.b16 %v3802, %v3798
            %v4243 = vpack.c.b16 %v3807, %v3803
            %v4244 = vpack.c.b16 %v3808, %v3804
            %v4245 = vpack.c.b16 %v3809, %v3805
            %v4246 = vpack.c.b16 %v3810, %v3806
            %v4247 = vpack.c.b16 %v3815, %v3811
            %v4248 = vpack.c.b16 %v3816, %v3812
            %v4249 = vpack.c.b16 %v3817, %v3813
            %v4250 = vpack.c.b16 %v3818, %v3814
            %v4251 = vpack.c.b16 %v3823, %v3819
            %v4252 = vpack.c.b16 %v3824, %v3820
            %v4253 = vpack.c.b16 %v3825, %v3821
            %v4254 = vpack.c.b16 %v3826, %v3822
            %v4255 = vpack.c.b16 %v3831, %v3827
            %v4256 = vpack.c.b16 %v3832, %v3828
            %v4257 = vpack.c.b16 %v3833, %v3829
            %v4258 = vpack.c.b16 %v3834, %v3830
            %v4259 = vpack.c.b16 %v3839, %v3835
            %v4260 = vpack.c.b16 %v3840, %v3836
            %v4261 = vpack.c.b16 %v3841, %v3837
            %v4262 = vpack.c.b16 %v3842, %v3838
            %v4263 = vpack.c.b16 %v3847, %v3843
            %v4264 = vpack.c.b16 %v3848, %v3844
            %v4265 = vpack.c.b16 %v3849, %v3845
            %v4266 = vpack.c.b16 %v3850, %v3846
            %v4267 = vpack.c.b16 %v3855, %v3851
            %v4268 = vpack.c.b16 %v3856, %v3852
            %v4269 = vpack.c.b16 %v3857, %v3853
            %v4270 = vpack.c.b16 %v3858, %v3854
            %v4271 = vpack.c.b16 %v3863, %v3859
            %v4272 = vpack.c.b16 %v3864, %v3860
            %v4273 = vpack.c.b16 %v3865, %v3861
            %v4274 = vpack.c.b16 %v3866, %v3862
            %v4275 = vpack.c.b16 %v3871, %v3867
            %v4276 = vpack.c.b16 %v3872, %v3868
            %v4277 = vpack.c.b16 %v3873, %v3869
            %v4278 = vpack.c.b16 %v3874, %v3870
            %v4279 = vpack.c.b16 %v3879, %v3875
            %v4280 = vpack.c.b16 %v3880, %v3876
            %v4281 = vpack.c.b16 %v3881, %v3877
            %v4282 = vpack.c.b16 %v3882, %v3878
            %v4283 = vpack.c.b16 %v3887, %v3883
            %v4284 = vpack.c.b16 %v3888, %v3884
            %v4285 = vpack.c.b16 %v3889, %v3885
            %v4286 = vpack.c.b16 %v3890, %v3886
            %v4287 = vpack.c.b16 %v3895, %v3891
            %v4288 = vpack.c.b16 %v3896, %v3892
            %v4289 = vpack.c.b16 %v3897, %v3893
            %v4290 = vpack.c.b16 %v3898, %v3894
            %v4291 = vpack.c.b16 %v3903, %v3899
            %v4292 = vpack.c.b16 %v3904, %v3900
            %v4293 = vpack.c.b16 %v3905, %v3901
            %v4294 = vpack.c.b16 %v3906, %v3902
            %v4295 = vpack.c.b16 %v3911, %v3907
            %v4296 = vpack.c.b16 %v3912, %v3908
            %v4297 = vpack.c.b16 %v3913, %v3909
            %v4298 = vpack.c.b16 %v3914, %v3910
            %v4299 = vpack.c.b16 %v3919, %v3915
            %v4300 = vpack.c.b16 %v3920, %v3916
            %v4301 = vpack.c.b16 %v3921, %v3917
            %v4302 = vpack.c.b16 %v3922, %v3918
            %v4303 = vpack.c.b16 %v3927, %v3923
            %v4304 = vpack.c.b16 %v3928, %v3924
            %v4305 = vpack.c.b16 %v3929, %v3925
            %v4306 = vpack.c.b16 %v3930, %v3926
            %v4307 = vpack.c.b16 %v3935, %v3931
            %v4308 = vpack.c.b16 %v3936, %v3932
            %v4309 = vpack.c.b16 %v3937, %v3933
            %v4310 = vpack.c.b16 %v3938, %v3934
            %v4311 = vpack.c.b16 %v3943, %v3939
            %v4312 = vpack.c.b16 %v3944, %v3940
            %v4313 = vpack.c.b16 %v3945, %v3941
            %v4314 = vpack.c.b16 %v3946, %v3942
            %v4315 = vpack.c.b16 %v3951, %v3947
            %v4316 = vpack.c.b16 %v3952, %v3948
            %v4317 = vpack.c.b16 %v3953, %v3949
            %v4318 = vpack.c.b16 %v3954, %v3950
            %v4319 = vpack.c.b16 %v3959, %v3955
            %v4320 = vpack.c.b16 %v3960, %v3956
            %v4321 = vpack.c.b16 %v3961, %v3957
            %v4322 = vpack.c.b16 %v3962, %v3958
            %v4323 = vpack.c.b16 %v3967, %v3963
            %v4324 = vpack.c.b16 %v3968, %v3964
            %v4325 = vpack.c.b16 %v3969, %v3965
            %v4326 = vpack.c.b16 %v3970, %v3966
            %v4327 = vpack.c.b16 %v3975, %v3971
            %v4328 = vpack.c.b16 %v3976, %v3972
            %v4329 = vpack.c.b16 %v3977, %v3973
            %v4330 = vpack.c.b16 %v3978, %v3974
            %v4331 = vpack.c.b16 %v3983, %v3979
            %v4332 = vpack.c.b16 %v3984, %v3980
            %v4333 = vpack.c.b16 %v3985, %v3981
            %v4334 = vpack.c.b16 %v3986, %v3982
            %v4335 = vpack.c.b16 %v3991, %v3987
            %v4336 = vpack.c.b16 %v3992, %v3988
            %v4337 = vpack.c.b16 %v3993, %v3989
            %v4338 = vpack.c.b16 %v3994, %v3990
            %v4339 = vpack.c.b16 %v3999, %v3995
            %v4340 = vpack.c.b16 %v4000, %v3996
            %v4341 = vpack.c.b16 %v4001, %v3997
            %v4342 = vpack.c.b16 %v4002, %v3998
            %v4343 = vpack.c.b16 %v4007, %v4003
            %v4344 = vpack.c.b16 %v4008, %v4004
            %v4345 = vpack.c.b16 %v4009, %v4005
            %v4346 = vpack.c.b16 %v4010, %v4006
            %v4347 = vpack.c.b16 %v4015, %v4011
            %v4348 = vpack.c.b16 %v4016, %v4012
            %v4349 = vpack.c.b16 %v4017, %v4013
            %v4350 = vpack.c.b16 %v4018, %v4014
            %v4351 = vpack.c.b16 %v4023, %v4019
            %v4352 = vpack.c.b16 %v4024, %v4020
            %v4353 = vpack.c.b16 %v4025, %v4021
            %v4354 = vpack.c.b16 %v4026, %v4022
            %v4355 = vpack.c.b16 %v4031, %v4027
            %v4356 = vpack.c.b16 %v4032, %v4028
            %v4357 = vpack.c.b16 %v4033, %v4029
            %v4358 = vpack.c.b16 %v4034, %v4030
            %v4359 = vpack.c.b16 %v4039, %v4035
            %v4360 = vpack.c.b16 %v4040, %v4036
            %v4361 = vpack.c.b16 %v4041, %v4037
            %v4362 = vpack.c.b16 %v4042, %v4038
            %v4363 = vpack.c.b16 %v4047, %v4043
            %v4364 = vpack.c.b16 %v4048, %v4044
            %v4365 = vpack.c.b16 %v4049, %v4045
            %v4366 = vpack.c.b16 %v4050, %v4046
            %v4367 = vpack.c.b16 %v4055, %v4051
            %v4368 = vpack.c.b16 %v4056, %v4052
            %v4369 = vpack.c.b16 %v4057, %v4053
            %v4370 = vpack.c.b16 %v4058, %v4054
            %v4371 = vpack.c.b16 %v4063, %v4059
            %v4372 = vpack.c.b16 %v4064, %v4060
            %v4373 = vpack.c.b16 %v4065, %v4061
            %v4374 = vpack.c.b16 %v4066, %v4062
            %v4375 = vpack.c.b16 %v4071, %v4067
            %v4376 = vpack.c.b16 %v4072, %v4068
            %v4377 = vpack.c.b16 %v4073, %v4069
            %v4378 = vpack.c.b16 %v4074, %v4070
            %v4379 = vpack.c.b16 %v4079, %v4075
            %v4380 = vpack.c.b16 %v4080, %v4076
            %v4381 = vpack.c.b16 %v4081, %v4077
            %v4382 = vpack.c.b16 %v4082, %v4078
            %v4383 = vpack.c.b16 %v4087, %v4083
            %v4384 = vpack.c.b16 %v4088, %v4084
            %v4385 = vpack.c.b16 %v4089, %v4085
            %v4386 = vpack.c.b16 %v4090, %v4086
            %v4387 = vpack.c.b16 %v4095, %v4091
            %v4388 = vpack.c.b16 %v4096, %v4092
            %v4389 = vpack.c.b16 %v4097, %v4093
            %v4390 = vpack.c.b16 %v4098, %v4094
            %v4391 = vpack.c.b16 %v4103, %v4099
            %v4392 = vpack.c.b16 %v4104, %v4100
            %v4393 = vpack.c.b16 %v4105, %v4101
            %v4394 = vpack.c.b16 %v4106, %v4102
            %v4395 = vpack.c.b16 %v4111, %v4107
            %v4396 = vpack.c.b16 %v4112, %v4108
            %v4397 = vpack.c.b16 %v4113, %v4109
            %v4398 = vpack.c.b16 %v4114, %v4110
            %v4399 = vpack.c.b16 %v4119, %v4115
            %v4400 = vpack.c.b16 %v4120, %v4116
            %v4401 = vpack.c.b16 %v4121, %v4117
            %v4402 = vpack.c.b16 %v4122, %v4118
            %v4403 = vpack.c.b16 %v4127, %v4123
            %v4404 = vpack.c.b16 %v4128, %v4124
            %v4405 = vpack.c.b16 %v4129, %v4125
            %v4406 = vpack.c.b16 %v4130, %v4126
            %v4407 = vpack.c.b16 %v4135, %v4131
            %v4408 = vpack.c.b16 %v4136, %v4132
            %v4409 = vpack.c.b16 %v4137, %v4133
            %v4410 = vpack.c.b16 %v4138, %v4134
            %v4411 = vpack.c.b16 %v4143, %v4139
            %v4412 = vpack.c.b16 %v4144, %v4140
            %v4413 = vpack.c.b16 %v4145, %v4141
            %v4414 = vpack.c.b16 %v4146, %v4142
            %v4415 = vpack.c.b16 %v4151, %v4147
            %v4416 = vpack.c.b16 %v4152, %v4148
            %v4417 = vpack.c.b16 %v4153, %v4149
            %v4418 = vpack.c.b16 %v4154, %v4150
            %v4419 = vpack.c.b16 %v4159, %v4155
            %v4420 = vpack.c.b16 %v4160, %v4156
            %v4421 = vpack.c.b16 %v4161, %v4157
            %v4422 = vpack.c.b16 %v4162, %v4158
            %v4423 = vpack.c.b16 %v4167, %v4163
            %v4424 = vpack.c.b16 %v4168, %v4164
            %v4425 = vpack.c.b16 %v4169, %v4165
            %v4426 = vpack.c.b16 %v4170, %v4166
            %4683 = vmatprep.subr.bf16.mxu0 %v4200
            %4684 = vmatpush1.bf16.msra.mxu0 %v4199
            %4685 = vmatprep.subr.bf16.mxu0 %v4196
            %4686 = vmatpush1.bf16.msra.mxu0 %v4195
            %4687 = vmatprep.subr.bf16.mxu0 %v4192
            %4688 = vmatpush1.bf16.msra.mxu0 %v4191
            %4689 = vmatprep.subr.bf16.mxu0 %v4188
            %4690 = vmatpush1.bf16.msra.mxu0 %v4187
            %4691 = vmatprep.subr.bf16.mxu0 %v4184
            %4692 = vmatpush1.bf16.msra.mxu0 %v4183
            %4693 = vmatprep.subr.bf16.mxu0 %v4180
            %4694 = vmatpush1.bf16.msra.mxu0 %v4179
            %4695 = vmatprep.subr.bf16.mxu0 %v4176
            %4696 = vmatpush1.bf16.msra.mxu0 %v4175
            %4697 = vmatprep.subr.bf16.mxu0 %v4172
            %4698 = vmatpush1.bf16.msra.mxu0 %v4171
            %4699 = vmatprep.subr.bf16.mxu0 %v4232
            %4700 = vmatpush2.bf16.msra.mxu0 %v4231
            %4701 = vmatprep.subr.bf16.mxu0 %v4228
            %4702 = vmatpush2.bf16.msra.mxu0 %v4227
            %4703 = vmatprep.subr.bf16.mxu0 %v4224
            %4704 = vmatpush2.bf16.msra.mxu0 %v4223
            %4705 = vmatprep.subr.bf16.mxu0 %v4220
            %4706 = vmatpush2.bf16.msra.mxu0 %v4219
            %4707 = vmatprep.subr.bf16.mxu0 %v4216
            %4708 = vmatpush2.bf16.msra.mxu0 %v4215
            %4709 = vmatprep.subr.bf16.mxu0 %v4212
            %4710 = vmatpush2.bf16.msra.mxu0 %v4211
            %4711 = vmatprep.subr.bf16.mxu0 %v4208
            %4712 = vmatpush2.bf16.msra.mxu0 %v4207
            %4713 = vmatprep.subr.bf16.mxu0 %v4204
            %4714 = vmatpush2.bf16.msra.mxu0 %v4203
            %4715 = vmatprep.mubr.bf16.mxu0 %v3118
            %4716 = vmatmul.mubr.bf16.gmra.mxu0 %v3117
            %v4717 = vpop.f32.mrf.mxu0
            %v4718 = vadd.f32 %v3386, %v4717
            %v4719 = vpop.f32.mrf.mxu0
            %v4720 = vadd.f32 %v3390, %v4719
            %v4721 = vpop.f32.mrf.mxu0
            %v4722 = vpop.f32.mrf.mxu0
            %4723 = vdwg.mxu0
            %4724 = vmatprep.subr.bf16.mxu0 %v4264
            %4725 = vmatpush1.bf16.msra.mxu0 %v4263
            %4726 = vmatprep.subr.bf16.mxu0 %v4260
            %4727 = vmatpush1.bf16.msra.mxu0 %v4259
            %4728 = vmatprep.subr.bf16.mxu0 %v4256
            %4729 = vmatpush1.bf16.msra.mxu0 %v4255
            %4730 = vmatprep.subr.bf16.mxu0 %v4252
            %4731 = vmatpush1.bf16.msra.mxu0 %v4251
            %4732 = vmatprep.subr.bf16.mxu0 %v4248
            %4733 = vmatpush1.bf16.msra.mxu0 %v4247
            %4734 = vmatprep.subr.bf16.mxu0 %v4244
            %4735 = vmatpush1.bf16.msra.mxu0 %v4243
            %4736 = vmatprep.subr.bf16.mxu0 %v4240
            %4737 = vmatpush1.bf16.msra.mxu0 %v4239
            %4738 = vmatprep.subr.bf16.mxu0 %v4236
            %4739 = vmatpush1.bf16.msra.mxu0 %v4235
            %4740 = vmatprep.subr.bf16.mxu0 %v4296
            %4741 = vmatpush2.bf16.msra.mxu0 %v4295
            %4742 = vmatprep.subr.bf16.mxu0 %v4292
            %4743 = vmatpush2.bf16.msra.mxu0 %v4291
            %4744 = vmatprep.subr.bf16.mxu0 %v4288
            %4745 = vmatpush2.bf16.msra.mxu0 %v4287
            %4746 = vmatprep.subr.bf16.mxu0 %v4284
            %4747 = vmatpush2.bf16.msra.mxu0 %v4283
            %4748 = vmatprep.subr.bf16.mxu0 %v4280
            %4749 = vmatpush2.bf16.msra.mxu0 %v4279
            %4750 = vmatprep.subr.bf16.mxu0 %v4276
            %4751 = vmatpush2.bf16.msra.mxu0 %v4275
            %4752 = vmatprep.subr.bf16.mxu0 %v4272
            %4753 = vmatpush2.bf16.msra.mxu0 %v4271
            %4754 = vmatprep.subr.bf16.mxu0 %v4268
            %4755 = vmatpush2.bf16.msra.mxu0 %v4267
            %4756 = vmatprep.mubr.bf16.mxu0 %v3120
            %4757 = vmatmul.mubr.bf16.gmra.mxu0 %v3119
            %v4758 = vpop.f32.mrf.mxu0
            %v4759 = vadd.f32 %v4718, %v4758
            %v4760 = vpop.f32.mrf.mxu0
            %v4761 = vadd.f32 %v4720, %v4760
            %v4762 = vpop.f32.mrf.mxu0
            %v4763 = vpop.f32.mrf.mxu0
            %4764 = vdwg.mxu0
            %4765 = vmatprep.subr.bf16.mxu0 %v4328
            %4766 = vmatpush1.bf16.msra.mxu0 %v4327
            %4767 = vmatprep.subr.bf16.mxu0 %v4324
            %4768 = vmatpush1.bf16.msra.mxu0 %v4323
            %4769 = vmatprep.subr.bf16.mxu0 %v4320
            %4770 = vmatpush1.bf16.msra.mxu0 %v4319
            %4771 = vmatprep.subr.bf16.mxu0 %v4316
            %4772 = vmatpush1.bf16.msra.mxu0 %v4315
            %4773 = vmatprep.subr.bf16.mxu0 %v4312
            %4774 = vmatpush1.bf16.msra.mxu0 %v4311
            %4775 = vmatprep.subr.bf16.mxu0 %v4308
            %4776 = vmatpush1.bf16.msra.mxu0 %v4307
            %4777 = vmatprep.subr.bf16.mxu0 %v4304
            %4778 = vmatpush1.bf16.msra.mxu0 %v4303
            %4779 = vmatprep.subr.bf16.mxu0 %v4300
            %4780 = vmatpush1.bf16.msra.mxu0 %v4299
            %4781 = vmatprep.subr.bf16.mxu0 %v4360
            %4782 = vmatpush2.bf16.msra.mxu0 %v4359
            %4783 = vmatprep.subr.bf16.mxu0 %v4356
            %4784 = vmatpush2.bf16.msra.mxu0 %v4355
            %4785 = vmatprep.subr.bf16.mxu0 %v4352
            %4786 = vmatpush2.bf16.msra.mxu0 %v4351
            %4787 = vmatprep.subr.bf16.mxu0 %v4348
            %4788 = vmatpush2.bf16.msra.mxu0 %v4347
            %4789 = vmatprep.subr.bf16.mxu0 %v4344
            %4790 = vmatpush2.bf16.msra.mxu0 %v4343
            %4791 = vmatprep.subr.bf16.mxu0 %v4340
            %4792 = vmatpush2.bf16.msra.mxu0 %v4339
            %4793 = vmatprep.subr.bf16.mxu0 %v4336
            %4794 = vmatpush2.bf16.msra.mxu0 %v4335
            %4795 = vmatprep.subr.bf16.mxu0 %v4332
            %4796 = vmatpush2.bf16.msra.mxu0 %v4331
            %4797 = vmatprep.mubr.bf16.mxu0 %v3122
            %4798 = vmatmul.mubr.bf16.gmra.mxu0 %v3121
            %v4799 = vpop.f32.mrf.mxu0
            %v4800 = vadd.f32 %v4759, %v4799
            %v4801 = vpop.f32.mrf.mxu0
            %v4802 = vadd.f32 %v4761, %v4801
            %v4803 = vpop.f32.mrf.mxu0
            %v4804 = vpop.f32.mrf.mxu0
            %4805 = vdwg.mxu0
            %4806 = vmatprep.subr.bf16.mxu0 %v4392
            %4807 = vmatpush1.bf16.msra.mxu0 %v4391
            %4808 = vmatprep.subr.bf16.mxu0 %v4388
            %4809 = vmatpush1.bf16.msra.mxu0 %v4387
            %4810 = vmatprep.subr.bf16.mxu0 %v4384
            %4811 = vmatpush1.bf16.msra.mxu0 %v4383
            %4812 = vmatprep.subr.bf16.mxu0 %v4380
            %4813 = vmatpush1.bf16.msra.mxu0 %v4379
            %4814 = vmatprep.subr.bf16.mxu0 %v4376
            %4815 = vmatpush1.bf16.msra.mxu0 %v4375
            %4816 = vmatprep.subr.bf16.mxu0 %v4372
            %4817 = vmatpush1.bf16.msra.mxu0 %v4371
            %4818 = vmatprep.subr.bf16.mxu0 %v4368
            %4819 = vmatpush1.bf16.msra.mxu0 %v4367
            %4820 = vmatprep.subr.bf16.mxu0 %v4364
            %4821 = vmatpush1.bf16.msra.mxu0 %v4363
            %4822 = vmatprep.subr.bf16.mxu0 %v4424
            %4823 = vmatpush2.bf16.msra.mxu0 %v4423
            %4824 = vmatprep.subr.bf16.mxu0 %v4420
            %4825 = vmatpush2.bf16.msra.mxu0 %v4419
            %4826 = vmatprep.subr.bf16.mxu0 %v4416
            %4827 = vmatpush2.bf16.msra.mxu0 %v4415
            %4828 = vmatprep.subr.bf16.mxu0 %v4412
            %4829 = vmatpush2.bf16.msra.mxu0 %v4411
            %4830 = vmatprep.subr.bf16.mxu0 %v4408
            %4831 = vmatpush2.bf16.msra.mxu0 %v4407
            %4832 = vmatprep.subr.bf16.mxu0 %v4404
            %4833 = vmatpush2.bf16.msra.mxu0 %v4403
            %4834 = vmatprep.subr.bf16.mxu0 %v4400
            %4835 = vmatpush2.bf16.msra.mxu0 %v4399
            %4836 = vmatprep.subr.bf16.mxu0 %v4396
            %4837 = vmatpush2.bf16.msra.mxu0 %v4395
            %4838 = vmatprep.mubr.bf16.mxu0 %v3124
            %4839 = vmatmul.mubr.bf16.gmra.mxu0 %v3123
            %v4840 = vpop.f32.mrf.mxu0
            %v4841 = vadd.f32 %v4800, %v4840
            %v4842 = vpop.f32.mrf.mxu0
            %v4843 = vadd.f32 %v4802, %v4842
            %v4844 = vpop.f32.mrf.mxu0
            %v4845 = vpop.f32.mrf.mxu0
            %4846 = vdwg.mxu0
            %4847 = vmatprep.subr.bf16.mxu0 %v4202
            %4848 = vmatpush1.bf16.msra.mxu0 %v4201
            %4849 = vmatprep.subr.bf16.mxu0 %v4198
            %4850 = vmatpush1.bf16.msra.mxu0 %v4197
            %4851 = vmatprep.subr.bf16.mxu0 %v4194
            %4852 = vmatpush1.bf16.msra.mxu0 %v4193
            %4853 = vmatprep.subr.bf16.mxu0 %v4190
            %4854 = vmatpush1.bf16.msra.mxu0 %v4189
            %4855 = vmatprep.subr.bf16.mxu0 %v4186
            %4856 = vmatpush1.bf16.msra.mxu0 %v4185
            %4857 = vmatprep.subr.bf16.mxu0 %v4182
            %4858 = vmatpush1.bf16.msra.mxu0 %v4181
            %4859 = vmatprep.subr.bf16.mxu0 %v4178
            %4860 = vmatpush1.bf16.msra.mxu0 %v4177
            %4861 = vmatprep.subr.bf16.mxu0 %v4174
            %4862 = vmatpush1.bf16.msra.mxu0 %v4173
            %4863 = vmatprep.subr.bf16.mxu0 %v4234
            %4864 = vmatpush2.bf16.msra.mxu0 %v4233
            %4865 = vmatprep.subr.bf16.mxu0 %v4230
            %4866 = vmatpush2.bf16.msra.mxu0 %v4229
            %4867 = vmatprep.subr.bf16.mxu0 %v4226
            %4868 = vmatpush2.bf16.msra.mxu0 %v4225
            %4869 = vmatprep.subr.bf16.mxu0 %v4222
            %4870 = vmatpush2.bf16.msra.mxu0 %v4221
            %4871 = vmatprep.subr.bf16.mxu0 %v4218
            %4872 = vmatpush2.bf16.msra.mxu0 %v4217
            %4873 = vmatprep.subr.bf16.mxu0 %v4214
            %4874 = vmatpush2.bf16.msra.mxu0 %v4213
            %4875 = vmatprep.subr.bf16.mxu0 %v4210
            %4876 = vmatpush2.bf16.msra.mxu0 %v4209
            %4877 = vmatprep.subr.bf16.mxu0 %v4206
            %4878 = vmatpush2.bf16.msra.mxu0 %v4205
            %4879 = vmatprep.mubr.bf16.mxu0 %v3118
            %4880 = vmatmul.mubr.bf16.gmra.mxu0 %v3117
            %v4881 = vpop.f32.mrf.mxu0
            %v4882 = vadd.f32 %v3394, %v4881
            %v4883 = vpop.f32.mrf.mxu0
            %v4884 = vadd.f32 %v3398, %v4883
            %v4885 = vpop.f32.mrf.mxu0
            %v4886 = vpop.f32.mrf.mxu0
            %4887 = vdwg.mxu0
            %4888 = vmatprep.subr.bf16.mxu0 %v4266
            %4889 = vmatpush1.bf16.msra.mxu0 %v4265
            %4890 = vmatprep.subr.bf16.mxu0 %v4262
            %4891 = vmatpush1.bf16.msra.mxu0 %v4261
            %4892 = vmatprep.subr.bf16.mxu0 %v4258
            %4893 = vmatpush1.bf16.msra.mxu0 %v4257
            %4894 = vmatprep.subr.bf16.mxu0 %v4254
            %4895 = vmatpush1.bf16.msra.mxu0 %v4253
            %4896 = vmatprep.subr.bf16.mxu0 %v4250
            %4897 = vmatpush1.bf16.msra.mxu0 %v4249
            %4898 = vmatprep.subr.bf16.mxu0 %v4246
            %4899 = vmatpush1.bf16.msra.mxu0 %v4245
            %4900 = vmatprep.subr.bf16.mxu0 %v4242
            %4901 = vmatpush1.bf16.msra.mxu0 %v4241
            %4902 = vmatprep.subr.bf16.mxu0 %v4238
            %4903 = vmatpush1.bf16.msra.mxu0 %v4237
            %4904 = vmatprep.subr.bf16.mxu0 %v4298
            %4905 = vmatpush2.bf16.msra.mxu0 %v4297
            %4906 = vmatprep.subr.bf16.mxu0 %v4294
            %4907 = vmatpush2.bf16.msra.mxu0 %v4293
            %4908 = vmatprep.subr.bf16.mxu0 %v4290
            %4909 = vmatpush2.bf16.msra.mxu0 %v4289
            %4910 = vmatprep.subr.bf16.mxu0 %v4286
            %4911 = vmatpush2.bf16.msra.mxu0 %v4285
            %4912 = vmatprep.subr.bf16.mxu0 %v4282
            %4913 = vmatpush2.bf16.msra.mxu0 %v4281
            %4914 = vmatprep.subr.bf16.mxu0 %v4278
            %4915 = vmatpush2.bf16.msra.mxu0 %v4277
            %4916 = vmatprep.subr.bf16.mxu0 %v4274
            %4917 = vmatpush2.bf16.msra.mxu0 %v4273
            %4918 = vmatprep.subr.bf16.mxu0 %v4270
            %4919 = vmatpush2.bf16.msra.mxu0 %v4269
            %4920 = vmatprep.mubr.bf16.mxu0 %v3120
            %4921 = vmatmul.mubr.bf16.gmra.mxu0 %v3119
            %v4922 = vpop.f32.mrf.mxu0
            %v4923 = vadd.f32 %v4882, %v4922
            %v4924 = vpop.f32.mrf.mxu0
            %v4925 = vadd.f32 %v4884, %v4924
            %v4926 = vpop.f32.mrf.mxu0
            %v4927 = vpop.f32.mrf.mxu0
            %4928 = vdwg.mxu0
            %4929 = vmatprep.subr.bf16.mxu0 %v4330
            %4930 = vmatpush1.bf16.msra.mxu0 %v4329
            %4931 = vmatprep.subr.bf16.mxu0 %v4326
            %4932 = vmatpush1.bf16.msra.mxu0 %v4325
            %4933 = vmatprep.subr.bf16.mxu0 %v4322
            %4934 = vmatpush1.bf16.msra.mxu0 %v4321
            %4935 = vmatprep.subr.bf16.mxu0 %v4318
            %4936 = vmatpush1.bf16.msra.mxu0 %v4317
            %4937 = vmatprep.subr.bf16.mxu0 %v4314
            %4938 = vmatpush1.bf16.msra.mxu0 %v4313
            %4939 = vmatprep.subr.bf16.mxu0 %v4310
            %4940 = vmatpush1.bf16.msra.mxu0 %v4309
            %4941 = vmatprep.subr.bf16.mxu0 %v4306
            %4942 = vmatpush1.bf16.msra.mxu0 %v4305
            %4943 = vmatprep.subr.bf16.mxu0 %v4302
            %4944 = vmatpush1.bf16.msra.mxu0 %v4301
            %4945 = vmatprep.subr.bf16.mxu0 %v4362
            %4946 = vmatpush2.bf16.msra.mxu0 %v4361
            %4947 = vmatprep.subr.bf16.mxu0 %v4358
            %4948 = vmatpush2.bf16.msra.mxu0 %v4357
            %4949 = vmatprep.subr.bf16.mxu0 %v4354
            %4950 = vmatpush2.bf16.msra.mxu0 %v4353
            %4951 = vmatprep.subr.bf16.mxu0 %v4350
            %4952 = vmatpush2.bf16.msra.mxu0 %v4349
            %4953 = vmatprep.subr.bf16.mxu0 %v4346
            %4954 = vmatpush2.bf16.msra.mxu0 %v4345
            %4955 = vmatprep.subr.bf16.mxu0 %v4342
            %4956 = vmatpush2.bf16.msra.mxu0 %v4341
            %4957 = vmatprep.subr.bf16.mxu0 %v4338
            %4958 = vmatpush2.bf16.msra.mxu0 %v4337
            %4959 = vmatprep.subr.bf16.mxu0 %v4334
            %4960 = vmatpush2.bf16.msra.mxu0 %v4333
            %4961 = vmatprep.mubr.bf16.mxu0 %v3122
            %4962 = vmatmul.mubr.bf16.gmra.mxu0 %v3121
            %v4963 = vpop.f32.mrf.mxu0
            %v4964 = vadd.f32 %v4923, %v4963
            %v4965 = vpop.f32.mrf.mxu0
            %v4966 = vadd.f32 %v4925, %v4965
            %v4967 = vpop.f32.mrf.mxu0
            %v4968 = vpop.f32.mrf.mxu0
            %4969 = vdwg.mxu0
            %4970 = vmatprep.subr.bf16.mxu0 %v4394
            %4971 = vmatpush1.bf16.msra.mxu0 %v4393
            %4972 = vmatprep.subr.bf16.mxu0 %v4390
            %4973 = vmatpush1.bf16.msra.mxu0 %v4389
            %4974 = vmatprep.subr.bf16.mxu0 %v4386
            %4975 = vmatpush1.bf16.msra.mxu0 %v4385
            %4976 = vmatprep.subr.bf16.mxu0 %v4382
            %4977 = vmatpush1.bf16.msra.mxu0 %v4381
            %4978 = vmatprep.subr.bf16.mxu0 %v4378
            %4979 = vmatpush1.bf16.msra.mxu0 %v4377
            %4980 = vmatprep.subr.bf16.mxu0 %v4374
            %4981 = vmatpush1.bf16.msra.mxu0 %v4373
            %4982 = vmatprep.subr.bf16.mxu0 %v4370
            %4983 = vmatpush1.bf16.msra.mxu0 %v4369
            %4984 = vmatprep.subr.bf16.mxu0 %v4366
            %4985 = vmatpush1.bf16.msra.mxu0 %v4365
            %4986 = vmatprep.subr.bf16.mxu0 %v4426
            %4987 = vmatpush2.bf16.msra.mxu0 %v4425
            %4988 = vmatprep.subr.bf16.mxu0 %v4422
            %4989 = vmatpush2.bf16.msra.mxu0 %v4421
            %4990 = vmatprep.subr.bf16.mxu0 %v4418
            %4991 = vmatpush2.bf16.msra.mxu0 %v4417
            %4992 = vmatprep.subr.bf16.mxu0 %v4414
            %4993 = vmatpush2.bf16.msra.mxu0 %v4413
            %4994 = vmatprep.subr.bf16.mxu0 %v4410
            %4995 = vmatpush2.bf16.msra.mxu0 %v4409
            %4996 = vmatprep.subr.bf16.mxu0 %v4406
            %4997 = vmatpush2.bf16.msra.mxu0 %v4405
            %4998 = vmatprep.subr.bf16.mxu0 %v4402
            %4999 = vmatpush2.bf16.msra.mxu0 %v4401
            %5000 = vmatprep.subr.bf16.mxu0 %v4398
            %5001 = vmatpush2.bf16.msra.mxu0 %v4397
            %5002 = vmatprep.mubr.bf16.mxu0 %v3124
            %5003 = vmatmul.mubr.bf16.gmra.mxu0 %v3123
            %v5004 = vpop.f32.mrf.mxu0
            %v5005 = vadd.f32 %v4964, %v5004
            %v5006 = vpop.f32.mrf.mxu0
            %v5007 = vadd.f32 %v4966, %v5006
            %v5008 = vpop.f32.mrf.mxu0
            %v5009 = vpop.f32.mrf.mxu0
            %5010 = vdwg.mxu0
            %v5011 = vmax.f32 %v4841, 0.0
            %v5012 = vmax.f32 %v4843, 0.0
            %v5013 = vmax.f32 %v5005, 0.0
            %v5014 = vmax.f32 %v5007, 0.0
            %v5015 = vld [vmem:[%s15] sm:$0xf]
            %v5016 = vld [vmem:[%s16] sm:$0xf]
            %v5017 = vsel %vm1275, %v5011, 0.0
            %v5018 = vrot.slane %v5017, 4
            %v5019 = vadd.f32 %v5017, %v5018
            %v5020 = vrot.slane %v5019, 2
            %v5021 = vadd.f32 %v5019, %v5020
            %v5022 = vrot.slane %v5021, 1
            %v5023 = vadd.f32 %v5021, %v5022
            %v5024 = vsel %vm1275, %v5012, 0.0
            %v5025 = vrot.slane %v5024, 4
            %v5026 = vadd.f32 %v5024, %v5025
            %v5027 = vrot.slane %v5026, 2
            %v5028 = vadd.f32 %v5026, %v5027
            %v5029 = vrot.slane %v5028, 1
            %v5030 = vadd.f32 %v5028, %v5029
            %v5031 = vsel %vm1275, %v5013, 0.0
            %v5032 = vrot.slane %v5031, 4
            %v5033 = vadd.f32 %v5031, %v5032
            %v5034 = vrot.slane %v5033, 2
            %v5035 = vadd.f32 %v5033, %v5034
            %v5036 = vrot.slane %v5035, 1
            %v5037 = vadd.f32 %v5035, %v5036
            %v5038 = vsel %vm1275, %v5014, 0.0
            %v5039 = vrot.slane %v5038, 4
            %v5040 = vadd.f32 %v5038, %v5039
            %v5041 = vrot.slane %v5040, 2
            %v5042 = vadd.f32 %v5040, %v5041
            %v5043 = vrot.slane %v5042, 1
            %v5044 = vadd.f32 %v5042, %v5043
            %v5045 = vmul.f32 %v5023, 0.25
            %v5046 = vmul.f32 %v5030, 0.25
            %v5047 = vmul.f32 %v5037, 0.25
            %v5048 = vmul.f32 %v5044, 0.25
            %v5049 = vmul.f32 %v5011, %v5011
            %v5050 = vmul.f32 %v5012, %v5012
            %v5051 = vmul.f32 %v5013, %v5013
            %v5052 = vmul.f32 %v5014, %v5014
            %v5053 = vsel %vm1275, %v5049, 0.0
            %v5054 = vrot.slane %v5053, 4
            %v5055 = vadd.f32 %v5053, %v5054
            %v5056 = vrot.slane %v5055, 2
            %v5057 = vadd.f32 %v5055, %v5056
            %v5058 = vrot.slane %v5057, 1
            %v5059 = vadd.f32 %v5057, %v5058
            %v5060 = vsel %vm1275, %v5050, 0.0
            %v5061 = vrot.slane %v5060, 4
            %v5062 = vadd.f32 %v5060, %v5061
            %v5063 = vrot.slane %v5062, 2
            %v5064 = vadd.f32 %v5062, %v5063
            %v5065 = vrot.slane %v5064, 1
            %v5066 = vadd.f32 %v5064, %v5065
            %v5067 = vsel %vm1275, %v5051, 0.0
            %v5068 = vrot.slane %v5067, 4
            %v5069 = vadd.f32 %v5067, %v5068
            %v5070 = vrot.slane %v5069, 2
            %v5071 = vadd.f32 %v5069, %v5070
            %v5072 = vrot.slane %v5071, 1
            %v5073 = vadd.f32 %v5071, %v5072
            %v5074 = vsel %vm1275, %v5052, 0.0
            %v5075 = vrot.slane %v5074, 4
            %v5076 = vadd.f32 %v5074, %v5075
            %v5077 = vrot.slane %v5076, 2
            %v5078 = vadd.f32 %v5076, %v5077
            %v5079 = vrot.slane %v5078, 1
            %v5080 = vadd.f32 %v5078, %v5079
            %v5081 = vmul.f32 %v5059, 0.25
            %v5082 = vmul.f32 %v5066, 0.25
            %v5083 = vmul.f32 %v5073, 0.25
            %v5084 = vmul.f32 %v5080, 0.25
            %v5085 = vmul.f32 %v5045, %v5045
            %v5086 = vmul.f32 %v5046, %v5046
            %v5087 = vmul.f32 %v5047, %v5047
            %v5088 = vmul.f32 %v5048, %v5048
            %v5089 = vsub.f32 %v5081, %v5085
            %v5090 = vsub.f32 %v5082, %v5086
            %v5091 = vsub.f32 %v5083, %v5087
            %v5092 = vsub.f32 %v5084, %v5088
            %v5093 = vadd.f32 %v5089, 1e-05
            %v5094 = vadd.f32 %v5090, 1e-05
            %v5095 = vadd.f32 %v5091, 1e-05
            %v5096 = vadd.f32 %v5092, 1e-05
            %v5097 = vrsqrt.pop %v5093
            %v5098 = vrsqrt.pop %v5094
            %v5099 = vrsqrt.pop %v5095
            %v5100 = vrsqrt.pop %v5096
            %v5105 = vcombine.low %v5097, %v5098
            %v5106 = vcombine.low %v5099, %v5100
            %v5108 = vunpack.c.l.s4 1966171168
            %v5109 = vunpack.c.0.s8 %v5108
            %v5110 = vlaneseq
            %v5111 = vshrl.u32 %v5110, 7
            %v5112 = vsub.s32 %v5109, %v5111
            %v5113 = vrot.slane %v5105, %v5112
            %v5115 = vunpack.c.l.s4 1966171168
            %v5116 = vunpack.c.0.s8 %v5115
            %v5117 = vlaneseq
            %v5118 = vshrl.u32 %v5117, 7
            %v5119 = vsub.s32 %v5116, %v5118
            %v5120 = vrot.slane %v5106, %v5119
            %v5121 = vcombine.low %v5113, %v5120
            %v5123 = vunpack.c.l.s4 1966171168
            %v5124 = vunpack.c.0.s8 %v5123
            %v5125 = vlaneseq
            %v5126 = vshrl.u32 %v5125, 7
            %v5127 = vsub.s32 %v5124, %v5126
            %v5128 = vrot.slane %v5121, %v5127
            %v5130 = vmul.f32 %v5015, %v5128
            %v5132 = vlaneseq
            %v5133 = vshrl.u32 %v5132, 7
            %v5134 = vsub.s32 0, %v5133
            %v5135 = vrot.slane %v5130, %v5134
            %v5136 = vlaneseq
            %v5137 = vshrl.u32 %v5136, 7
            %v5138 = vsub.s32 1, %v5137
            %v5139 = vrot.slane %v5130, %v5138
            %v5140 = vlaneseq
            %v5141 = vshrl.u32 %v5140, 7
            %v5142 = vsub.s32 2, %v5141
            %v5143 = vrot.slane %v5130, %v5142
            %v5144 = vlaneseq
            %v5145 = vshrl.u32 %v5144, 7
            %v5146 = vsub.s32 3, %v5145
            %v5147 = vrot.slane %v5130, %v5146
            %v5152 = vmul.f32 %v5011, %v5135
            %v5153 = vmul.f32 %v5012, %v5139
            %v5154 = vmul.f32 %v5013, %v5143
            %v5155 = vmul.f32 %v5014, %v5147
            %v5156 = vmul.f32 %v5045, %v5135
            %v5157 = vmul.f32 %v5046, %v5139
            %v5158 = vmul.f32 %v5047, %v5143
            %v5159 = vmul.f32 %v5048, %v5147
            %v5164 = vcombine.low %v5156, %v5157
            %v5165 = vcombine.low %v5158, %v5159
            %v5167 = vunpack.c.l.s4 1966171168
            %v5168 = vunpack.c.0.s8 %v5167
            %v5169 = vlaneseq
            %v5170 = vshrl.u32 %v5169, 7
            %v5171 = vsub.s32 %v5168, %v5170
            %v5172 = vrot.slane %v5164, %v5171
            %v5174 = vunpack.c.l.s4 1966171168
            %v5175 = vunpack.c.0.s8 %v5174
            %v5176 = vlaneseq
            %v5177 = vshrl.u32 %v5176, 7
            %v5178 = vsub.s32 %v5175, %v5177
            %v5179 = vrot.slane %v5165, %v5178
            %v5180 = vcombine.low %v5172, %v5179
            %v5182 = vunpack.c.l.s4 1966171168
            %v5183 = vunpack.c.0.s8 %v5182
            %v5184 = vlaneseq
            %v5185 = vshrl.u32 %v5184, 7
            %v5186 = vsub.s32 %v5183, %v5185
            %v5187 = vrot.slane %v5180, %v5186
            %v5189 = vsub.f32 %v5016, %v5187
            %v5191 = vlaneseq
            %v5192 = vshrl.u32 %v5191, 7
            %v5193 = vsub.s32 0, %v5192
            %v5194 = vrot.slane %v5189, %v5193
            %v5195 = vlaneseq
            %v5196 = vshrl.u32 %v5195, 7
            %v5197 = vsub.s32 1, %v5196
            %v5198 = vrot.slane %v5189, %v5197
            %v5199 = vlaneseq
            %v5200 = vshrl.u32 %v5199, 7
            %v5201 = vsub.s32 2, %v5200
            %v5202 = vrot.slane %v5189, %v5201
            %v5203 = vlaneseq
            %v5204 = vshrl.u32 %v5203, 7
            %v5205 = vsub.s32 3, %v5204
            %v5206 = vrot.slane %v5189, %v5205
            %v5211 = vadd.f32 %v5152, %v5194
            %v5212 = vadd.f32 %v5153, %v5198
            %v5213 = vadd.f32 %v5154, %v5202
            %v5214 = vadd.f32 %v5155, %v5206
            %v5215 = vpack.c.bf16 %v5211, %v5211
            %v5216 = vpack.c.bf16 %v5212, %v5212
            %v5217 = vpack.c.bf16 %v5213, %v5213
            %v5218 = vpack.c.bf16 %v5214, %v5214
            %v5219 = vld [vmem:[#allocation21] sm:$0xff]
            %v5220 = vld [vmem:[#allocation21 + $0x8] sm:$0xff]
            %v5221 = vld [vmem:[#allocation21 + $0x10] sm:$0xff]
            %v5222 = vld [vmem:[#allocation21 + $0x18] sm:$0xff]
            %v5223 = vld [vmem:[#allocation21 + $0x20] sm:$0xff]
            %v5224 = vld [vmem:[#allocation21 + $0x28] sm:$0xff]
            %v5225 = vld [vmem:[#allocation21 + $0x30] sm:$0xff]
            %v5226 = vld [vmem:[#allocation21 + $0x38] sm:$0xff]
            %v5227 = vld [vmem:[#allocation21 + $0x40] sm:$0xff]
            %v5228 = vld [vmem:[#allocation21 + $0x48] sm:$0xff]
            %v5229 = vld [vmem:[#allocation21 + $0x50] sm:$0xff]
            %v5230 = vld [vmem:[#allocation21 + $0x58] sm:$0xff]
            %v5231 = vld [vmem:[#allocation21 + $0x60] sm:$0xff]
            %v5232 = vld [vmem:[#allocation21 + $0x68] sm:$0xff]
            %v5233 = vld [vmem:[#allocation21 + $0x70] sm:$0xff]
            %v5234 = vld [vmem:[#allocation21 + $0x78] sm:$0xff]
            %v5235 = vld [vmem:[#allocation21 + $0x80] sm:$0xff]
            %v5236 = vld [vmem:[#allocation21 + $0x88] sm:$0xff]
            %v5237 = vld [vmem:[#allocation21 + $0x90] sm:$0xff]
            %v5238 = vld [vmem:[#allocation21 + $0x98] sm:$0xff]
            %v5239 = vld [vmem:[#allocation21 + $0xa0] sm:$0xff]
            %v5240 = vld [vmem:[#allocation21 + $0xa8] sm:$0xff]
            %v5241 = vld [vmem:[#allocation21 + $0xb0] sm:$0xff]
            %v5242 = vld [vmem:[#allocation21 + $0xb8] sm:$0xff]
            %v5243 = vld [vmem:[#allocation21 + $0xc0] sm:$0xff]
            %v5244 = vld [vmem:[#allocation21 + $0xc8] sm:$0xff]
            %v5245 = vld [vmem:[#allocation21 + $0xd0] sm:$0xff]
            %v5246 = vld [vmem:[#allocation21 + $0xd8] sm:$0xff]
            %v5247 = vld [vmem:[#allocation21 + $0xe0] sm:$0xff]
            %v5248 = vld [vmem:[#allocation21 + $0xe8] sm:$0xff]
            %v5249 = vld [vmem:[#allocation21 + $0xf0] sm:$0xff]
            %v5250 = vld [vmem:[#allocation21 + $0xf8] sm:$0xff]
            %v5251 = vld [vmem:[#allocation21 + $0x100] sm:$0xff]
            %v5252 = vld [vmem:[#allocation21 + $0x108] sm:$0xff]
            %v5253 = vld [vmem:[#allocation21 + $0x110] sm:$0xff]
            %v5254 = vld [vmem:[#allocation21 + $0x118] sm:$0xff]
            %v5255 = vld [vmem:[#allocation21 + $0x120] sm:$0xff]
            %v5256 = vld [vmem:[#allocation21 + $0x128] sm:$0xff]
            %v5257 = vld [vmem:[#allocation21 + $0x130] sm:$0xff]
            %v5258 = vld [vmem:[#allocation21 + $0x138] sm:$0xff]
            %v5259 = vld [vmem:[#allocation21 + $0x140] sm:$0xff]
            %v5260 = vld [vmem:[#allocation21 + $0x148] sm:$0xff]
            %v5261 = vld [vmem:[#allocation21 + $0x150] sm:$0xff]
            %v5262 = vld [vmem:[#allocation21 + $0x158] sm:$0xff]
            %v5263 = vld [vmem:[#allocation21 + $0x160] sm:$0xff]
            %v5264 = vld [vmem:[#allocation21 + $0x168] sm:$0xff]
            %v5265 = vld [vmem:[#allocation21 + $0x170] sm:$0xff]
            %v5266 = vld [vmem:[#allocation21 + $0x178] sm:$0xff]
            %v5267 = vld [vmem:[#allocation21 + $0x180] sm:$0xff]
            %v5268 = vld [vmem:[#allocation21 + $0x188] sm:$0xff]
            %v5269 = vld [vmem:[#allocation21 + $0x190] sm:$0xff]
            %v5270 = vld [vmem:[#allocation21 + $0x198] sm:$0xff]
            %v5271 = vld [vmem:[#allocation21 + $0x1a0] sm:$0xff]
            %v5272 = vld [vmem:[#allocation21 + $0x1a8] sm:$0xff]
            %v5273 = vld [vmem:[#allocation21 + $0x1b0] sm:$0xff]
            %v5274 = vld [vmem:[#allocation21 + $0x1b8] sm:$0xff]
            %v5275 = vld [vmem:[#allocation21 + $0x1c0] sm:$0xff]
            %v5276 = vld [vmem:[#allocation21 + $0x1c8] sm:$0xff]
            %v5277 = vld [vmem:[#allocation21 + $0x1d0] sm:$0xff]
            %v5278 = vld [vmem:[#allocation21 + $0x1d8] sm:$0xff]
            %v5279 = vld [vmem:[#allocation21 + $0x1e0] sm:$0xff]
            %v5280 = vld [vmem:[#allocation21 + $0x1e8] sm:$0xff]
            %v5281 = vld [vmem:[#allocation21 + $0x1f0] sm:$0xff]
            %v5282 = vld [vmem:[#allocation21 + $0x1f8] sm:$0xff]
            %v5283 = vld [vmem:[%s18] sm:$0x3]
            %v5285 = vlaneseq
            %v5286 = vshrl.u32 %v5285, 7
            %v5287 = vsub.s32 0, %v5286
            %v5288 = vrot.slane %v5283, %v5287
            %v5289 = vlaneseq
            %v5290 = vshrl.u32 %v5289, 7
            %v5291 = vsub.s32 1, %v5290
            %v5292 = vrot.slane %v5283, %v5291
            %v5359 = vunpack.c.l.b16 %v5219
            %v5360 = vunpack.c.h.b16 %v5219
            %v5361 = vunpack.c.l.b16 %v5220
            %v5362 = vunpack.c.h.b16 %v5220
            %v5363 = vunpack.c.l.b16 %v5221
            %v5364 = vunpack.c.h.b16 %v5221
            %v5365 = vunpack.c.l.b16 %v5222
            %v5366 = vunpack.c.h.b16 %v5222
            %v5367 = vunpack.c.l.b16 %v5223
            %v5368 = vunpack.c.h.b16 %v5223
            %v5369 = vunpack.c.l.b16 %v5224
            %v5370 = vunpack.c.h.b16 %v5224
            %v5371 = vunpack.c.l.b16 %v5225
            %v5372 = vunpack.c.h.b16 %v5225
            %v5373 = vunpack.c.l.b16 %v5226
            %v5374 = vunpack.c.h.b16 %v5226
            %v5375 = vunpack.c.l.b16 %v5227
            %v5376 = vunpack.c.h.b16 %v5227
            %v5377 = vunpack.c.l.b16 %v5228
            %v5378 = vunpack.c.h.b16 %v5228
            %v5379 = vunpack.c.l.b16 %v5229
            %v5380 = vunpack.c.h.b16 %v5229
            %v5381 = vunpack.c.l.b16 %v5230
            %v5382 = vunpack.c.h.b16 %v5230
            %v5383 = vunpack.c.l.b16 %v5231
            %v5384 = vunpack.c.h.b16 %v5231
            %v5385 = vunpack.c.l.b16 %v5232
            %v5386 = vunpack.c.h.b16 %v5232
            %v5387 = vunpack.c.l.b16 %v5233
            %v5388 = vunpack.c.h.b16 %v5233
            %v5389 = vunpack.c.l.b16 %v5234
            %v5390 = vunpack.c.h.b16 %v5234
            %v5391 = vunpack.c.l.b16 %v5235
            %v5392 = vunpack.c.h.b16 %v5235
            %v5393 = vunpack.c.l.b16 %v5236
            %v5394 = vunpack.c.h.b16 %v5236
            %v5395 = vunpack.c.l.b16 %v5237
            %v5396 = vunpack.c.h.b16 %v5237
            %v5397 = vunpack.c.l.b16 %v5238
            %v5398 = vunpack.c.h.b16 %v5238
            %v5399 = vunpack.c.l.b16 %v5239
            %v5400 = vunpack.c.h.b16 %v5239
            %v5401 = vunpack.c.l.b16 %v5240
            %v5402 = vunpack.c.h.b16 %v5240
            %v5403 = vunpack.c.l.b16 %v5241
            %v5404 = vunpack.c.h.b16 %v5241
            %v5405 = vunpack.c.l.b16 %v5242
            %v5406 = vunpack.c.h.b16 %v5242
            %v5407 = vunpack.c.l.b16 %v5243
            %v5408 = vunpack.c.h.b16 %v5243
            %v5409 = vunpack.c.l.b16 %v5244
            %v5410 = vunpack.c.h.b16 %v5244
            %v5411 = vunpack.c.l.b16 %v5245
            %v5412 = vunpack.c.h.b16 %v5245
            %v5413 = vunpack.c.l.b16 %v5246
            %v5414 = vunpack.c.h.b16 %v5246
            %v5415 = vunpack.c.l.b16 %v5247
            %v5416 = vunpack.c.h.b16 %v5247
            %v5417 = vunpack.c.l.b16 %v5248
            %v5418 = vunpack.c.h.b16 %v5248
            %v5419 = vunpack.c.l.b16 %v5249
            %v5420 = vunpack.c.h.b16 %v5249
            %v5421 = vunpack.c.l.b16 %v5250
            %v5422 = vunpack.c.h.b16 %v5250
            %v5423 = vunpack.c.l.b16 %v5251
            %v5424 = vunpack.c.h.b16 %v5251
            %v5425 = vunpack.c.l.b16 %v5252
            %v5426 = vunpack.c.h.b16 %v5252
            %v5427 = vunpack.c.l.b16 %v5253
            %v5428 = vunpack.c.h.b16 %v5253
            %v5429 = vunpack.c.l.b16 %v5254
            %v5430 = vunpack.c.h.b16 %v5254
            %v5431 = vunpack.c.l.b16 %v5255
            %v5432 = vunpack.c.h.b16 %v5255
            %v5433 = vunpack.c.l.b16 %v5256
            %v5434 = vunpack.c.h.b16 %v5256
            %v5435 = vunpack.c.l.b16 %v5257
            %v5436 = vunpack.c.h.b16 %v5257
            %v5437 = vunpack.c.l.b16 %v5258
            %v5438 = vunpack.c.h.b16 %v5258
            %v5439 = vunpack.c.l.b16 %v5259
            %v5440 = vunpack.c.h.b16 %v5259
            %v5441 = vunpack.c.l.b16 %v5260
            %v5442 = vunpack.c.h.b16 %v5260
            %v5443 = vunpack.c.l.b16 %v5261
            %v5444 = vunpack.c.h.b16 %v5261
            %v5445 = vunpack.c.l.b16 %v5262
            %v5446 = vunpack.c.h.b16 %v5262
            %v5447 = vunpack.c.l.b16 %v5263
            %v5448 = vunpack.c.h.b16 %v5263
            %v5449 = vunpack.c.l.b16 %v5264
            %v5450 = vunpack.c.h.b16 %v5264
            %v5451 = vunpack.c.l.b16 %v5265
            %v5452 = vunpack.c.h.b16 %v5265
            %v5453 = vunpack.c.l.b16 %v5266
            %v5454 = vunpack.c.h.b16 %v5266
            %v5455 = vunpack.c.l.b16 %v5267
            %v5456 = vunpack.c.h.b16 %v5267
            %v5457 = vunpack.c.l.b16 %v5268
            %v5458 = vunpack.c.h.b16 %v5268
            %v5459 = vunpack.c.l.b16 %v5269
            %v5460 = vunpack.c.h.b16 %v5269
            %v5461 = vunpack.c.l.b16 %v5270
            %v5462 = vunpack.c.h.b16 %v5270
            %v5463 = vunpack.c.l.b16 %v5271
            %v5464 = vunpack.c.h.b16 %v5271
            %v5465 = vunpack.c.l.b16 %v5272
            %v5466 = vunpack.c.h.b16 %v5272
            %v5467 = vunpack.c.l.b16 %v5273
            %v5468 = vunpack.c.h.b16 %v5273
            %v5469 = vunpack.c.l.b16 %v5274
            %v5470 = vunpack.c.h.b16 %v5274
            %v5471 = vunpack.c.l.b16 %v5275
            %v5472 = vunpack.c.h.b16 %v5275
            %v5473 = vunpack.c.l.b16 %v5276
            %v5474 = vunpack.c.h.b16 %v5276
            %v5475 = vunpack.c.l.b16 %v5277
            %v5476 = vunpack.c.h.b16 %v5277
            %v5477 = vunpack.c.l.b16 %v5278
            %v5478 = vunpack.c.h.b16 %v5278
            %v5479 = vunpack.c.l.b16 %v5279
            %v5480 = vunpack.c.h.b16 %v5279
            %v5481 = vunpack.c.l.b16 %v5280
            %v5482 = vunpack.c.h.b16 %v5280
            %v5483 = vunpack.c.l.b16 %v5281
            %v5484 = vunpack.c.h.b16 %v5281
            %v5485 = vunpack.c.l.b16 %v5282
            %v5486 = vunpack.c.h.b16 %v5282
            %v5487 = vpack.c.b16 %v5361, %v5359
            %v5488 = vpack.c.b16 %v5362, %v5360
            %v5489 = vpack.c.b16 %v5365, %v5363
            %v5490 = vpack.c.b16 %v5366, %v5364
            %v5491 = vpack.c.b16 %v5369, %v5367
            %v5492 = vpack.c.b16 %v5370, %v5368
            %v5493 = vpack.c.b16 %v5373, %v5371
            %v5494 = vpack.c.b16 %v5374, %v5372
            %v5495 = vpack.c.b16 %v5377, %v5375
            %v5496 = vpack.c.b16 %v5378, %v5376
            %v5497 = vpack.c.b16 %v5381, %v5379
            %v5498 = vpack.c.b16 %v5382, %v5380
            %v5499 = vpack.c.b16 %v5385, %v5383
            %v5500 = vpack.c.b16 %v5386, %v5384
            %v5501 = vpack.c.b16 %v5389, %v5387
            %v5502 = vpack.c.b16 %v5390, %v5388
            %v5503 = vpack.c.b16 %v5393, %v5391
            %v5504 = vpack.c.b16 %v5394, %v5392
            %v5505 = vpack.c.b16 %v5397, %v5395
            %v5506 = vpack.c.b16 %v5398, %v5396
            %v5507 = vpack.c.b16 %v5401, %v5399
            %v5508 = vpack.c.b16 %v5402, %v5400
            %v5509 = vpack.c.b16 %v5405, %v5403
            %v5510 = vpack.c.b16 %v5406, %v5404
            %v5511 = vpack.c.b16 %v5409, %v5407
            %v5512 = vpack.c.b16 %v5410, %v5408
            %v5513 = vpack.c.b16 %v5413, %v5411
            %v5514 = vpack.c.b16 %v5414, %v5412
            %v5515 = vpack.c.b16 %v5417, %v5415
            %v5516 = vpack.c.b16 %v5418, %v5416
            %v5517 = vpack.c.b16 %v5421, %v5419
            %v5518 = vpack.c.b16 %v5422, %v5420
            %v5519 = vpack.c.b16 %v5425, %v5423
            %v5520 = vpack.c.b16 %v5426, %v5424
            %v5521 = vpack.c.b16 %v5429, %v5427
            %v5522 = vpack.c.b16 %v5430, %v5428
            %v5523 = vpack.c.b16 %v5433, %v5431
            %v5524 = vpack.c.b16 %v5434, %v5432
            %v5525 = vpack.c.b16 %v5437, %v5435
            %v5526 = vpack.c.b16 %v5438, %v5436
            %v5527 = vpack.c.b16 %v5441, %v5439
            %v5528 = vpack.c.b16 %v5442, %v5440
            %v5529 = vpack.c.b16 %v5445, %v5443
            %v5530 = vpack.c.b16 %v5446, %v5444
            %v5531 = vpack.c.b16 %v5449, %v5447
            %v5532 = vpack.c.b16 %v5450, %v5448
            %v5533 = vpack.c.b16 %v5453, %v5451
            %v5534 = vpack.c.b16 %v5454, %v5452
            %v5535 = vpack.c.b16 %v5457, %v5455
            %v5536 = vpack.c.b16 %v5458, %v5456
            %v5537 = vpack.c.b16 %v5461, %v5459
            %v5538 = vpack.c.b16 %v5462, %v5460
            %v5539 = vpack.c.b16 %v5465, %v5463
            %v5540 = vpack.c.b16 %v5466, %v5464
            %v5541 = vpack.c.b16 %v5469, %v5467
            %v5542 = vpack.c.b16 %v5470, %v5468
            %v5543 = vpack.c.b16 %v5473, %v5471
            %v5544 = vpack.c.b16 %v5474, %v5472
            %v5545 = vpack.c.b16 %v5477, %v5475
            %v5546 = vpack.c.b16 %v5478, %v5476
            %v5547 = vpack.c.b16 %v5481, %v5479
            %v5548 = vpack.c.b16 %v5482, %v5480
            %v5549 = vpack.c.b16 %v5485, %v5483
            %v5550 = vpack.c.b16 %v5486, %v5484
            %5615 = vmatprep.subr.bf16.mxu0 %v5502
            %5616 = vmatpush1.bf16.msra.mxu0 %v5501
            %5617 = vmatprep.subr.bf16.mxu0 %v5500
            %5618 = vmatpush1.bf16.msra.mxu0 %v5499
            %5619 = vmatprep.subr.bf16.mxu0 %v5498
            %5620 = vmatpush1.bf16.msra.mxu0 %v5497
            %5621 = vmatprep.subr.bf16.mxu0 %v5496
            %5622 = vmatpush1.bf16.msra.mxu0 %v5495
            %5623 = vmatprep.subr.bf16.mxu0 %v5494
            %5624 = vmatpush1.bf16.msra.mxu0 %v5493
            %5625 = vmatprep.subr.bf16.mxu0 %v5492
            %5626 = vmatpush1.bf16.msra.mxu0 %v5491
            %5627 = vmatprep.subr.bf16.mxu0 %v5490
            %5628 = vmatpush1.bf16.msra.mxu0 %v5489
            %5629 = vmatprep.subr.bf16.mxu0 %v5488
            %5630 = vmatpush1.bf16.msra.mxu0 %v5487
            %5631 = vmatprep.subr.bf16.mxu0 %v5518
            %5632 = vmatpush2.bf16.msra.mxu0 %v5517
            %5633 = vmatprep.subr.bf16.mxu0 %v5516
            %5634 = vmatpush2.bf16.msra.mxu0 %v5515
            %5635 = vmatprep.subr.bf16.mxu0 %v5514
            %5636 = vmatpush2.bf16.msra.mxu0 %v5513
            %5637 = vmatprep.subr.bf16.mxu0 %v5512
            %5638 = vmatpush2.bf16.msra.mxu0 %v5511
            %5639 = vmatprep.subr.bf16.mxu0 %v5510
            %5640 = vmatpush2.bf16.msra.mxu0 %v5509
            %5641 = vmatprep.subr.bf16.mxu0 %v5508
            %5642 = vmatpush2.bf16.msra.mxu0 %v5507
            %5643 = vmatprep.subr.bf16.mxu0 %v5506
            %5644 = vmatpush2.bf16.msra.mxu0 %v5505
            %5645 = vmatprep.subr.bf16.mxu0 %v5504
            %5646 = vmatpush2.bf16.msra.mxu0 %v5503
            %5647 = vmatprep.mubr.bf16.mxu0 %v5216
            %5648 = vmatmul.mubr.bf16.gmra.mxu0 %v5215
            %v5649 = vpop.f32.mrf.mxu0
            %v5650 = vadd.f32 %v5288, %v5649
            %v5651 = vpop.f32.mrf.mxu0
            %v5652 = vadd.f32 %v5292, %v5651
            %v5653 = vpop.f32.mrf.mxu0
            %v5654 = vpop.f32.mrf.mxu0
            %5655 = vdwg.mxu0
            %5656 = vmatprep.subr.bf16.mxu0 %v5534
            %5657 = vmatpush1.bf16.msra.mxu0 %v5533
            %5658 = vmatprep.subr.bf16.mxu0 %v5532
            %5659 = vmatpush1.bf16.msra.mxu0 %v5531
            %5660 = vmatprep.subr.bf16.mxu0 %v5530
            %5661 = vmatpush1.bf16.msra.mxu0 %v5529
            %5662 = vmatprep.subr.bf16.mxu0 %v5528
            %5663 = vmatpush1.bf16.msra.mxu0 %v5527
            %5664 = vmatprep.subr.bf16.mxu0 %v5526
            %5665 = vmatpush1.bf16.msra.mxu0 %v5525
            %5666 = vmatprep.subr.bf16.mxu0 %v5524
            %5667 = vmatpush1.bf16.msra.mxu0 %v5523
            %5668 = vmatprep.subr.bf16.mxu0 %v5522
            %5669 = vmatpush1.bf16.msra.mxu0 %v5521
            %5670 = vmatprep.subr.bf16.mxu0 %v5520
            %5671 = vmatpush1.bf16.msra.mxu0 %v5519
            %5672 = vmatprep.subr.bf16.mxu0 %v5550
            %5673 = vmatpush2.bf16.msra.mxu0 %v5549
            %5674 = vmatprep.subr.bf16.mxu0 %v5548
            %5675 = vmatpush2.bf16.msra.mxu0 %v5547
            %5676 = vmatprep.subr.bf16.mxu0 %v5546
            %5677 = vmatpush2.bf16.msra.mxu0 %v5545
            %5678 = vmatprep.subr.bf16.mxu0 %v5544
            %5679 = vmatpush2.bf16.msra.mxu0 %v5543
            %5680 = vmatprep.subr.bf16.mxu0 %v5542
            %5681 = vmatpush2.bf16.msra.mxu0 %v5541
            %5682 = vmatprep.subr.bf16.mxu0 %v5540
            %5683 = vmatpush2.bf16.msra.mxu0 %v5539
            %5684 = vmatprep.subr.bf16.mxu0 %v5538
            %5685 = vmatpush2.bf16.msra.mxu0 %v5537
            %5686 = vmatprep.subr.bf16.mxu0 %v5536
            %5687 = vmatpush2.bf16.msra.mxu0 %v5535
            %5688 = vmatprep.mubr.bf16.mxu0 %v5218
            %5689 = vmatmul.mubr.bf16.gmra.mxu0 %v5217
            %v5690 = vpop.f32.mrf.mxu0
            %v5691 = vadd.f32 %v5650, %v5690
            %v5692 = vpop.f32.mrf.mxu0
            %v5693 = vadd.f32 %v5652, %v5692
            %v5694 = vpop.f32.mrf.mxu0
            %v5695 = vpop.f32.mrf.mxu0
            %5696 = vdwg.mxu0
            %v5697 = vmax.f32 %v5691, 0.0
            %v5698 = vmax.f32 %v5693, 0.0
            %v5699 = vld [vmem:[%s19] sm:$0x3]
            %v5700 = vld [vmem:[%s20] sm:$0x3]
            %v5701 = vsel %vm1275, %v5697, 0.0
            %v5702 = vrot.slane %v5701, 4
            %v5703 = vadd.f32 %v5701, %v5702
            %v5704 = vrot.slane %v5703, 2
            %v5705 = vadd.f32 %v5703, %v5704
            %v5706 = vrot.slane %v5705, 1
            %v5707 = vadd.f32 %v5705, %v5706
            %v5708 = vsel %vm1275, %v5698, 0.0
            %v5709 = vrot.slane %v5708, 4
            %v5710 = vadd.f32 %v5708, %v5709
            %v5711 = vrot.slane %v5710, 2
            %v5712 = vadd.f32 %v5710, %v5711
            %v5713 = vrot.slane %v5712, 1
            %v5714 = vadd.f32 %v5712, %v5713
            %v5715 = vmul.f32 %v5707, 0.25
            %v5716 = vmul.f32 %v5714, 0.25
            %v5717 = vmul.f32 %v5697, %v5697
            %v5718 = vmul.f32 %v5698, %v5698
            %v5719 = vsel %vm1275, %v5717, 0.0
            %v5720 = vrot.slane %v5719, 4
            %v5721 = vadd.f32 %v5719, %v5720
            %v5722 = vrot.slane %v5721, 2
            %v5723 = vadd.f32 %v5721, %v5722
            %v5724 = vrot.slane %v5723, 1
            %v5725 = vadd.f32 %v5723, %v5724
            %v5726 = vsel %vm1275, %v5718, 0.0
            %v5727 = vrot.slane %v5726, 4
            %v5728 = vadd.f32 %v5726, %v5727
            %v5729 = vrot.slane %v5728, 2
            %v5730 = vadd.f32 %v5728, %v5729
            %v5731 = vrot.slane %v5730, 1
            %v5732 = vadd.f32 %v5730, %v5731
            %v5733 = vmul.f32 %v5725, 0.25
            %v5734 = vmul.f32 %v5732, 0.25
            %v5735 = vmul.f32 %v5715, %v5715
            %v5736 = vmul.f32 %v5716, %v5716
            %v5737 = vsub.f32 %v5733, %v5735
            %v5738 = vsub.f32 %v5734, %v5736
            %v5739 = vadd.f32 %v5737, 1e-05
            %v5740 = vadd.f32 %v5738, 1e-05
            %v5741 = vrsqrt.pop %v5739
            %v5742 = vrsqrt.pop %v5740
            %v5745 = vcombine.low %v5741, %v5742
            %v5747 = vunpack.c.l.s4 1966171168
            %v5748 = vunpack.c.0.s8 %v5747
            %v5749 = vlaneseq
            %v5750 = vshrl.u32 %v5749, 7
            %v5751 = vsub.s32 %v5748, %v5750
            %v5752 = vrot.slane %v5745, %v5751
            %v5754 = vunpack.c.l.s4 1966171168
            %v5755 = vunpack.c.0.s8 %v5754
            %v5756 = vlaneseq
            %v5757 = vshrl.u32 %v5756, 7
            %v5758 = vsub.s32 %v5755, %v5757
            %v5759 = vrot.slane %v5752, %v5758
            %v5761 = vmul.f32 %v5699, %v5759
            %v5763 = vlaneseq
            %v5764 = vshrl.u32 %v5763, 7
            %v5765 = vsub.s32 0, %v5764
            %v5766 = vrot.slane %v5761, %v5765
            %v5767 = vlaneseq
            %v5768 = vshrl.u32 %v5767, 7
            %v5769 = vsub.s32 1, %v5768
            %v5770 = vrot.slane %v5761, %v5769
            %v5773 = vmul.f32 %v5697, %v5766
            %v5774 = vmul.f32 %v5698, %v5770
            %v5775 = vmul.f32 %v5715, %v5766
            %v5776 = vmul.f32 %v5716, %v5770
            %v5779 = vcombine.low %v5775, %v5776
            %v5781 = vunpack.c.l.s4 1966171168
            %v5782 = vunpack.c.0.s8 %v5781
            %v5783 = vlaneseq
            %v5784 = vshrl.u32 %v5783, 7
            %v5785 = vsub.s32 %v5782, %v5784
            %v5786 = vrot.slane %v5779, %v5785
            %v5788 = vunpack.c.l.s4 1966171168
            %v5789 = vunpack.c.0.s8 %v5788
            %v5790 = vlaneseq
            %v5791 = vshrl.u32 %v5790, 7
            %v5792 = vsub.s32 %v5789, %v5791
            %v5793 = vrot.slane %v5786, %v5792
            %v5795 = vsub.f32 %v5700, %v5793
            %v5797 = vlaneseq
            %v5798 = vshrl.u32 %v5797, 7
            %v5799 = vsub.s32 0, %v5798
            %v5800 = vrot.slane %v5795, %v5799
            %v5801 = vlaneseq
            %v5802 = vshrl.u32 %v5801, 7
            %v5803 = vsub.s32 1, %v5802
            %v5804 = vrot.slane %v5795, %v5803
            %v5807 = vadd.f32 %v5773, %v5800
            %v5808 = vadd.f32 %v5774, %v5804
            %v5809 = vpack.c.bf16 %v5807, %v5807
            %v5810 = vpack.c.bf16 %v5808, %v5808
            %v5811 = vld [vmem:[%s21] sm:$0xf]
            %v5812 = vld [vmem:[%s21 + $0x4] sm:$0xf]
            %v5813 = vld [vmem:[%s21 + $0x8] sm:$0xf]
            %v5814 = vld [vmem:[%s21 + $0xc] sm:$0xf]
            %v5815 = vld [vmem:[%s21 + $0x10] sm:$0xf]
            %v5816 = vld [vmem:[%s21 + $0x14] sm:$0xf]
            %v5817 = vld [vmem:[%s21 + $0x18] sm:$0xf]
            %v5818 = vld [vmem:[%s21 + $0x1c] sm:$0xf]
            %v5819 = vld [vmem:[%s21 + $0x20] sm:$0xf]
            %v5820 = vld [vmem:[%s21 + $0x24] sm:$0xf]
            %v5821 = vld [vmem:[%s21 + $0x28] sm:$0xf]
            %v5822 = vld [vmem:[%s21 + $0x2c] sm:$0xf]
            %v5823 = vld [vmem:[%s21 + $0x30] sm:$0xf]
            %v5824 = vld [vmem:[%s21 + $0x34] sm:$0xf]
            %v5825 = vld [vmem:[%s21 + $0x38] sm:$0xf]
            %v5826 = vld [vmem:[%s21 + $0x3c] sm:$0xf]
            %v5827 = vld [vmem:[%s21 + $0x40] sm:$0xf]
            %v5828 = vld [vmem:[%s21 + $0x44] sm:$0xf]
            %v5829 = vld [vmem:[%s21 + $0x48] sm:$0xf]
            %v5830 = vld [vmem:[%s21 + $0x4c] sm:$0xf]
            %v5831 = vld [vmem:[%s21 + $0x50] sm:$0xf]
            %v5832 = vld [vmem:[%s21 + $0x54] sm:$0xf]
            %v5833 = vld [vmem:[%s21 + $0x58] sm:$0xf]
            %v5834 = vld [vmem:[%s21 + $0x5c] sm:$0xf]
            %v5835 = vld [vmem:[%s21 + $0x60] sm:$0xf]
            %v5836 = vld [vmem:[%s21 + $0x64] sm:$0xf]
            %v5837 = vld [vmem:[%s21 + $0x68] sm:$0xf]
            %v5838 = vld [vmem:[%s21 + $0x6c] sm:$0xf]
            %v5839 = vld [vmem:[%s21 + $0x70] sm:$0xf]
            %v5840 = vld [vmem:[%s21 + $0x74] sm:$0xf]
            %v5841 = vld [vmem:[%s21 + $0x78] sm:$0xf]
            %v5842 = vld [vmem:[%s21 + $0x7c] sm:$0xf]
            %v5843 = vld [vmem:[%s22] sm:$0x1]
            %v5845 = vlaneseq
            %v5846 = vshrl.u32 %v5845, 7
            %v5847 = vsub.s32 0, %v5846
            %v5848 = vrot.slane %v5843, %v5847
            %v5882 = vunpack.c.l.b16 %v5811
            %v5883 = vunpack.c.l.b16 %v5812
            %v5884 = vunpack.c.l.b16 %v5813
            %v5885 = vunpack.c.l.b16 %v5814
            %v5886 = vunpack.c.l.b16 %v5815
            %v5887 = vunpack.c.l.b16 %v5816
            %v5888 = vunpack.c.l.b16 %v5817
            %v5889 = vunpack.c.l.b16 %v5818
            %v5890 = vunpack.c.l.b16 %v5819
            %v5891 = vunpack.c.l.b16 %v5820
            %v5892 = vunpack.c.l.b16 %v5821
            %v5893 = vunpack.c.l.b16 %v5822
            %v5894 = vunpack.c.l.b16 %v5823
            %v5895 = vunpack.c.l.b16 %v5824
            %v5896 = vunpack.c.l.b16 %v5825
            %v5897 = vunpack.c.l.b16 %v5826
            %v5898 = vunpack.c.l.b16 %v5827
            %v5899 = vunpack.c.l.b16 %v5828
            %v5900 = vunpack.c.l.b16 %v5829
            %v5901 = vunpack.c.l.b16 %v5830
            %v5902 = vunpack.c.l.b16 %v5831
            %v5903 = vunpack.c.l.b16 %v5832
            %v5904 = vunpack.c.l.b16 %v5833
            %v5905 = vunpack.c.l.b16 %v5834
            %v5906 = vunpack.c.l.b16 %v5835
            %v5907 = vunpack.c.l.b16 %v5836
            %v5908 = vunpack.c.l.b16 %v5837
            %v5909 = vunpack.c.l.b16 %v5838
            %v5910 = vunpack.c.l.b16 %v5839
            %v5911 = vunpack.c.l.b16 %v5840
            %v5912 = vunpack.c.l.b16 %v5841
            %v5913 = vunpack.c.l.b16 %v5842
            %v5914 = vpack.c.b16 %v5883, %v5882
            %v5915 = vpack.c.b16 %v5885, %v5884
            %v5916 = vpack.c.b16 %v5887, %v5886
            %v5917 = vpack.c.b16 %v5889, %v5888
            %v5918 = vpack.c.b16 %v5891, %v5890
            %v5919 = vpack.c.b16 %v5893, %v5892
            %v5920 = vpack.c.b16 %v5895, %v5894
            %v5921 = vpack.c.b16 %v5897, %v5896
            %v5922 = vpack.c.b16 %v5899, %v5898
            %v5923 = vpack.c.b16 %v5901, %v5900
            %v5924 = vpack.c.b16 %v5903, %v5902
            %v5925 = vpack.c.b16 %v5905, %v5904
            %v5926 = vpack.c.b16 %v5907, %v5906
            %v5927 = vpack.c.b16 %v5909, %v5908
            %v5928 = vpack.c.b16 %v5911, %v5910
            %v5929 = vpack.c.b16 %v5913, %v5912
            %5946 = vmatprep.subr.bf16.mxu0 0
            %5947 = vmatpush1.bf16.msra.mxu0 %v5921
            %5948 = vmatprep.subr.bf16.mxu0 0
            %5949 = vmatpush1.bf16.msra.mxu0 %v5920
            %5950 = vmatprep.subr.bf16.mxu0 0
            %5951 = vmatpush1.bf16.msra.mxu0 %v5919
            %5952 = vmatprep.subr.bf16.mxu0 0
            %5953 = vmatpush1.bf16.msra.mxu0 %v5918
            %5954 = vmatprep.subr.bf16.mxu0 0
            %5955 = vmatpush1.bf16.msra.mxu0 %v5917
            %5956 = vmatprep.subr.bf16.mxu0 0
            %5957 = vmatpush1.bf16.msra.mxu0 %v5916
            %5958 = vmatprep.subr.bf16.mxu0 0
            %5959 = vmatpush1.bf16.msra.mxu0 %v5915
            %5960 = vmatprep.subr.bf16.mxu0 0
            %5961 = vmatpush1.bf16.msra.mxu0 %v5914
            %5962 = vmatprep.subr.bf16.mxu0 0
            %5963 = vmatpush2.bf16.msra.mxu0 %v5929
            %5964 = vmatprep.subr.bf16.mxu0 0
            %5965 = vmatpush2.bf16.msra.mxu0 %v5928
            %5966 = vmatprep.subr.bf16.mxu0 0
            %5967 = vmatpush2.bf16.msra.mxu0 %v5927
            %5968 = vmatprep.subr.bf16.mxu0 0
            %5969 = vmatpush2.bf16.msra.mxu0 %v5926
            %5970 = vmatprep.subr.bf16.mxu0 0
            %5971 = vmatpush2.bf16.msra.mxu0 %v5925
            %5972 = vmatprep.subr.bf16.mxu0 0
            %5973 = vmatpush2.bf16.msra.mxu0 %v5924
            %5974 = vmatprep.subr.bf16.mxu0 0
            %5975 = vmatpush2.bf16.msra.mxu0 %v5923
            %5976 = vmatprep.subr.bf16.mxu0 0
            %5977 = vmatpush2.bf16.msra.mxu0 %v5922
            %5978 = vmatprep.mubr.bf16.mxu0 %v5810
            %5979 = vmatmul.mubr.bf16.gmra.mxu0 %v5809
            %v5980 = vpop.f32.mrf.mxu0
            %v5981 = vadd.f32 %v5848, %v5980
            %v5982 = vpop.f32.mrf.mxu0
            %v5983 = vpop.f32.mrf.mxu0
            %v5984 = vpop.f32.mrf.mxu0
            %5985 = vdwg.mxu0
            %v5986 = vld [vmem:[%s23] sm:$0x1]
            %v5988 = vlaneseq
            %v5989 = vshrl.u32 %v5988, 7
            %v5990 = vsub.s32 0, %v5989
            %v5991 = vrot.slane %v5986, %v5990
            %v5993 = vadd.f32 %v5981, %v5991
            %5994 = vst [vmem:[#allocation22] sm:$0xf] %v5993
          $region172: #{tpu_custom_call.1} parent=155 // pred_fallthru
            _
        $region156: #{tpu_custom_call.1} parent=115 // pred_fallthru
          _
        // Predicated region
        $region173: #{tpu_custom_call.1} parent=115 // pred_check
          %p5995 = pneg %p581
        $region174: #{tpu_custom_call.1} parent=115 // pred_check_branch
          %5997 = sbr.rel (%p5995) target = $region176
        $region175: #{tpu_custom_call.1} parent=115 // pred_region
          %s5999 = ssub.s32 64, 64
          %6000 = vsyncadd [#allocation18], %s5999
          %s6002 = sshll.u32 [#allocation22], 4
          %s6003 = int_to_ptr.vmem [resolvable:$true] %s6002
          %6005 = dma.vmem_to_hbm [thread:$0]  %s6003, 64, %s24, [#allocation18]
        $region176: #{tpu_custom_call.1} parent=115 // pred_fallthru
          _
        // Predicated region
        $region177: #{tpu_custom_call.1} parent=115 // pred_check
          %p6006 = pneg %p581
        $region178: #{tpu_custom_call.1} parent=115 // pred_check_branch
          %6008 = sbr.rel (%p6006) target = $region180
        $region179: #{tpu_custom_call.1} parent=115 // pred_region
          %6009 = dma.done [#allocation18], 64
        $region180: #{tpu_custom_call.1} parent=115 // pred_fallthru
          _
      $region116: #{tpu_custom_call.1} parent=5 // pred_fallthru
        _
      %p6010 = scmp.le.s32.totalorder 2, %s33
      // Predicated region
      $region181: #{tpu_custom_call.1} parent=5 // pred_check
        %p6011 = pneg %p6010
      $region182: #{tpu_custom_call.1} parent=5 // pred_check_branch
        %6013 = sbr.rel (%p6011) target = $region184
      $region183: #{tpu_custom_call.1} parent=5 // pred_region
        %s6014 = ssub.s32 %s33, 2
      $region184: #{tpu_custom_call.1} parent=5 // pred_fallthru
        _
    $region6: #{tpu_custom_call.1} parent=1 // loop_footer
      %s37 = sadd.s32 1, %s33
    $region7: #{tpu_custom_call.1} parent=1 // loop_footer_branch
      %32 = sbr.rel target = $region3
    $region8: #{tpu_custom_call.1} parent=1 // loop_exit
      _
    %6015 = vsyncpa [#allocation17], 1
    %s6016 = scalar_lea.sflag [#allocation17], 1
    %6017 = vsyncpa %s6016, 1
    %6018 = vsyncpa [#allocation20], 1
    %6019 = vsyncpa [#allocation18], 1
    %s6020 = scalar_lea.sflag [#allocation18], 1
    %6021 = vsyncpa %s6020, 1

</llo_original>
